<compile_context>
chip_gen: v5e
topology: v5e:2x2
jax: 0.10.0
libtpu: 0.0.40
codegen_flags: <defaults>
</compile_context>

<pallas_src>
import functools
import math

import jax
import jax.numpy as jnp
from jax.experimental import pallas as pl
from jax.experimental.pallas import tpu as pltpu


# ------------------------------ kernel -------------------------------------- #

def _gelu(x):
    # exact (erf) GELU, matching torch.nn.GELU default
    return 0.5 * x * (1.0 + jax.lax.erf(x * (1.0 / math.sqrt(2.0))))


def _layernorm(h, w, b, eps):
    mu = jnp.mean(h, axis=-1, keepdims=True)
    d = h - mu
    var = jnp.mean(d * d, axis=-1, keepdims=True)
    return d * jax.lax.rsqrt(var + eps) * w + b


def _fused_forward_kernel(
    # inputs
    trip_ref, wtrip_ref, btrip_ref,
    w_qkv_ref, b_qkv_ref, w_o_ref, b_o_ref,
    ln1_w_ref, ln1_b_ref,
    w_ffn1_ref, b_ffn1_ref, w_ffn2_ref, b_ffn2_ref,
    ln2_w_ref, ln2_b_ref,
    af_w0_ref, af_b0_ref, af_w1_ref, af_b1_ref, af_u_ref,
    # output
    out_ref,
    # scratch (persists across grid steps)
    x_vmem,
    *, B, L, H, eps):
    layer = pl.program_id(0)
    n_layers = pl.num_programs(0)
    M, E = x_vmem.shape
    Dh = E // H

    # ---------------- step 0: triplet embedding -> x_vmem ----------------- #
    @pl.when(layer == 0)
    def _init():
        t = trip_ref[...]            # (M, 3)
        w = wtrip_ref[...]           # (3, E)
        x_vmem[...] = (t[:, 0:1] * w[0:1, :]
                       + t[:, 1:2] * w[1:2, :]
                       + t[:, 2:3] * w[2:3, :]
                       + btrip_ref[...])

    # --------------- TransformerEncoderUnit `layer` ----------------------- #
    x = x_vmem[...]                                 # (M, E) f32
    x_bf = x.astype(jnp.bfloat16)

    # Multi-head attention: heads are unrolled; every per-head operand is a
    # *leading-dim* slice of a packed weight slab (free), so there is no lane
    # slicing of activations, no masked partial store and no attn scratch.
    attn_out = b_o_ref[0]                           # (1, E) f32, broadcasts
    for h in range(H):
        q = (jnp.dot(x_bf, w_qkv_ref[0, h],
                     preferred_element_type=jnp.float32) + b_qkv_ref[0, h])
        k = (jnp.dot(x_bf, w_qkv_ref[0, H + h],
                     preferred_element_type=jnp.float32) + b_qkv_ref[0, H + h])
        v = (jnp.dot(x_bf, w_qkv_ref[0, 2 * H + h],
                     preferred_element_type=jnp.float32) + b_qkv_ref[0, 2 * H + h])
        q3 = q.reshape(B, L, Dh).astype(jnp.bfloat16)
        k3 = k.reshape(B, L, Dh).astype(jnp.bfloat16)
        v3 = v.reshape(B, L, Dh).astype(jnp.bfloat16)
        # scores / softmax statistics in f32
        s = jnp.einsum('bld,bmd->blm', q3, k3,
                       preferred_element_type=jnp.float32)       # (B, L, L)
        m = jnp.max(s, axis=-1, keepdims=True)
        p = jnp.exp(s - m)
        p = p * pl.reciprocal(jnp.sum(p, axis=-1, keepdims=True), approx=True)
        o = jnp.einsum('blm,bmd->bld', p.astype(jnp.bfloat16), v3,
                       preferred_element_type=jnp.float32)       # (B, L, Dh)
        # fold head output straight through its slice of the out-projection
        attn_out = attn_out + jnp.dot(o.reshape(M, Dh).astype(jnp.bfloat16),
                                      w_o_ref[0, h],
                                      preferred_element_type=jnp.float32)

    x1 = _layernorm(attn_out + x, ln1_w_ref[0], ln1_b_ref[0], eps)

    # FFN: Linear -> ReLU -> (Dropout=id) -> Linear -> ReLU   (per reference)
    h1 = jnp.dot(x1.astype(jnp.bfloat16), w_ffn1_ref[0],
                 preferred_element_type=jnp.float32) + b_ffn1_ref[0]
    h1 = jnp.maximum(h1, 0.0)
    h2 = jnp.dot(h1.astype(jnp.bfloat16), w_ffn2_ref[0],
                 preferred_element_type=jnp.float32) + b_ffn2_ref[0]
    h2 = jnp.maximum(h2, 0.0)

    x2 = _layernorm(x1 + h2, ln2_w_ref[0], ln2_b_ref[0], eps)
    x_vmem[...] = x2                                # lane-dense full-tile store

    # ---------------- last step: AttFusion epilogue ------------------------ #
    @pl.when(layer == n_layers - 1)
    def _fin():
        emb = x2                                                 # (M, E) f32
        a0 = _gelu(jnp.dot(emb.astype(jnp.bfloat16), af_w0_ref[...],
                           preferred_element_type=jnp.float32) + af_b0_ref[...])
        a1 = jnp.tanh(jnp.dot(a0.astype(jnp.bfloat16), af_w1_ref[...],
                              preferred_element_type=jnp.float32) + af_b1_ref[...])
        F1 = a1.shape[-1]
        a1_3 = a1.reshape(B, L, F1)
        u3 = af_u_ref[...].reshape(1, 1, F1)
        sc = jnp.sum(a1_3 * u3, axis=-1, keepdims=True)          # (B, L, 1)
        # softmax over the sequence dim (torch dim=0 of an (L, B, 1) tensor)
        mm = jnp.max(sc, axis=1, keepdims=True)
        ee = jnp.exp(sc - mm)
        att = ee * pl.reciprocal(jnp.sum(ee, axis=1, keepdims=True), approx=True)
        emb3 = emb.reshape(B, L, E)
        # torch.sum(x * att, dim=1)  (sum over batch)  ->  (L, E)
        out_ref[...] = jnp.sum(emb3 * att, axis=0).astype(out_ref.dtype)


# --------------------------- wrapper / wiring -------------------------------- #

def transformer_encoder_cte(var, time_, val, packed, *, nheads, eps=1e-5):
    """Full forward: (L, B, 1) triplet -> (L, E), one pallas_call."""
    L, B, _ = var.shape
    M = L * B
    H = nheads
    E = packed["w_trip"].shape[1]
    hidden = packed["w_ffn1"].shape[2]
    F0 = packed["af_w0"].shape[1]
    F1 = packed["af_w1"].shape[1]
    NL = packed["w_qkv"].shape[0]
    assert E % H == 0
    Dh = E // H

    # pack (var, time, val) lane-contiguously, rows ordered batch-major so
    # per-batch attention is a simple (M, .) -> (B, L, .) reshape in-kernel.
    trip = jnp.stack([var[:, :, 0].T.reshape(M),
                      time_[:, :, 0].T.reshape(M),
                      val[:, :, 0].T.reshape(M)], axis=1)        # (M, 3)

    per_layer4 = lambda l: (l, 0, 0, 0)
    per_layer3 = lambda l: (l, 0, 0)
    const2 = lambda l: (0, 0)

    # ------- VMEM budget: double-buffered per-layer blocks + constants ------ #
    per_layer_names = ["w_qkv", "b_qkv", "w_o", "b_o", "ln1_w", "ln1_b",
                       "w_ffn1", "b_ffn1", "w_ffn2", "b_ffn2", "ln2_w", "ln2_b"]
    const_names = ["w_trip", "b_trip", "af_w0", "af_b0", "af_w1", "af_b1", "af_u"]
    layer_bytes = sum(int(packed[n].size) * packed[n].dtype.itemsize
                      for n in per_layer_names) // NL
    const_bytes = (sum(int(packed[n].size) * packed[n].dtype.itemsize
                       for n in const_names) + int(trip.size) * 4)
    scratch_bytes = M * E * 4
    out_bytes = L * E * 4
    need = 2 * layer_bytes + 2 * const_bytes + scratch_bytes + 2 * out_bytes
    # generous 2x + 8 MiB margin for compiler internal scratch / tile padding;
    # cap below v6e physical — on v7x (64 MiB) very large configs would need
    # bf16 + single-buffered FFN weights anyway.
    vmem_limit = int(min(max(2 * need + (8 << 20), 32 << 20), 112 << 20))

    # advisory cost estimate (static python ints)
    flops_layer = (2 * M * E * 3 * E             # qkv projections
                   + 4 * B * H * L * L * Dh      # qk^T and pv
                   + 2 * M * E * E               # out projection
                   + 4 * M * E * hidden)         # two ffn matmuls
    flops = NL * flops_layer + 6 * M * E + 2 * M * E * F0 + 2 * M * F0 * F1
    transc = NL * (B * H * L * L) + M * (F0 + F1 + 1)
    param_bytes = sum(int(v.size) * v.dtype.itemsize for v in packed.values())
    bytes_acc = param_bytes + int(trip.size) * 4 + L * E * 4

    kernel = functools.partial(_fused_forward_kernel, B=B, L=L, H=H, eps=eps)

    out = pl.pallas_call(
        kernel,
        out_shape=jax.ShapeDtypeStruct((L, E), jnp.float32),
        grid=(NL,),
        in_specs=[
            pl.BlockSpec((M, 3), const2),                   # trip
            pl.BlockSpec((3, E), const2),                   # w_trip
            pl.BlockSpec((1, E), const2),                   # b_trip
            pl.BlockSpec((1, 3 * H, E, Dh), per_layer4),    # w_qkv (bf16, stacked)
            pl.BlockSpec((1, 3 * H, 1, Dh), per_layer4),    # b_qkv
            pl.BlockSpec((1, H, Dh, E), per_layer4),        # w_o   (bf16)
            pl.BlockSpec((1, 1, E), per_layer3),            # b_o
            pl.BlockSpec((1, 1, E), per_layer3),            # ln1_w
            pl.BlockSpec((1, 1, E), per_layer3),            # ln1_b
            pl.BlockSpec((1, E, hidden), per_layer3),       # w_ffn1 (bf16)
            pl.BlockSpec((1, 1, hidden), per_layer3),       # b_ffn1
            pl.BlockSpec((1, hidden, E), per_layer3),       # w_ffn2 (bf16)
            pl.BlockSpec((1, 1, E), per_layer3),            # b_ffn2
            pl.BlockSpec((1, 1, E), per_layer3),            # ln2_w
            pl.BlockSpec((1, 1, E), per_layer3),            # ln2_b
            pl.BlockSpec((E, F0), const2),                  # af_w0 (bf16)
            pl.BlockSpec((1, F0), const2),                  # af_b0
            pl.BlockSpec((F0, F1), const2),                 # af_w1 (bf16)
            pl.BlockSpec((1, F1), const2),                  # af_b1
            pl.BlockSpec((1, F1), const2),                  # af_u
        ],
        out_specs=pl.BlockSpec((L, E), const2),
        scratch_shapes=[
            pltpu.VMEM((M, E), jnp.float32),                # running activation
        ],
        compiler_params=pltpu.CompilerParams(
            dimension_semantics=("arbitrary",),
            vmem_limit_bytes=vmem_limit),
        cost_estimate=pl.CostEstimate(
            flops=flops, transcendentals=transc, bytes_accessed=bytes_acc),
    )(trip, packed["w_trip"], packed["b_trip"],
      packed["w_qkv"], packed["b_qkv"], packed["w_o"], packed["b_o"],
      packed["ln1_w"], packed["ln1_b"],
      packed["w_ffn1"], packed["b_ffn1"], packed["w_ffn2"], packed["b_ffn2"],
      packed["ln2_w"], packed["ln2_b"],
      packed["af_w0"], packed["af_b0"], packed["af_w1"], packed["af_b1"],
      packed["af_u"])
    return out


@functools.partial(jax.jit, static_argnames=("nheads",))
def forward(var, time_, val, packed, nheads):
    return transformer_encoder_cte(var, time_, val, packed, nheads=nheads)


# ------------------------------ parameters ----------------------------------- #

def init_params(key, E, hidden, num_layers, ffn_dims):
    keys = iter(jax.random.split(key, 8 * num_layers + 32))

    def nrm(shape, scale=0.1):
        return scale * jax.random.normal(next(keys), shape, dtype=jnp.float32)

    params = {}
    # InitTriplet: three nn.Linear(1, E) summed (b_sum = sum of their biases)
    params["triplet"] = dict(
        wv=nrm((1, E)), wt=nrm((1, E)), wl=nrm((1, E)),
        b_sum=nrm((E,)),
    )
    layers = []
    for _ in range(num_layers):
        layers.append(dict(
            # weights already stored (in_features, out_features), i.e. W^T
            w_in=nrm((E, 3 * E)), b_in=nrm((3 * E,)),
            w_out=nrm((E, E)), b_out=nrm((E,)),
            ln1_w=jnp.ones((E,), jnp.float32), ln1_b=jnp.zeros((E,), jnp.float32),
            w_ffn1=nrm((E, hidden)), b_ffn1=nrm((hidden,)),
            w_ffn2=nrm((hidden, E)), b_ffn2=nrm((E,)),
            ln2_w=jnp.ones((E,), jnp.float32), ln2_b=jnp.zeros((E,), jnp.float32),
        ))
    params["layers"] = layers
    f0, f1 = ffn_dims
    params["attfusion"] = dict(
        w0=nrm((E, f0)), b0=nrm((f0,)),
        w1=nrm((f0, f1)), b1=nrm((f1,)),
        u=jax.random.uniform(next(keys), (f1,), dtype=jnp.float32),  # torch.rand
    )
    return params


def pack_params(params, nheads):
    """Stack per-layer weights (leading layer dim), pre-split attention weights
    per head, fold the 1/sqrt(Dh) scale, and cast matmul weights to bf16."""
    tp = params["triplet"]
    E = tp["wv"].shape[1]
    H = nheads
    Dh = E // H
    scale = 1.0 / math.sqrt(Dh)

    ls = params["layers"]
    NL = len(ls)

    def stk(name):
        return jnp.stack([p[name] for p in ls], axis=0)

    w_in = stk("w_in")                                   # (NL, E, 3E)
    b_in = stk("b_in")                                   # (NL, 3E)
    # fold 1/sqrt(Dh) into the Q projection (columns [:E]) -- free, done once.
    w_in = w_in.at[:, :, :E].multiply(scale)
    b_in = b_in.at[:, :E].multiply(scale)
    # per-head slabs: column c = t*E + h*Dh + d  ->  slab index t*H + h
    w_qkv = (w_in.reshape(NL, E, 3, H, Dh)
                 .transpose(0, 2, 3, 1, 4)
                 .reshape(NL, 3 * H, E, Dh))             # (NL, 3H, E, Dh)
    b_qkv = b_in.reshape(NL, 3, H, Dh).reshape(NL, 3 * H, 1, Dh)
    w_o = stk("w_out").reshape(NL, H, Dh, E)             # (NL, H, Dh, E)

    hidden = ls[0]["w_ffn1"].shape[1]
    af = params["attfusion"]
    F0 = af["w0"].shape[1]
    F1 = af["w1"].shape[1]

    packed = dict(
        w_trip=jnp.concatenate([tp["wv"], tp["wt"], tp["wl"]], axis=0),  # (3, E)
        b_trip=tp["b_sum"].reshape(1, E),
        w_qkv=w_qkv.astype(jnp.bfloat16),
        b_qkv=b_qkv,                                      # f32
        w_o=w_o.astype(jnp.bfloat16),
        b_o=stk("b_out").reshape(NL, 1, E),
        ln1_w=stk("ln1_w").reshape(NL, 1, E),
        ln1_b=stk("ln1_b").reshape(NL, 1, E),
        w_ffn1=stk("w_ffn1").astype(jnp.bfloat16),
        b_ffn1=stk("b_ffn1").reshape(NL, 1, hidden),
        w_ffn2=stk("w_ffn2").astype(jnp.bfloat16),
        b_ffn2=stk("b_ffn2").reshape(NL, 1, E),
        ln2_w=stk("ln2_w").reshape(NL, 1, E),
        ln2_b=stk("ln2_b").reshape(NL, 1, E),
        af_w0=af["w0"].astype(jnp.bfloat16), af_b0=af["b0"].reshape(1, F0),
        af_w1=af["w1"].astype(jnp.bfloat16), af_b1=af["b1"].reshape(1, F1),
        af_u=af["u"].reshape(1, F1),
    )
    return packed


# --------------------------------- main --------------------------------------- #

if __name__ == "__main__":
    key = jax.random.PRNGKey(0)
    kp, kv, kt, kl = jax.random.split(key, 4)

    # Small but shape-consistent configuration (batch_first=False convention)
    L, B = 8, 2                  # seq, batch
    E, hidden = 32, 32
    nheads, num_layers = 4, 2
    ffn_dims = (24, 16)

    params = init_params(kp, E, hidden, num_layers, ffn_dims)
    packed = pack_params(params, nheads)

    var = jax.random.normal(kv, (L, B, 1), dtype=jnp.float32)
    time_ = jax.random.normal(kt, (L, B, 1), dtype=jnp.float32)
    val = jax.random.normal(kl, (L, B, 1), dtype=jnp.float32)

    out = forward(var, time_, val, packed, nheads=nheads)
    out = jax.block_until_ready(out)
    assert out.shape == (L, E), out.shape
    assert bool(jnp.all(jnp.isfinite(out)))
    print("KERNEL_OK")
</pallas_src>

<mosaic_0001>
module attributes {stable_mosaic.version = 11 : i64} {
  func.func @_fused_forward_kernel(%arg0: i32, %arg1: memref<16x3xf32, #tpu.memory_space<vmem>>, %arg2: memref<3x32xf32, #tpu.memory_space<vmem>>, %arg3: memref<1x32xf32, #tpu.memory_space<vmem>>, %arg4: memref<1x12x32x8xbf16, #tpu.memory_space<vmem>>, %arg5: memref<1x12x1x8xf32, #tpu.memory_space<vmem>>, %arg6: memref<1x4x8x32xbf16, #tpu.memory_space<vmem>>, %arg7: memref<1x1x32xf32, #tpu.memory_space<vmem>>, %arg8: memref<1x1x32xf32, #tpu.memory_space<vmem>>, %arg9: memref<1x1x32xf32, #tpu.memory_space<vmem>>, %arg10: memref<1x32x32xbf16, #tpu.memory_space<vmem>>, %arg11: memref<1x1x32xf32, #tpu.memory_space<vmem>>, %arg12: memref<1x32x32xbf16, #tpu.memory_space<vmem>>, %arg13: memref<1x1x32xf32, #tpu.memory_space<vmem>>, %arg14: memref<1x1x32xf32, #tpu.memory_space<vmem>>, %arg15: memref<1x1x32xf32, #tpu.memory_space<vmem>>, %arg16: memref<32x24xbf16, #tpu.memory_space<vmem>>, %arg17: memref<1x24xf32, #tpu.memory_space<vmem>>, %arg18: memref<24x16xbf16, #tpu.memory_space<vmem>>, %arg19: memref<1x16xf32, #tpu.memory_space<vmem>>, %arg20: memref<1x16xf32, #tpu.memory_space<vmem>>, %arg21: memref<8x32xf32, #tpu.memory_space<vmem>>, %arg22: memref<16x32xf32, #tpu.memory_space<vmem>>) attributes {dimension_semantics = [#tpu.dimension_semantics<arbitrary>], iteration_bounds = array<i64: 2>, scalar_prefetch = 0 : i64, scratch_operands = 1 : i64, tpu.core_type = #tpu.core_type<tc>, window_params = [{pipeline_mode = #tpu.pipeline_mode<synchronous>, transform_indices = @transform_0, window_bounds = array<i64: 16, 3>}, {pipeline_mode = #tpu.pipeline_mode<synchronous>, transform_indices = @transform_1, window_bounds = array<i64: 3, 32>}, {pipeline_mode = #tpu.pipeline_mode<synchronous>, transform_indices = @transform_2, window_bounds = array<i64: 1, 32>}, {transform_indices = @transform_3, window_bounds = array<i64: 1, 12, 32, 8>}, {transform_indices = @transform_4, window_bounds = array<i64: 1, 12, 1, 8>}, {transform_indices = @transform_5, window_bounds = array<i64: 1, 4, 8, 32>}, {transform_indices = @transform_6, window_bounds = array<i64: 1, 1, 32>}, {transform_indices = @transform_7, window_bounds = array<i64: 1, 1, 32>}, {transform_indices = @transform_8, window_bounds = array<i64: 1, 1, 32>}, {transform_indices = @transform_9, window_bounds = array<i64: 1, 32, 32>}, {transform_indices = @transform_10, window_bounds = array<i64: 1, 1, 32>}, {transform_indices = @transform_11, window_bounds = array<i64: 1, 32, 32>}, {transform_indices = @transform_12, window_bounds = array<i64: 1, 1, 32>}, {transform_indices = @transform_13, window_bounds = array<i64: 1, 1, 32>}, {transform_indices = @transform_14, window_bounds = array<i64: 1, 1, 32>}, {pipeline_mode = #tpu.pipeline_mode<synchronous>, transform_indices = @transform_15, window_bounds = array<i64: 32, 24>}, {pipeline_mode = #tpu.pipeline_mode<synchronous>, transform_indices = @transform_16, window_bounds = array<i64: 1, 24>}, {pipeline_mode = #tpu.pipeline_mode<synchronous>, transform_indices = @transform_17, window_bounds = array<i64: 24, 16>}, {pipeline_mode = #tpu.pipeline_mode<synchronous>, transform_indices = @transform_18, window_bounds = array<i64: 1, 16>}, {pipeline_mode = #tpu.pipeline_mode<synchronous>, transform_indices = @transform_19, window_bounds = array<i64: 1, 16>}, {pipeline_mode = #tpu.pipeline_mode<synchronous>, transform_indices = @transform_20, window_bounds = array<i64: 8, 32>}]} {
    %c0_i32 = arith.constant 0 : i32
    %0 = arith.cmpi eq, %arg0, %c0_i32 : i32
    %1 = arith.extui %0 : i1 to i32
    %c0_i32_0 = arith.constant 0 : i32
    %2 = arith.cmpi ne, %1, %c0_i32_0 : i32
    scf.if %2 {
      %c0_178 = arith.constant 0 : index
      %c0_179 = arith.constant 0 : index
      %266 = vector.load %arg1[%c0_178, %c0_179] : memref<16x3xf32, #tpu.memory_space<vmem>>, vector<16x3xf32>
      %c0_180 = arith.constant 0 : index
      %c0_181 = arith.constant 0 : index
      %267 = vector.load %arg2[%c0_180, %c0_181] : memref<3x32xf32, #tpu.memory_space<vmem>>, vector<3x32xf32>
      %268 = vector.extract_strided_slice %266 {offsets = [0, 0], sizes = [16, 1], strides = [1, 1]} : vector<16x3xf32> to vector<16x1xf32>
      %269 = vector.extract_strided_slice %267 {offsets = [0, 0], sizes = [1, 32], strides = [1, 1]} : vector<3x32xf32> to vector<1x32xf32>
      %270 = vector.broadcast %268 : vector<16x1xf32> to vector<16x32xf32>
      %271 = vector.broadcast %269 : vector<1x32xf32> to vector<16x32xf32>
      %272 = arith.mulf %270, %271 : vector<16x32xf32>
      %273 = vector.extract_strided_slice %266 {offsets = [0, 1], sizes = [16, 1], strides = [1, 1]} : vector<16x3xf32> to vector<16x1xf32>
      %274 = vector.extract_strided_slice %267 {offsets = [1, 0], sizes = [1, 32], strides = [1, 1]} : vector<3x32xf32> to vector<1x32xf32>
      %275 = vector.broadcast %273 : vector<16x1xf32> to vector<16x32xf32>
      %276 = vector.broadcast %274 : vector<1x32xf32> to vector<16x32xf32>
      %277 = arith.mulf %275, %276 : vector<16x32xf32>
      %278 = arith.addf %272, %277 : vector<16x32xf32>
      %279 = vector.extract_strided_slice %266 {offsets = [0, 2], sizes = [16, 1], strides = [1, 1]} : vector<16x3xf32> to vector<16x1xf32>
      %280 = vector.extract_strided_slice %267 {offsets = [2, 0], sizes = [1, 32], strides = [1, 1]} : vector<3x32xf32> to vector<1x32xf32>
      %281 = vector.broadcast %279 : vector<16x1xf32> to vector<16x32xf32>
      %282 = vector.broadcast %280 : vector<1x32xf32> to vector<16x32xf32>
      %283 = arith.mulf %281, %282 : vector<16x32xf32>
      %284 = arith.addf %278, %283 : vector<16x32xf32>
      %c0_182 = arith.constant 0 : index
      %c0_183 = arith.constant 0 : index
      %285 = vector.load %arg3[%c0_182, %c0_183] : memref<1x32xf32, #tpu.memory_space<vmem>>, vector<1x32xf32>
      %286 = vector.broadcast %285 : vector<1x32xf32> to vector<16x32xf32>
      %287 = arith.addf %284, %286 : vector<16x32xf32>
      %c0_184 = arith.constant 0 : index
      %c0_185 = arith.constant 0 : index
      %288 = vector.load %arg22[%c0_184, %c0_185] : memref<16x32xf32, #tpu.memory_space<vmem>>, vector<16x32xf32>
      tpu.vector_store %arg22[%c0_184, %c0_185], %287 {strides = array<i32>} : memref<16x32xf32, #tpu.memory_space<vmem>>, vector<16x32xf32>,
    } else {
    }
    %c0 = arith.constant 0 : index
    %c0_1 = arith.constant 0 : index
    %3 = vector.load %arg22[%c0, %c0_1] : memref<16x32xf32, #tpu.memory_space<vmem>>, vector<16x32xf32>
    %4 = arith.truncf %3 : vector<16x32xf32> to vector<16x32xbf16>
    %c0_2 = arith.constant 0 : index
    %c0_3 = arith.constant 0 : index
    %c0_4 = arith.constant 0 : index
    %5 = vector.load %arg7[%c0_2, %c0_3, %c0_4] : memref<1x1x32xf32, #tpu.memory_space<vmem>>, vector<1x1x32xf32>
    %6 = vector.shape_cast %5 : vector<1x1x32xf32> to vector<1x32xf32>
    %c0_5 = arith.constant 0 : index
    %c0_6 = arith.constant 0 : index
    %c0_7 = arith.constant 0 : index
    %c0_8 = arith.constant 0 : index
    %7 = vector.load %arg4[%c0_5, %c0_6, %c0_7, %c0_8] : memref<1x12x32x8xbf16, #tpu.memory_space<vmem>>, vector<1x1x32x8xbf16>
    %8 = vector.shape_cast %7 : vector<1x1x32x8xbf16> to vector<32x8xbf16>
    %cst = arith.constant dense<0.000000e+00> : vector<16x8xf32>
    %9 = tpu.matmul %4, %8, %cst {dimension_numbers = #tpu.dot_dimension_numbers<[1], [0], [0], [1], [0, 0, 1, 1], [], []>} : vector<16x32xbf16>, vector<32x8xbf16>, vector<16x8xf32> -> vector<16x8xf32>
    %c0_9 = arith.constant 0 : index
    %c0_10 = arith.constant 0 : index
    %c0_11 = arith.constant 0 : index
    %c0_12 = arith.constant 0 : index
    %10 = vector.load %arg5[%c0_9, %c0_10, %c0_11, %c0_12] : memref<1x12x1x8xf32, #tpu.memory_space<vmem>>, vector<1x1x1x8xf32>
    %11 = vector.shape_cast %10 : vector<1x1x1x8xf32> to vector<1x8xf32>
    %12 = vector.broadcast %11 : vector<1x8xf32> to vector<16x8xf32>
    %13 = arith.addf %9, %12 : vector<16x8xf32>
    %c0_13 = arith.constant 0 : index
    %c4 = arith.constant 4 : index
    %c0_14 = arith.constant 0 : index
    %c0_15 = arith.constant 0 : index
    %14 = vector.load %arg4[%c0_13, %c4, %c0_14, %c0_15] : memref<1x12x32x8xbf16, #tpu.memory_space<vmem>>, vector<1x1x32x8xbf16>
    %15 = vector.shape_cast %14 : vector<1x1x32x8xbf16> to vector<32x8xbf16>
    %cst_16 = arith.constant dense<0.000000e+00> : vector<16x8xf32>
    %16 = tpu.matmul %4, %15, %cst_16 {dimension_numbers = #tpu.dot_dimension_numbers<[1], [0], [0], [1], [0, 0, 1, 1], [], []>} : vector<16x32xbf16>, vector<32x8xbf16>, vector<16x8xf32> -> vector<16x8xf32>
    %c0_17 = arith.constant 0 : index
    %c4_18 = arith.constant 4 : index
    %c0_19 = arith.constant 0 : index
    %c0_20 = arith.constant 0 : index
    %17 = vector.load %arg5[%c0_17, %c4_18, %c0_19, %c0_20] : memref<1x12x1x8xf32, #tpu.memory_space<vmem>>, vector<1x1x1x8xf32>
    %18 = vector.shape_cast %17 : vector<1x1x1x8xf32> to vector<1x8xf32>
    %19 = vector.broadcast %18 : vector<1x8xf32> to vector<16x8xf32>
    %20 = arith.addf %16, %19 : vector<16x8xf32>
    %c0_21 = arith.constant 0 : index
    %c8 = arith.constant 8 : index
    %c0_22 = arith.constant 0 : index
    %c0_23 = arith.constant 0 : index
    %21 = vector.load %arg4[%c0_21, %c8, %c0_22, %c0_23] : memref<1x12x32x8xbf16, #tpu.memory_space<vmem>>, vector<1x1x32x8xbf16>
    %22 = vector.shape_cast %21 : vector<1x1x32x8xbf16> to vector<32x8xbf16>
    %cst_24 = arith.constant dense<0.000000e+00> : vector<16x8xf32>
    %23 = tpu.matmul %4, %22, %cst_24 {dimension_numbers = #tpu.dot_dimension_numbers<[1], [0], [0], [1], [0, 0, 1, 1], [], []>} : vector<16x32xbf16>, vector<32x8xbf16>, vector<16x8xf32> -> vector<16x8xf32>
    %c0_25 = arith.constant 0 : index
    %c8_26 = arith.constant 8 : index
    %c0_27 = arith.constant 0 : index
    %c0_28 = arith.constant 0 : index
    %24 = vector.load %arg5[%c0_25, %c8_26, %c0_27, %c0_28] : memref<1x12x1x8xf32, #tpu.memory_space<vmem>>, vector<1x1x1x8xf32>
    %25 = vector.shape_cast %24 : vector<1x1x1x8xf32> to vector<1x8xf32>
    %26 = vector.broadcast %25 : vector<1x8xf32> to vector<16x8xf32>
    %27 = arith.addf %23, %26 : vector<16x8xf32>
    %28 = vector.shape_cast %13 : vector<16x8xf32> to vector<2x8x8xf32>
    %29 = arith.truncf %28 : vector<2x8x8xf32> to vector<2x8x8xbf16>
    %30 = vector.shape_cast %20 : vector<16x8xf32> to vector<2x8x8xf32>
    %31 = arith.truncf %30 : vector<2x8x8xf32> to vector<2x8x8xbf16>
    %32 = vector.shape_cast %27 : vector<16x8xf32> to vector<2x8x8xf32>
    %33 = arith.truncf %32 : vector<2x8x8xf32> to vector<2x8x8xbf16>
    "tpu.trace_start"() <{level = 10 : i32, message = "bld,bmd->blm"}> : () -> ()
    %cst_29 = arith.constant dense<0.000000e+00> : vector<2x8x8xf32>
    %34 = tpu.matmul %29, %31, %cst_29 {dimension_numbers = #tpu.dot_dimension_numbers<[2], [2], [1], [1], [0, 0, 0, 1, 1, 1], [0], [0]>} : vector<2x8x8xbf16>, vector<2x8x8xbf16>, vector<2x8x8xf32> -> vector<2x8x8xf32>
    "tpu.trace_stop"() : () -> ()
    %cst_30 = arith.constant dense<0xFF800000> : vector<2x8xf32>
    %35 = vector.multi_reduction <maximumf>, %34, %cst_30 [2] : vector<2x8x8xf32> to vector<2x8xf32>
    %36 = vector.shape_cast %35 : vector<2x8xf32> to vector<2x8x1xf32>
    %37 = vector.broadcast %36 : vector<2x8x1xf32> to vector<2x8x8xf32>
    %38 = arith.subf %34, %37 : vector<2x8x8xf32>
    %39 = math.exp %38 : vector<2x8x8xf32>
    %cst_31 = arith.constant dense<0.000000e+00> : vector<2x8xf32>
    %40 = vector.multi_reduction <add>, %39, %cst_31 [2] : vector<2x8x8xf32> to vector<2x8xf32>
    %41 = vector.shape_cast %40 : vector<2x8xf32> to vector<2x8x1xf32>
    %42 = tpu.reciprocal %41 {approx = true} : vector<2x8x1xf32> -> vector<2x8x1xf32>
    %43 = vector.broadcast %42 : vector<2x8x1xf32> to vector<2x8x8xf32>
    %44 = arith.mulf %39, %43 : vector<2x8x8xf32>
    %45 = arith.truncf %44 : vector<2x8x8xf32> to vector<2x8x8xbf16>
    "tpu.trace_start"() <{level = 10 : i32, message = "blm,bmd->bld"}> : () -> ()
    %cst_32 = arith.constant dense<0.000000e+00> : vector<2x8x8xf32>
    %46 = tpu.matmul %45, %33, %cst_32 {dimension_numbers = #tpu.dot_dimension_numbers<[2], [1], [1], [2], [0, 0, 0, 1, 1, 2], [0], [0]>} : vector<2x8x8xbf16>, vector<2x8x8xbf16>, vector<2x8x8xf32> -> vector<2x8x8xf32>
    "tpu.trace_stop"() : () -> ()
    %47 = vector.shape_cast %46 : vector<2x8x8xf32> to vector<16x8xf32>
    %48 = arith.truncf %47 : vector<16x8xf32> to vector<16x8xbf16>
    %c0_33 = arith.constant 0 : index
    %c0_34 = arith.constant 0 : index
    %c0_35 = arith.constant 0 : index
    %c0_36 = arith.constant 0 : index
    %49 = vector.load %arg6[%c0_33, %c0_34, %c0_35, %c0_36] : memref<1x4x8x32xbf16, #tpu.memory_space<vmem>>, vector<1x1x8x32xbf16>
    %50 = vector.shape_cast %49 : vector<1x1x8x32xbf16> to vector<8x32xbf16>
    %cst_37 = arith.constant dense<0.000000e+00> : vector<16x32xf32>
    %51 = tpu.matmul %48, %50, %cst_37 {dimension_numbers = #tpu.dot_dimension_numbers<[1], [0], [0], [1], [0, 0, 1, 1], [], []>} : vector<16x8xbf16>, vector<8x32xbf16>, vector<16x32xf32> -> vector<16x32xf32>
    %52 = vector.broadcast %6 : vector<1x32xf32> to vector<16x32xf32>
    %53 = arith.addf %52, %51 : vector<16x32xf32>
    %c0_38 = arith.constant 0 : index
    %c1 = arith.constant 1 : index
    %c0_39 = arith.constant 0 : index
    %c0_40 = arith.constant 0 : index
    %54 = vector.load %arg4[%c0_38, %c1, %c0_39, %c0_40] : memref<1x12x32x8xbf16, #tpu.memory_space<vmem>>, vector<1x1x32x8xbf16>
    %55 = vector.shape_cast %54 : vector<1x1x32x8xbf16> to vector<32x8xbf16>
    %cst_41 = arith.constant dense<0.000000e+00> : vector<16x8xf32>
    %56 = tpu.matmul %4, %55, %cst_41 {dimension_numbers = #tpu.dot_dimension_numbers<[1], [0], [0], [1], [0, 0, 1, 1], [], []>} : vector<16x32xbf16>, vector<32x8xbf16>, vector<16x8xf32> -> vector<16x8xf32>
    %c0_42 = arith.constant 0 : index
    %c1_43 = arith.constant 1 : index
    %c0_44 = arith.constant 0 : index
    %c0_45 = arith.constant 0 : index
    %57 = vector.load %arg5[%c0_42, %c1_43, %c0_44, %c0_45] : memref<1x12x1x8xf32, #tpu.memory_space<vmem>>, vector<1x1x1x8xf32>
    %58 = vector.shape_cast %57 : vector<1x1x1x8xf32> to vector<1x8xf32>
    %59 = vector.broadcast %58 : vector<1x8xf32> to vector<16x8xf32>
    %60 = arith.addf %56, %59 : vector<16x8xf32>
    %c0_46 = arith.constant 0 : index
    %c5 = arith.constant 5 : index
    %c0_47 = arith.constant 0 : index
    %c0_48 = arith.constant 0 : index
    %61 = vector.load %arg4[%c0_46, %c5, %c0_47, %c0_48] : memref<1x12x32x8xbf16, #tpu.memory_space<vmem>>, vector<1x1x32x8xbf16>
    %62 = vector.shape_cast %61 : vector<1x1x32x8xbf16> to vector<32x8xbf16>
    %cst_49 = arith.constant dense<0.000000e+00> : vector<16x8xf32>
    %63 = tpu.matmul %4, %62, %cst_49 {dimension_numbers = #tpu.dot_dimension_numbers<[1], [0], [0], [1], [0, 0, 1, 1], [], []>} : vector<16x32xbf16>, vector<32x8xbf16>, vector<16x8xf32> -> vector<16x8xf32>
    %c0_50 = arith.constant 0 : index
    %c5_51 = arith.constant 5 : index
    %c0_52 = arith.constant 0 : index
    %c0_53 = arith.constant 0 : index
    %64 = vector.load %arg5[%c0_50, %c5_51, %c0_52, %c0_53] : memref<1x12x1x8xf32, #tpu.memory_space<vmem>>, vector<1x1x1x8xf32>
    %65 = vector.shape_cast %64 : vector<1x1x1x8xf32> to vector<1x8xf32>
    %66 = vector.broadcast %65 : vector<1x8xf32> to vector<16x8xf32>
    %67 = arith.addf %63, %66 : vector<16x8xf32>
    %c0_54 = arith.constant 0 : index
    %c9 = arith.constant 9 : index
    %c0_55 = arith.constant 0 : index
    %c0_56 = arith.constant 0 : index
    %68 = vector.load %arg4[%c0_54, %c9, %c0_55, %c0_56] : memref<1x12x32x8xbf16, #tpu.memory_space<vmem>>, vector<1x1x32x8xbf16>
    %69 = vector.shape_cast %68 : vector<1x1x32x8xbf16> to vector<32x8xbf16>
    %cst_57 = arith.constant dense<0.000000e+00> : vector<16x8xf32>
    %70 = tpu.matmul %4, %69, %cst_57 {dimension_numbers = #tpu.dot_dimension_numbers<[1], [0], [0], [1], [0, 0, 1, 1], [], []>} : vector<16x32xbf16>, vector<32x8xbf16>, vector<16x8xf32> -> vector<16x8xf32>
    %c0_58 = arith.constant 0 : index
    %c9_59 = arith.constant 9 : index
    %c0_60 = arith.constant 0 : index
    %c0_61 = arith.constant 0 : index
    %71 = vector.load %arg5[%c0_58, %c9_59, %c0_60, %c0_61] : memref<1x12x1x8xf32, #tpu.memory_space<vmem>>, vector<1x1x1x8xf32>
    %72 = vector.shape_cast %71 : vector<1x1x1x8xf32> to vector<1x8xf32>
    %73 = vector.broadcast %72 : vector<1x8xf32> to vector<16x8xf32>
    %74 = arith.addf %70, %73 : vector<16x8xf32>
    %75 = vector.shape_cast %60 : vector<16x8xf32> to vector<2x8x8xf32>
    %76 = arith.truncf %75 : vector<2x8x8xf32> to vector<2x8x8xbf16>
    %77 = vector.shape_cast %67 : vector<16x8xf32> to vector<2x8x8xf32>
    %78 = arith.truncf %77 : vector<2x8x8xf32> to vector<2x8x8xbf16>
    %79 = vector.shape_cast %74 : vector<16x8xf32> to vector<2x8x8xf32>
    %80 = arith.truncf %79 : vector<2x8x8xf32> to vector<2x8x8xbf16>
    "tpu.trace_start"() <{level = 10 : i32, message = "bld,bmd->blm"}> : () -> ()
    %cst_62 = arith.constant dense<0.000000e+00> : vector<2x8x8xf32>
    %81 = tpu.matmul %76, %78, %cst_62 {dimension_numbers = #tpu.dot_dimension_numbers<[2], [2], [1], [1], [0, 0, 0, 1, 1, 1], [0], [0]>} : vector<2x8x8xbf16>, vector<2x8x8xbf16>, vector<2x8x8xf32> -> vector<2x8x8xf32>
    "tpu.trace_stop"() : () -> ()
    %cst_63 = arith.constant dense<0xFF800000> : vector<2x8xf32>
    %82 = vector.multi_reduction <maximumf>, %81, %cst_63 [2] : vector<2x8x8xf32> to vector<2x8xf32>
    %83 = vector.shape_cast %82 : vector<2x8xf32> to vector<2x8x1xf32>
    %84 = vector.broadcast %83 : vector<2x8x1xf32> to vector<2x8x8xf32>
    %85 = arith.subf %81, %84 : vector<2x8x8xf32>
    %86 = math.exp %85 : vector<2x8x8xf32>
    %cst_64 = arith.constant dense<0.000000e+00> : vector<2x8xf32>
    %87 = vector.multi_reduction <add>, %86, %cst_64 [2] : vector<2x8x8xf32> to vector<2x8xf32>
    %88 = vector.shape_cast %87 : vector<2x8xf32> to vector<2x8x1xf32>
    %89 = tpu.reciprocal %88 {approx = true} : vector<2x8x1xf32> -> vector<2x8x1xf32>
    %90 = vector.broadcast %89 : vector<2x8x1xf32> to vector<2x8x8xf32>
    %91 = arith.mulf %86, %90 : vector<2x8x8xf32>
    %92 = arith.truncf %91 : vector<2x8x8xf32> to vector<2x8x8xbf16>
    "tpu.trace_start"() <{level = 10 : i32, message = "blm,bmd->bld"}> : () -> ()
    %cst_65 = arith.constant dense<0.000000e+00> : vector<2x8x8xf32>
    %93 = tpu.matmul %92, %80, %cst_65 {dimension_numbers = #tpu.dot_dimension_numbers<[2], [1], [1], [2], [0, 0, 0, 1, 1, 2], [0], [0]>} : vector<2x8x8xbf16>, vector<2x8x8xbf16>, vector<2x8x8xf32> -> vector<2x8x8xf32>
    "tpu.trace_stop"() : () -> ()
    %94 = vector.shape_cast %93 : vector<2x8x8xf32> to vector<16x8xf32>
    %95 = arith.truncf %94 : vector<16x8xf32> to vector<16x8xbf16>
    %c0_66 = arith.constant 0 : index
    %c1_67 = arith.constant 1 : index
    %c0_68 = arith.constant 0 : index
    %c0_69 = arith.constant 0 : index
    %96 = vector.load %arg6[%c0_66, %c1_67, %c0_68, %c0_69] : memref<1x4x8x32xbf16, #tpu.memory_space<vmem>>, vector<1x1x8x32xbf16>
    %97 = vector.shape_cast %96 : vector<1x1x8x32xbf16> to vector<8x32xbf16>
    %cst_70 = arith.constant dense<0.000000e+00> : vector<16x32xf32>
    %98 = tpu.matmul %95, %97, %cst_70 {dimension_numbers = #tpu.dot_dimension_numbers<[1], [0], [0], [1], [0, 0, 1, 1], [], []>} : vector<16x8xbf16>, vector<8x32xbf16>, vector<16x32xf32> -> vector<16x32xf32>
    %99 = arith.addf %53, %98 : vector<16x32xf32>
    %c0_71 = arith.constant 0 : index
    %c2 = arith.constant 2 : index
    %c0_72 = arith.constant 0 : index
    %c0_73 = arith.constant 0 : index
    %100 = vector.load %arg4[%c0_71, %c2, %c0_72, %c0_73] : memref<1x12x32x8xbf16, #tpu.memory_space<vmem>>, vector<1x1x32x8xbf16>
    %101 = vector.shape_cast %100 : vector<1x1x32x8xbf16> to vector<32x8xbf16>
    %cst_74 = arith.constant dense<0.000000e+00> : vector<16x8xf32>
    %102 = tpu.matmul %4, %101, %cst_74 {dimension_numbers = #tpu.dot_dimension_numbers<[1], [0], [0], [1], [0, 0, 1, 1], [], []>} : vector<16x32xbf16>, vector<32x8xbf16>, vector<16x8xf32> -> vector<16x8xf32>
    %c0_75 = arith.constant 0 : index
    %c2_76 = arith.constant 2 : index
    %c0_77 = arith.constant 0 : index
    %c0_78 = arith.constant 0 : index
    %103 = vector.load %arg5[%c0_75, %c2_76, %c0_77, %c0_78] : memref<1x12x1x8xf32, #tpu.memory_space<vmem>>, vector<1x1x1x8xf32>
    %104 = vector.shape_cast %103 : vector<1x1x1x8xf32> to vector<1x8xf32>
    %105 = vector.broadcast %104 : vector<1x8xf32> to vector<16x8xf32>
    %106 = arith.addf %102, %105 : vector<16x8xf32>
    %c0_79 = arith.constant 0 : index
    %c6 = arith.constant 6 : index
    %c0_80 = arith.constant 0 : index
    %c0_81 = arith.constant 0 : index
    %107 = vector.load %arg4[%c0_79, %c6, %c0_80, %c0_81] : memref<1x12x32x8xbf16, #tpu.memory_space<vmem>>, vector<1x1x32x8xbf16>
    %108 = vector.shape_cast %107 : vector<1x1x32x8xbf16> to vector<32x8xbf16>
    %cst_82 = arith.constant dense<0.000000e+00> : vector<16x8xf32>
    %109 = tpu.matmul %4, %108, %cst_82 {dimension_numbers = #tpu.dot_dimension_numbers<[1], [0], [0], [1], [0, 0, 1, 1], [], []>} : vector<16x32xbf16>, vector<32x8xbf16>, vector<16x8xf32> -> vector<16x8xf32>
    %c0_83 = arith.constant 0 : index
    %c6_84 = arith.constant 6 : index
    %c0_85 = arith.constant 0 : index
    %c0_86 = arith.constant 0 : index
    %110 = vector.load %arg5[%c0_83, %c6_84, %c0_85, %c0_86] : memref<1x12x1x8xf32, #tpu.memory_space<vmem>>, vector<1x1x1x8xf32>
    %111 = vector.shape_cast %110 : vector<1x1x1x8xf32> to vector<1x8xf32>
    %112 = vector.broadcast %111 : vector<1x8xf32> to vector<16x8xf32>
    %113 = arith.addf %109, %112 : vector<16x8xf32>
    %c0_87 = arith.constant 0 : index
    %c10 = arith.constant 10 : index
    %c0_88 = arith.constant 0 : index
    %c0_89 = arith.constant 0 : index
    %114 = vector.load %arg4[%c0_87, %c10, %c0_88, %c0_89] : memref<1x12x32x8xbf16, #tpu.memory_space<vmem>>, vector<1x1x32x8xbf16>
    %115 = vector.shape_cast %114 : vector<1x1x32x8xbf16> to vector<32x8xbf16>
    %cst_90 = arith.constant dense<0.000000e+00> : vector<16x8xf32>
    %116 = tpu.matmul %4, %115, %cst_90 {dimension_numbers = #tpu.dot_dimension_numbers<[1], [0], [0], [1], [0, 0, 1, 1], [], []>} : vector<16x32xbf16>, vector<32x8xbf16>, vector<16x8xf32> -> vector<16x8xf32>
    %c0_91 = arith.constant 0 : index
    %c10_92 = arith.constant 10 : index
    %c0_93 = arith.constant 0 : index
    %c0_94 = arith.constant 0 : index
    %117 = vector.load %arg5[%c0_91, %c10_92, %c0_93, %c0_94] : memref<1x12x1x8xf32, #tpu.memory_space<vmem>>, vector<1x1x1x8xf32>
    %118 = vector.shape_cast %117 : vector<1x1x1x8xf32> to vector<1x8xf32>
    %119 = vector.broadcast %118 : vector<1x8xf32> to vector<16x8xf32>
    %120 = arith.addf %116, %119 : vector<16x8xf32>
    %121 = vector.shape_cast %106 : vector<16x8xf32> to vector<2x8x8xf32>
    %122 = arith.truncf %121 : vector<2x8x8xf32> to vector<2x8x8xbf16>
    %123 = vector.shape_cast %113 : vector<16x8xf32> to vector<2x8x8xf32>
    %124 = arith.truncf %123 : vector<2x8x8xf32> to vector<2x8x8xbf16>
    %125 = vector.shape_cast %120 : vector<16x8xf32> to vector<2x8x8xf32>
    %126 = arith.truncf %125 : vector<2x8x8xf32> to vector<2x8x8xbf16>
    "tpu.trace_start"() <{level = 10 : i32, message = "bld,bmd->blm"}> : () -> ()
    %cst_95 = arith.constant dense<0.000000e+00> : vector<2x8x8xf32>
    %127 = tpu.matmul %122, %124, %cst_95 {dimension_numbers = #tpu.dot_dimension_numbers<[2], [2], [1], [1], [0, 0, 0, 1, 1, 1], [0], [0]>} : vector<2x8x8xbf16>, vector<2x8x8xbf16>, vector<2x8x8xf32> -> vector<2x8x8xf32>
    "tpu.trace_stop"() : () -> ()
    %cst_96 = arith.constant dense<0xFF800000> : vector<2x8xf32>
    %128 = vector.multi_reduction <maximumf>, %127, %cst_96 [2] : vector<2x8x8xf32> to vector<2x8xf32>
    %129 = vector.shape_cast %128 : vector<2x8xf32> to vector<2x8x1xf32>
    %130 = vector.broadcast %129 : vector<2x8x1xf32> to vector<2x8x8xf32>
    %131 = arith.subf %127, %130 : vector<2x8x8xf32>
    %132 = math.exp %131 : vector<2x8x8xf32>
    %cst_97 = arith.constant dense<0.000000e+00> : vector<2x8xf32>
    %133 = vector.multi_reduction <add>, %132, %cst_97 [2] : vector<2x8x8xf32> to vector<2x8xf32>
    %134 = vector.shape_cast %133 : vector<2x8xf32> to vector<2x8x1xf32>
    %135 = tpu.reciprocal %134 {approx = true} : vector<2x8x1xf32> -> vector<2x8x1xf32>
    %136 = vector.broadcast %135 : vector<2x8x1xf32> to vector<2x8x8xf32>
    %137 = arith.mulf %132, %136 : vector<2x8x8xf32>
    %138 = arith.truncf %137 : vector<2x8x8xf32> to vector<2x8x8xbf16>
    "tpu.trace_start"() <{level = 10 : i32, message = "blm,bmd->bld"}> : () -> ()
    %cst_98 = arith.constant dense<0.000000e+00> : vector<2x8x8xf32>
    %139 = tpu.matmul %138, %126, %cst_98 {dimension_numbers = #tpu.dot_dimension_numbers<[2], [1], [1], [2], [0, 0, 0, 1, 1, 2], [0], [0]>} : vector<2x8x8xbf16>, vector<2x8x8xbf16>, vector<2x8x8xf32> -> vector<2x8x8xf32>
    "tpu.trace_stop"() : () -> ()
    %140 = vector.shape_cast %139 : vector<2x8x8xf32> to vector<16x8xf32>
    %141 = arith.truncf %140 : vector<16x8xf32> to vector<16x8xbf16>
    %c0_99 = arith.constant 0 : index
    %c2_100 = arith.constant 2 : index
    %c0_101 = arith.constant 0 : index
    %c0_102 = arith.constant 0 : index
    %142 = vector.load %arg6[%c0_99, %c2_100, %c0_101, %c0_102] : memref<1x4x8x32xbf16, #tpu.memory_space<vmem>>, vector<1x1x8x32xbf16>
    %143 = vector.shape_cast %142 : vector<1x1x8x32xbf16> to vector<8x32xbf16>
    %cst_103 = arith.constant dense<0.000000e+00> : vector<16x32xf32>
    %144 = tpu.matmul %141, %143, %cst_103 {dimension_numbers = #tpu.dot_dimension_numbers<[1], [0], [0], [1], [0, 0, 1, 1], [], []>} : vector<16x8xbf16>, vector<8x32xbf16>, vector<16x32xf32> -> vector<16x32xf32>
    %145 = arith.addf %99, %144 : vector<16x32xf32>
    %c0_104 = arith.constant 0 : index
    %c3 = arith.constant 3 : index
    %c0_105 = arith.constant 0 : index
    %c0_106 = arith.constant 0 : index
    %146 = vector.load %arg4[%c0_104, %c3, %c0_105, %c0_106] : memref<1x12x32x8xbf16, #tpu.memory_space<vmem>>, vector<1x1x32x8xbf16>
    %147 = vector.shape_cast %146 : vector<1x1x32x8xbf16> to vector<32x8xbf16>
    %cst_107 = arith.constant dense<0.000000e+00> : vector<16x8xf32>
    %148 = tpu.matmul %4, %147, %cst_107 {dimension_numbers = #tpu.dot_dimension_numbers<[1], [0], [0], [1], [0, 0, 1, 1], [], []>} : vector<16x32xbf16>, vector<32x8xbf16>, vector<16x8xf32> -> vector<16x8xf32>
    %c0_108 = arith.constant 0 : index
    %c3_109 = arith.constant 3 : index
    %c0_110 = arith.constant 0 : index
    %c0_111 = arith.constant 0 : index
    %149 = vector.load %arg5[%c0_108, %c3_109, %c0_110, %c0_111] : memref<1x12x1x8xf32, #tpu.memory_space<vmem>>, vector<1x1x1x8xf32>
    %150 = vector.shape_cast %149 : vector<1x1x1x8xf32> to vector<1x8xf32>
    %151 = vector.broadcast %150 : vector<1x8xf32> to vector<16x8xf32>
    %152 = arith.addf %148, %151 : vector<16x8xf32>
    %c0_112 = arith.constant 0 : index
    %c7 = arith.constant 7 : index
    %c0_113 = arith.constant 0 : index
    %c0_114 = arith.constant 0 : index
    %153 = vector.load %arg4[%c0_112, %c7, %c0_113, %c0_114] : memref<1x12x32x8xbf16, #tpu.memory_space<vmem>>, vector<1x1x32x8xbf16>
    %154 = vector.shape_cast %153 : vector<1x1x32x8xbf16> to vector<32x8xbf16>
    %cst_115 = arith.constant dense<0.000000e+00> : vector<16x8xf32>
    %155 = tpu.matmul %4, %154, %cst_115 {dimension_numbers = #tpu.dot_dimension_numbers<[1], [0], [0], [1], [0, 0, 1, 1], [], []>} : vector<16x32xbf16>, vector<32x8xbf16>, vector<16x8xf32> -> vector<16x8xf32>
    %c0_116 = arith.constant 0 : index
    %c7_117 = arith.constant 7 : index
    %c0_118 = arith.constant 0 : index
    %c0_119 = arith.constant 0 : index
    %156 = vector.load %arg5[%c0_116, %c7_117, %c0_118, %c0_119] : memref<1x12x1x8xf32, #tpu.memory_space<vmem>>, vector<1x1x1x8xf32>
    %157 = vector.shape_cast %156 : vector<1x1x1x8xf32> to vector<1x8xf32>
    %158 = vector.broadcast %157 : vector<1x8xf32> to vector<16x8xf32>
    %159 = arith.addf %155, %158 : vector<16x8xf32>
    %c0_120 = arith.constant 0 : index
    %c11 = arith.constant 11 : index
    %c0_121 = arith.constant 0 : index
    %c0_122 = arith.constant 0 : index
    %160 = vector.load %arg4[%c0_120, %c11, %c0_121, %c0_122] : memref<1x12x32x8xbf16, #tpu.memory_space<vmem>>, vector<1x1x32x8xbf16>
    %161 = vector.shape_cast %160 : vector<1x1x32x8xbf16> to vector<32x8xbf16>
    %cst_123 = arith.constant dense<0.000000e+00> : vector<16x8xf32>
    %162 = tpu.matmul %4, %161, %cst_123 {dimension_numbers = #tpu.dot_dimension_numbers<[1], [0], [0], [1], [0, 0, 1, 1], [], []>} : vector<16x32xbf16>, vector<32x8xbf16>, vector<16x8xf32> -> vector<16x8xf32>
    %c0_124 = arith.constant 0 : index
    %c11_125 = arith.constant 11 : index
    %c0_126 = arith.constant 0 : index
    %c0_127 = arith.constant 0 : index
    %163 = vector.load %arg5[%c0_124, %c11_125, %c0_126, %c0_127] : memref<1x12x1x8xf32, #tpu.memory_space<vmem>>, vector<1x1x1x8xf32>
    %164 = vector.shape_cast %163 : vector<1x1x1x8xf32> to vector<1x8xf32>
    %165 = vector.broadcast %164 : vector<1x8xf32> to vector<16x8xf32>
    %166 = arith.addf %162, %165 : vector<16x8xf32>
    %167 = vector.shape_cast %152 : vector<16x8xf32> to vector<2x8x8xf32>
    %168 = arith.truncf %167 : vector<2x8x8xf32> to vector<2x8x8xbf16>
    %169 = vector.shape_cast %159 : vector<16x8xf32> to vector<2x8x8xf32>
    %170 = arith.truncf %169 : vector<2x8x8xf32> to vector<2x8x8xbf16>
    %171 = vector.shape_cast %166 : vector<16x8xf32> to vector<2x8x8xf32>
    %172 = arith.truncf %171 : vector<2x8x8xf32> to vector<2x8x8xbf16>
    "tpu.trace_start"() <{level = 10 : i32, message = "bld,bmd->blm"}> : () -> ()
    %cst_128 = arith.constant dense<0.000000e+00> : vector<2x8x8xf32>
    %173 = tpu.matmul %168, %170, %cst_128 {dimension_numbers = #tpu.dot_dimension_numbers<[2], [2], [1], [1], [0, 0, 0, 1, 1, 1], [0], [0]>} : vector<2x8x8xbf16>, vector<2x8x8xbf16>, vector<2x8x8xf32> -> vector<2x8x8xf32>
    "tpu.trace_stop"() : () -> ()
    %cst_129 = arith.constant dense<0xFF800000> : vector<2x8xf32>
    %174 = vector.multi_reduction <maximumf>, %173, %cst_129 [2] : vector<2x8x8xf32> to vector<2x8xf32>
    %175 = vector.shape_cast %174 : vector<2x8xf32> to vector<2x8x1xf32>
    %176 = vector.broadcast %175 : vector<2x8x1xf32> to vector<2x8x8xf32>
    %177 = arith.subf %173, %176 : vector<2x8x8xf32>
    %178 = math.exp %177 : vector<2x8x8xf32>
    %cst_130 = arith.constant dense<0.000000e+00> : vector<2x8xf32>
    %179 = vector.multi_reduction <add>, %178, %cst_130 [2] : vector<2x8x8xf32> to vector<2x8xf32>
    %180 = vector.shape_cast %179 : vector<2x8xf32> to vector<2x8x1xf32>
    %181 = tpu.reciprocal %180 {approx = true} : vector<2x8x1xf32> -> vector<2x8x1xf32>
    %182 = vector.broadcast %181 : vector<2x8x1xf32> to vector<2x8x8xf32>
    %183 = arith.mulf %178, %182 : vector<2x8x8xf32>
    %184 = arith.truncf %183 : vector<2x8x8xf32> to vector<2x8x8xbf16>
    "tpu.trace_start"() <{level = 10 : i32, message = "blm,bmd->bld"}> : () -> ()
    %cst_131 = arith.constant dense<0.000000e+00> : vector<2x8x8xf32>
    %185 = tpu.matmul %184, %172, %cst_131 {dimension_numbers = #tpu.dot_dimension_numbers<[2], [1], [1], [2], [0, 0, 0, 1, 1, 2], [0], [0]>} : vector<2x8x8xbf16>, vector<2x8x8xbf16>, vector<2x8x8xf32> -> vector<2x8x8xf32>
    "tpu.trace_stop"() : () -> ()
    %186 = vector.shape_cast %185 : vector<2x8x8xf32> to vector<16x8xf32>
    %187 = arith.truncf %186 : vector<16x8xf32> to vector<16x8xbf16>
    %c0_132 = arith.constant 0 : index
    %c3_133 = arith.constant 3 : index
    %c0_134 = arith.constant 0 : index
    %c0_135 = arith.constant 0 : index
    %188 = vector.load %arg6[%c0_132, %c3_133, %c0_134, %c0_135] : memref<1x4x8x32xbf16, #tpu.memory_space<vmem>>, vector<1x1x8x32xbf16>
    %189 = vector.shape_cast %188 : vector<1x1x8x32xbf16> to vector<8x32xbf16>
    %cst_136 = arith.constant dense<0.000000e+00> : vector<16x32xf32>
    %190 = tpu.matmul %187, %189, %cst_136 {dimension_numbers = #tpu.dot_dimension_numbers<[1], [0], [0], [1], [0, 0, 1, 1], [], []>} : vector<16x8xbf16>, vector<8x32xbf16>, vector<16x32xf32> -> vector<16x32xf32>
    %191 = arith.addf %145, %190 : vector<16x32xf32>
    %192 = arith.addf %191, %3 : vector<16x32xf32>
    %c0_137 = arith.constant 0 : index
    %c0_138 = arith.constant 0 : index
    %c0_139 = arith.constant 0 : index
    %193 = vector.load %arg8[%c0_137, %c0_138, %c0_139] : memref<1x1x32xf32, #tpu.memory_space<vmem>>, vector<1x1x32xf32>
    %194 = vector.shape_cast %193 : vector<1x1x32xf32> to vector<1x32xf32>
    %c0_140 = arith.constant 0 : index
    %c0_141 = arith.constant 0 : index
    %c0_142 = arith.constant 0 : index
    %195 = vector.load %arg9[%c0_140, %c0_141, %c0_142] : memref<1x1x32xf32, #tpu.memory_space<vmem>>, vector<1x1x32xf32>
    %196 = vector.shape_cast %195 : vector<1x1x32xf32> to vector<1x32xf32>
    %cst_143 = arith.constant dense<0.000000e+00> : vector<16xf32>
    %197 = vector.multi_reduction <add>, %192, %cst_143 [1] : vector<16x32xf32> to vector<16xf32>
    %198 = vector.shape_cast %197 : vector<16xf32> to vector<16x1xf32>
    %cst_144 = arith.constant 3.200000e+01 : f32
    %199 = vector.broadcast %cst_144 : f32 to vector<16x1xf32>
    %200 = arith.divf %198, %199 : vector<16x1xf32>
    %201 = vector.broadcast %200 : vector<16x1xf32> to vector<16x32xf32>
    %202 = arith.subf %192, %201 : vector<16x32xf32>
    %203 = arith.mulf %202, %202 : vector<16x32xf32>
    %cst_145 = arith.constant dense<0.000000e+00> : vector<16xf32>
    %204 = vector.multi_reduction <add>, %203, %cst_145 [1] : vector<16x32xf32> to vector<16xf32>
    %205 = vector.shape_cast %204 : vector<16xf32> to vector<16x1xf32>
    %cst_146 = arith.constant 3.200000e+01 : f32
    %206 = vector.broadcast %cst_146 : f32 to vector<16x1xf32>
    %207 = arith.divf %205, %206 : vector<16x1xf32>
    %cst_147 = arith.constant 9.99999974E-6 : f32
    %208 = vector.broadcast %cst_147 : f32 to vector<16x1xf32>
    %209 = arith.addf %207, %208 : vector<16x1xf32>
    %210 = math.rsqrt %209 : vector<16x1xf32>
    %211 = vector.broadcast %210 : vector<16x1xf32> to vector<16x32xf32>
    %212 = arith.mulf %202, %211 : vector<16x32xf32>
    %213 = vector.broadcast %194 : vector<1x32xf32> to vector<16x32xf32>
    %214 = arith.mulf %212, %213 : vector<16x32xf32>
    %215 = vector.broadcast %196 : vector<1x32xf32> to vector<16x32xf32>
    %216 = arith.addf %214, %215 : vector<16x32xf32>
    %217 = arith.truncf %216 : vector<16x32xf32> to vector<16x32xbf16>
    %c0_148 = arith.constant 0 : index
    %c0_149 = arith.constant 0 : index
    %c0_150 = arith.constant 0 : index
    %218 = vector.load %arg10[%c0_148, %c0_149, %c0_150] : memref<1x32x32xbf16, #tpu.memory_space<vmem>>, vector<1x32x32xbf16>
    %219 = vector.shape_cast %218 : vector<1x32x32xbf16> to vector<32x32xbf16>
    %cst_151 = arith.constant dense<0.000000e+00> : vector<16x32xf32>
    %220 = tpu.matmul %217, %219, %cst_151 {dimension_numbers = #tpu.dot_dimension_numbers<[1], [0], [0], [1], [0, 0, 1, 1], [], []>} : vector<16x32xbf16>, vector<32x32xbf16>, vector<16x32xf32> -> vector<16x32xf32>
    %c0_152 = arith.constant 0 : index
    %c0_153 = arith.constant 0 : index
    %c0_154 = arith.constant 0 : index
    %221 = vector.load %arg11[%c0_152, %c0_153, %c0_154] : memref<1x1x32xf32, #tpu.memory_space<vmem>>, vector<1x1x32xf32>
    %222 = vector.shape_cast %221 : vector<1x1x32xf32> to vector<1x32xf32>
    %223 = vector.broadcast %222 : vector<1x32xf32> to vector<16x32xf32>
    %224 = arith.addf %220, %223 : vector<16x32xf32>
    %cst_155 = arith.constant 0.000000e+00 : f32
    %225 = vector.broadcast %cst_155 : f32 to vector<16x32xf32>
    %226 = arith.maximumf %224, %225 : vector<16x32xf32>
    %227 = arith.truncf %226 : vector<16x32xf32> to vector<16x32xbf16>
    %c0_156 = arith.constant 0 : index
    %c0_157 = arith.constant 0 : index
    %c0_158 = arith.constant 0 : index
    %228 = vector.load %arg12[%c0_156, %c0_157, %c0_158] : memref<1x32x32xbf16, #tpu.memory_space<vmem>>, vector<1x32x32xbf16>
    %229 = vector.shape_cast %228 : vector<1x32x32xbf16> to vector<32x32xbf16>
    %cst_159 = arith.constant dense<0.000000e+00> : vector<16x32xf32>
    %230 = tpu.matmul %227, %229, %cst_159 {dimension_numbers = #tpu.dot_dimension_numbers<[1], [0], [0], [1], [0, 0, 1, 1], [], []>} : vector<16x32xbf16>, vector<32x32xbf16>, vector<16x32xf32> -> vector<16x32xf32>
    %c0_160 = arith.constant 0 : index
    %c0_161 = arith.constant 0 : index
    %c0_162 = arith.constant 0 : index
    %231 = vector.load %arg13[%c0_160, %c0_161, %c0_162] : memref<1x1x32xf32, #tpu.memory_space<vmem>>, vector<1x1x32xf32>
    %232 = vector.shape_cast %231 : vector<1x1x32xf32> to vector<1x32xf32>
    %233 = vector.broadcast %232 : vector<1x32xf32> to vector<16x32xf32>
    %234 = arith.addf %230, %233 : vector<16x32xf32>
    %cst_163 = arith.constant 0.000000e+00 : f32
    %235 = vector.broadcast %cst_163 : f32 to vector<16x32xf32>
    %236 = arith.maximumf %234, %235 : vector<16x32xf32>
    %237 = arith.addf %216, %236 : vector<16x32xf32>
    %c0_164 = arith.constant 0 : index
    %c0_165 = arith.constant 0 : index
    %c0_166 = arith.constant 0 : index
    %238 = vector.load %arg14[%c0_164, %c0_165, %c0_166] : memref<1x1x32xf32, #tpu.memory_space<vmem>>, vector<1x1x32xf32>
    %239 = vector.shape_cast %238 : vector<1x1x32xf32> to vector<1x32xf32>
    %c0_167 = arith.constant 0 : index
    %c0_168 = arith.constant 0 : index
    %c0_169 = arith.constant 0 : index
    %240 = vector.load %arg15[%c0_167, %c0_168, %c0_169] : memref<1x1x32xf32, #tpu.memory_space<vmem>>, vector<1x1x32xf32>
    %241 = vector.shape_cast %240 : vector<1x1x32xf32> to vector<1x32xf32>
    %cst_170 = arith.constant dense<0.000000e+00> : vector<16xf32>
    %242 = vector.multi_reduction <add>, %237, %cst_170 [1] : vector<16x32xf32> to vector<16xf32>
    %243 = vector.shape_cast %242 : vector<16xf32> to vector<16x1xf32>
    %cst_171 = arith.constant 3.200000e+01 : f32
    %244 = vector.broadcast %cst_171 : f32 to vector<16x1xf32>
    %245 = arith.divf %243, %244 : vector<16x1xf32>
    %246 = vector.broadcast %245 : vector<16x1xf32> to vector<16x32xf32>
    %247 = arith.subf %237, %246 : vector<16x32xf32>
    %248 = arith.mulf %247, %247 : vector<16x32xf32>
    %cst_172 = arith.constant dense<0.000000e+00> : vector<16xf32>
    %249 = vector.multi_reduction <add>, %248, %cst_172 [1] : vector<16x32xf32> to vector<16xf32>
    %250 = vector.shape_cast %249 : vector<16xf32> to vector<16x1xf32>
    %cst_173 = arith.constant 3.200000e+01 : f32
    %251 = vector.broadcast %cst_173 : f32 to vector<16x1xf32>
    %252 = arith.divf %250, %251 : vector<16x1xf32>
    %cst_174 = arith.constant 9.99999974E-6 : f32
    %253 = vector.broadcast %cst_174 : f32 to vector<16x1xf32>
    %254 = arith.addf %252, %253 : vector<16x1xf32>
    %255 = math.rsqrt %254 : vector<16x1xf32>
    %256 = vector.broadcast %255 : vector<16x1xf32> to vector<16x32xf32>
    %257 = arith.mulf %247, %256 : vector<16x32xf32>
    %258 = vector.broadcast %239 : vector<1x32xf32> to vector<16x32xf32>
    %259 = arith.mulf %257, %258 : vector<16x32xf32>
    %260 = vector.broadcast %241 : vector<1x32xf32> to vector<16x32xf32>
    %261 = arith.addf %259, %260 : vector<16x32xf32>
    %c0_175 = arith.constant 0 : index
    %c0_176 = arith.constant 0 : index
    %262 = vector.load %arg22[%c0_175, %c0_176] : memref<16x32xf32, #tpu.memory_space<vmem>>, vector<16x32xf32>
    tpu.vector_store %arg22[%c0_175, %c0_176], %261 {strides = array<i32>} : memref<16x32xf32, #tpu.memory_space<vmem>>, vector<16x32xf32>,
    %c1_i32 = arith.constant 1 : i32
    %263 = arith.cmpi eq, %arg0, %c1_i32 : i32
    %264 = arith.extui %263 : i1 to i32
    %c0_i32_177 = arith.constant 0 : i32
    %265 = arith.cmpi ne, %264, %c0_i32_177 : i32
    scf.if %265 {
      %266 = arith.truncf %261 : vector<16x32xf32> to vector<16x32xbf16>
      %c0_178 = arith.constant 0 : index
      %c0_179 = arith.constant 0 : index
      %267 = vector.load %arg16[%c0_178, %c0_179] : memref<32x24xbf16, #tpu.memory_space<vmem>>, vector<32x24xbf16>
      %cst_180 = arith.constant dense<0.000000e+00> : vector<16x24xf32>
      %268 = tpu.matmul %266, %267, %cst_180 {dimension_numbers = #tpu.dot_dimension_numbers<[1], [0], [0], [1], [0, 0, 1, 1], [], []>} : vector<16x32xbf16>, vector<32x24xbf16>, vector<16x24xf32> -> vector<16x24xf32>
      %c0_181 = arith.constant 0 : index
      %c0_182 = arith.constant 0 : index
      %269 = vector.load %arg17[%c0_181, %c0_182] : memref<1x24xf32, #tpu.memory_space<vmem>>, vector<1x24xf32>
      %270 = vector.broadcast %269 : vector<1x24xf32> to vector<16x24xf32>
      %271 = arith.addf %268, %270 : vector<16x24xf32>
      %cst_183 = arith.constant 5.000000e-01 : f32
      %272 = vector.broadcast %cst_183 : f32 to vector<16x24xf32>
      %273 = arith.mulf %272, %271 : vector<16x24xf32>
      %cst_184 = arith.constant 0.707106769 : f32
      %274 = vector.broadcast %cst_184 : f32 to vector<16x24xf32>
      %275 = arith.mulf %271, %274 : vector<16x24xf32>
      %276 = math.erf %275 : vector<16x24xf32>
      %cst_185 = arith.constant 1.000000e+00 : f32
      %277 = vector.broadcast %cst_185 : f32 to vector<16x24xf32>
      %278 = arith.addf %277, %276 : vector<16x24xf32>
      %279 = arith.mulf %273, %278 : vector<16x24xf32>
      %280 = arith.truncf %279 : vector<16x24xf32> to vector<16x24xbf16>
      %c0_186 = arith.constant 0 : index
      %c0_187 = arith.constant 0 : index
      %281 = vector.load %arg18[%c0_186, %c0_187] : memref<24x16xbf16, #tpu.memory_space<vmem>>, vector<24x16xbf16>
      %cst_188 = arith.constant dense<0.000000e+00> : vector<16x16xf32>
      %282 = tpu.matmul %280, %281, %cst_188 {dimension_numbers = #tpu.dot_dimension_numbers<[1], [0], [0], [1], [0, 0, 1, 1], [], []>} : vector<16x24xbf16>, vector<24x16xbf16>, vector<16x16xf32> -> vector<16x16xf32>
      %c0_189 = arith.constant 0 : index
      %c0_190 = arith.constant 0 : index
      %283 = vector.load %arg19[%c0_189, %c0_190] : memref<1x16xf32, #tpu.memory_space<vmem>>, vector<1x16xf32>
      %284 = vector.broadcast %283 : vector<1x16xf32> to vector<16x16xf32>
      %285 = arith.addf %282, %284 : vector<16x16xf32>
      %286 = math.tanh %285 : vector<16x16xf32>
      %287 = vector.shape_cast %286 : vector<16x16xf32> to vector<2x8x16xf32>
      %c0_191 = arith.constant 0 : index
      %c0_192 = arith.constant 0 : index
      %288 = vector.load %arg20[%c0_191, %c0_192] : memref<1x16xf32, #tpu.memory_space<vmem>>, vector<1x16xf32>
      %289 = vector.shape_cast %288 : vector<1x16xf32> to vector<1x1x16xf32>
      %290 = vector.broadcast %289 : vector<1x1x16xf32> to vector<2x8x16xf32>
      %291 = arith.mulf %287, %290 : vector<2x8x16xf32>
      %cst_193 = arith.constant dense<0.000000e+00> : vector<2x8xf32>
      %292 = vector.multi_reduction <add>, %291, %cst_193 [2] : vector<2x8x16xf32> to vector<2x8xf32>
      %293 = vector.shape_cast %292 : vector<2x8xf32> to vector<2x8x1xf32>
      %cst_194 = arith.constant dense<0xFF800000> : vector<2x1xf32>
      %294 = vector.multi_reduction <maximumf>, %293, %cst_194 [1] : vector<2x8x1xf32> to vector<2x1xf32>
      %295 = vector.shape_cast %294 : vector<2x1xf32> to vector<2x1x1xf32>
      %296 = vector.broadcast %295 : vector<2x1x1xf32> to vector<2x8x1xf32>
      %297 = arith.subf %293, %296 : vector<2x8x1xf32>
      %298 = math.exp %297 : vector<2x8x1xf32>
      %cst_195 = arith.constant dense<0.000000e+00> : vector<2x1xf32>
      %299 = vector.multi_reduction <add>, %298, %cst_195 [1] : vector<2x8x1xf32> to vector<2x1xf32>
      %300 = vector.shape_cast %299 : vector<2x1xf32> to vector<2x1x1xf32>
      %301 = tpu.reciprocal %300 {approx = true} : vector<2x1x1xf32> -> vector<2x1x1xf32>
      %302 = vector.broadcast %301 : vector<2x1x1xf32> to vector<2x8x1xf32>
      %303 = arith.mulf %298, %302 : vector<2x8x1xf32>
      %304 = vector.shape_cast %261 : vector<16x32xf32> to vector<2x8x32xf32>
      %305 = vector.broadcast %303 : vector<2x8x1xf32> to vector<2x8x32xf32>
      %306 = arith.mulf %304, %305 : vector<2x8x32xf32>
      %cst_196 = arith.constant dense<0.000000e+00> : vector<8x32xf32>
      %307 = vector.multi_reduction <add>, %306, %cst_196 [0] : vector<2x8x32xf32> to vector<8x32xf32>
      %c0_197 = arith.constant 0 : index
      %c0_198 = arith.constant 0 : index
      %308 = vector.load %arg21[%c0_197, %c0_198] : memref<8x32xf32, #tpu.memory_space<vmem>>, vector<8x32xf32>
      tpu.vector_store %arg21[%c0_197, %c0_198], %307 {strides = array<i32>} : memref<8x32xf32, #tpu.memory_space<vmem>>, vector<8x32xf32>,
    } else {
    }
    return
  }
  func.func @transform_0(%arg0: i32) -> (i32, i32) {
    %c0_i32 = arith.constant 0 : i32
    %c0_i32_0 = arith.constant 0 : i32
    %c0_i32_1 = arith.constant 0 : i32
    return %c0_i32, %c0_i32_0 : i32, i32
  }
  func.func @transform_1(%arg0: i32) -> (i32, i32) {
    %c0_i32 = arith.constant 0 : i32
    %c0_i32_0 = arith.constant 0 : i32
    %c0_i32_1 = arith.constant 0 : i32
    return %c0_i32, %c0_i32_0 : i32, i32
  }
  func.func @transform_2(%arg0: i32) -> (i32, i32) {
    %c0_i32 = arith.constant 0 : i32
    %c0_i32_0 = arith.constant 0 : i32
    %c0_i32_1 = arith.constant 0 : i32
    return %c0_i32, %c0_i32_0 : i32, i32
  }
  func.func @transform_3(%arg0: i32) -> (i32, i32, i32, i32) {
    %c0_i32 = arith.constant 0 : i32
    %c0_i32_0 = arith.constant 0 : i32
    %c0_i32_1 = arith.constant 0 : i32
    %c0_i32_2 = arith.constant 0 : i32
    return %arg0, %c0_i32, %c0_i32_0, %c0_i32_1 : i32, i32, i32, i32
  }
  func.func @transform_4(%arg0: i32) -> (i32, i32, i32, i32) {
    %c0_i32 = arith.constant 0 : i32
    %c0_i32_0 = arith.constant 0 : i32
    %c0_i32_1 = arith.constant 0 : i32
    %c0_i32_2 = arith.constant 0 : i32
    return %arg0, %c0_i32, %c0_i32_0, %c0_i32_1 : i32, i32, i32, i32
  }
  func.func @transform_5(%arg0: i32) -> (i32, i32, i32, i32) {
    %c0_i32 = arith.constant 0 : i32
    %c0_i32_0 = arith.constant 0 : i32
    %c0_i32_1 = arith.constant 0 : i32
    %c0_i32_2 = arith.constant 0 : i32
    return %arg0, %c0_i32, %c0_i32_0, %c0_i32_1 : i32, i32, i32, i32
  }
  func.func @transform_6(%arg0: i32) -> (i32, i32, i32) {
    %c0_i32 = arith.constant 0 : i32
    %c0_i32_0 = arith.constant 0 : i32
    %c0_i32_1 = arith.constant 0 : i32
    return %arg0, %c0_i32, %c0_i32_0 : i32, i32, i32
  }
  func.func @transform_7(%arg0: i32) -> (i32, i32, i32) {
    %c0_i32 = arith.constant 0 : i32
    %c0_i32_0 = arith.constant 0 : i32
    %c0_i32_1 = arith.constant 0 : i32
    return %arg0, %c0_i32, %c0_i32_0 : i32, i32, i32
  }
  func.func @transform_8(%arg0: i32) -> (i32, i32, i32) {
    %c0_i32 = arith.constant 0 : i32
    %c0_i32_0 = arith.constant 0 : i32
    %c0_i32_1 = arith.constant 0 : i32
    return %arg0, %c0_i32, %c0_i32_0 : i32, i32, i32
  }
  func.func @transform_9(%arg0: i32) -> (i32, i32, i32) {
    %c0_i32 = arith.constant 0 : i32
    %c0_i32_0 = arith.constant 0 : i32
    %c0_i32_1 = arith.constant 0 : i32
    return %arg0, %c0_i32, %c0_i32_0 : i32, i32, i32
  }
  func.func @transform_10(%arg0: i32) -> (i32, i32, i32) {
    %c0_i32 = arith.constant 0 : i32
    %c0_i32_0 = arith.constant 0 : i32
    %c0_i32_1 = arith.constant 0 : i32
    return %arg0, %c0_i32, %c0_i32_0 : i32, i32, i32
  }
  func.func @transform_11(%arg0: i32) -> (i32, i32, i32) {
    %c0_i32 = arith.constant 0 : i32
    %c0_i32_0 = arith.constant 0 : i32
    %c0_i32_1 = arith.constant 0 : i32
    return %arg0, %c0_i32, %c0_i32_0 : i32, i32, i32
  }
  func.func @transform_12(%arg0: i32) -> (i32, i32, i32) {
    %c0_i32 = arith.constant 0 : i32
    %c0_i32_0 = arith.constant 0 : i32
    %c0_i32_1 = arith.constant 0 : i32
    return %arg0, %c0_i32, %c0_i32_0 : i32, i32, i32
  }
  func.func @transform_13(%arg0: i32) -> (i32, i32, i32) {
    %c0_i32 = arith.constant 0 : i32
    %c0_i32_0 = arith.constant 0 : i32
    %c0_i32_1 = arith.constant 0 : i32
    return %arg0, %c0_i32, %c0_i32_0 : i32, i32, i32
  }
  func.func @transform_14(%arg0: i32) -> (i32, i32, i32) {
    %c0_i32 = arith.constant 0 : i32
    %c0_i32_0 = arith.constant 0 : i32
    %c0_i32_1 = arith.constant 0 : i32
    return %arg0, %c0_i32, %c0_i32_0 : i32, i32, i32
  }
  func.func @transform_15(%arg0: i32) -> (i32, i32) {
    %c0_i32 = arith.constant 0 : i32
    %c0_i32_0 = arith.constant 0 : i32
    %c0_i32_1 = arith.constant 0 : i32
    return %c0_i32, %c0_i32_0 : i32, i32
  }
  func.func @transform_16(%arg0: i32) -> (i32, i32) {
    %c0_i32 = arith.constant 0 : i32
    %c0_i32_0 = arith.constant 0 : i32
    %c0_i32_1 = arith.constant 0 : i32
    return %c0_i32, %c0_i32_0 : i32, i32
  }
  func.func @transform_17(%arg0: i32) -> (i32, i32) {
    %c0_i32 = arith.constant 0 : i32
    %c0_i32_0 = arith.constant 0 : i32
    %c0_i32_1 = arith.constant 0 : i32
    return %c0_i32, %c0_i32_0 : i32, i32
  }
  func.func @transform_18(%arg0: i32) -> (i32, i32) {
    %c0_i32 = arith.constant 0 : i32
    %c0_i32_0 = arith.constant 0 : i32
    %c0_i32_1 = arith.constant 0 : i32
    return %c0_i32, %c0_i32_0 : i32, i32
  }
  func.func @transform_19(%arg0: i32) -> (i32, i32) {
    %c0_i32 = arith.constant 0 : i32
    %c0_i32_0 = arith.constant 0 : i32
    %c0_i32_1 = arith.constant 0 : i32
    return %c0_i32, %c0_i32_0 : i32, i32
  }
  func.func @transform_20(%arg0: i32) -> (i32, i32) {
    %c0_i32 = arith.constant 0 : i32
    %c0_i32_0 = arith.constant 0 : i32
    %c0_i32_1 = arith.constant 0 : i32
    return %c0_i32, %c0_i32_0 : i32, i32
  }
}

</mosaic_0001>

<llo_original>
// kernel: forward.1
$region0: #{forward.1}
  #allocation0 [shape = 'u32[]', space=smem, size = 0x4, offset = 0x4, fixed_abs, tag = 'smem constant byte address 0x4 - core index']
  #allocation1 [shape = 'u32[72,128]{1,0:T(1,128)}', space=vmem, size = 0x9000, scoped, tag = 'internal scratch']
  #allocation2 [shape = 'f32[16,32]{1,0:T(8,128)}', space=vmem, size = 0x2000, scoped, tag = 'scratch operand']
  %s0 = inlined_call_operand.vmem [shape: f32[16,3], index: 0, kind: input, shape index: {}]
  %s1 = inlined_call_operand.vmem [shape: f32[3,32], index: 1, kind: input, shape index: {}]
  %s2 = inlined_call_operand.vmem [shape: f32[1,32], index: 2, kind: input, shape index: {}]
  %s3 = inlined_call_operand.vmem [shape: bf16[2,12,32,8], index: 3, kind: input, shape index: {}]
  %s4 = inlined_call_operand.vmem [shape: f32[2,12,1,8], index: 4, kind: input, shape index: {}]
  %s5 = inlined_call_operand.vmem [shape: bf16[2,4,8,32], index: 5, kind: input, shape index: {}]
  %s6 = inlined_call_operand.vmem [shape: f32[2,1,32], index: 6, kind: input, shape index: {}]
  %s7 = inlined_call_operand.vmem [shape: f32[2,1,32], index: 7, kind: input, shape index: {}]
  %s8 = inlined_call_operand.vmem [shape: f32[2,1,32], index: 8, kind: input, shape index: {}]
  %s9 = inlined_call_operand.vmem [shape: bf16[2,32,32], index: 9, kind: input, shape index: {}]
  %s10 = inlined_call_operand.vmem [shape: f32[2,1,32], index: 10, kind: input, shape index: {}]
  %s11 = inlined_call_operand.vmem [shape: bf16[2,32,32], index: 11, kind: input, shape index: {}]
  %s12 = inlined_call_operand.vmem [shape: f32[2,1,32], index: 12, kind: input, shape index: {}]
  %s13 = inlined_call_operand.vmem [shape: f32[2,1,32], index: 13, kind: input, shape index: {}]
  %s14 = inlined_call_operand.vmem [shape: f32[2,1,32], index: 14, kind: input, shape index: {}]
  %s15 = inlined_call_operand.vmem [shape: bf16[32,24], index: 15, kind: input, shape index: {}]
  %s16 = inlined_call_operand.vmem [shape: f32[1,24], index: 16, kind: input, shape index: {}]
  %s17 = inlined_call_operand.vmem [shape: bf16[24,16], index: 17, kind: input, shape index: {}]
  %s18 = inlined_call_operand.vmem [shape: f32[1,16], index: 18, kind: input, shape index: {}]
  %s19 = inlined_call_operand.vmem [shape: f32[1,16], index: 19, kind: input, shape index: {}]
  %s20 = inlined_call_operand.hbm [shape: f32[8,32], index: 20, kind: output, shape index: {}]
  %s21 = sld [smem:[#allocation0]]
  $region121: #{forward.1} parent=0
    _
  %s23 = ssub.s32 1, %s21
  %s24 = scalar_select 0, %s23, %s21
  $region1: #{forward.1} parent=0
    #allocation3 [shape = 'u8[4096]{0}', space=vmem, size = 0x1000, scoped, tag = 'output window, operand 0, single buffered']
    #allocation4 [shape = 's32[2]{0}', space=sflag, size = 0x8, scoped, tag = 'scoped memory for forward.1']
    %25 = vsyncpa [#allocation4], 0
    loop: start=0, step=1, limit=4
    $region2: #{forward.1} parent=1 // loop_pre_header
      _
    $region3: #{forward.1} parent=1 // loop_header
      %s27 = sphi 0, %s31
      %p28 = scmp.ge.s32.totalorder %s27, 4
      %s35 = sphi 0, %s35
      %s37 = sphi 0, %s35
      %s38 = sphi 0, %s37
      %s52 = sphi 0, %s38
      %s56 = sphi 0, %s56
      %s58 = sphi 0, %s56
      %s59 = sphi 0, %s58
      %s73 = sphi 0, %s59
      %s77 = sphi 0, %s77
      %s79 = sphi 0, %s77
      %s80 = sphi 0, %s79
      %s94 = sphi 0, %s80
      %s100 = sphi 0, %s102
      %s103 = sphi 0, %s100
      %s104 = sphi 0, %s103
      %s120 = sphi 0, %s104
      %s126 = sphi 0, %s128
      %s129 = sphi 0, %s126
      %s130 = sphi 0, %s129
      %s146 = sphi 0, %s130
      %s152 = sphi 0, %s154
      %s155 = sphi 0, %s152
      %s156 = sphi 0, %s155
      %s172 = sphi 0, %s156
      %s178 = sphi 0, %s180
      %s181 = sphi 0, %s178
      %s182 = sphi 0, %s181
      %s198 = sphi 0, %s182
      %s204 = sphi 0, %s206
      %s207 = sphi 0, %s204
      %s208 = sphi 0, %s207
      %s224 = sphi 0, %s208
      %s230 = sphi 0, %s232
      %s233 = sphi 0, %s230
      %s234 = sphi 0, %s233
      %s250 = sphi 0, %s234
      %s256 = sphi 0, %s258
      %s259 = sphi 0, %s256
      %s260 = sphi 0, %s259
      %s276 = sphi 0, %s260
      %s282 = sphi 0, %s284
      %s285 = sphi 0, %s282
      %s286 = sphi 0, %s285
      %s302 = sphi 0, %s286
      %s308 = sphi 0, %s310
      %s311 = sphi 0, %s308
      %s312 = sphi 0, %s311
      %s328 = sphi 0, %s312
      %s334 = sphi 0, %s336
      %s337 = sphi 0, %s334
      %s338 = sphi 0, %s337
      %s354 = sphi 0, %s338
      %s360 = sphi 0, %s362
      %s363 = sphi 0, %s360
      %s364 = sphi 0, %s363
      %s380 = sphi 0, %s364
      %s386 = sphi 0, %s388
      %s389 = sphi 0, %s386
      %s390 = sphi 0, %s389
      %s406 = sphi 0, %s390
      %s410 = sphi 0, %s410
      %s412 = sphi 0, %s410
      %s413 = sphi 0, %s412
      %s427 = sphi 0, %s413
      %s431 = sphi 0, %s431
      %s433 = sphi 0, %s431
      %s434 = sphi 0, %s433
      %s448 = sphi 0, %s434
      %s452 = sphi 0, %s452
      %s454 = sphi 0, %s452
      %s455 = sphi 0, %s454
      %s469 = sphi 0, %s455
      %s473 = sphi 0, %s473
      %s475 = sphi 0, %s473
      %s476 = sphi 0, %s475
      %s490 = sphi 0, %s476
      %s494 = sphi 0, %s494
      %s496 = sphi 0, %s494
      %s497 = sphi 0, %s496
      %s511 = sphi 0, %s497
      %s515 = sphi 0, %s515
      %s517 = sphi 0, %s515
      %s518 = sphi 0, %s517
      %s532 = sphi 0, %s518
    $region4: #{forward.1} parent=1 // loop_header_branch
      %30 = sbr.rel (%p28) target = $region8
    $region5: #{forward.1} parent=1 // loop_body
      %s32 = ssub.s32 %s27, 1
      %s33 = ssub.s32 %s27, 2
      %s34 = sadd.s32 %s27, 1
      %s36 = sadd.s32 %s35, 1
      %p39 = scmp.eq.s32.totalorder %s27, 1
      %p40 = scmp.ne.s32.totalorder %s35, %s37
      %p41 = scmp.eq.s32.totalorder %s27, 0
      %p42 = por %p40, %p41
      %p43 = scmp.ne.s32.totalorder %s35, %s37
      %p44 = scmp.eq.s32.totalorder %s32, 1
      %p45 = por %p43, %p44
      %p46 = scmp.ne.s32.totalorder %s37, %s38
      %p47 = scmp.eq.s32.totalorder %s32, 0
      %p48 = por %p46, %p47
      %p49 = scmp.ne.s32.totalorder %s37, %s38
      %p50 = scmp.eq.s32.totalorder %s33, 1
      %p51 = por %p49, %p50
      %p53 = scmp.ne.s32.totalorder %s38, %s52
      %p54 = scmp.eq.s32.totalorder %s33, 0
      %p55 = por %p53, %p54
      %s57 = sadd.s32 %s56, 1
      %p60 = scmp.eq.s32.totalorder %s27, 1
      %p61 = scmp.ne.s32.totalorder %s56, %s58
      %p62 = scmp.eq.s32.totalorder %s27, 0
      %p63 = por %p61, %p62
      %p64 = scmp.ne.s32.totalorder %s56, %s58
      %p65 = scmp.eq.s32.totalorder %s32, 1
      %p66 = por %p64, %p65
      %p67 = scmp.ne.s32.totalorder %s58, %s59
      %p68 = scmp.eq.s32.totalorder %s32, 0
      %p69 = por %p67, %p68
      %p70 = scmp.ne.s32.totalorder %s58, %s59
      %p71 = scmp.eq.s32.totalorder %s33, 1
      %p72 = por %p70, %p71
      %p74 = scmp.ne.s32.totalorder %s59, %s73
      %p75 = scmp.eq.s32.totalorder %s33, 0
      %p76 = por %p74, %p75
      %s78 = sadd.s32 %s77, 1
      %p81 = scmp.eq.s32.totalorder %s27, 1
      %p82 = scmp.ne.s32.totalorder %s77, %s79
      %p83 = scmp.eq.s32.totalorder %s27, 0
      %p84 = por %p82, %p83
      %p85 = scmp.ne.s32.totalorder %s77, %s79
      %p86 = scmp.eq.s32.totalorder %s32, 1
      %p87 = por %p85, %p86
      %p88 = scmp.ne.s32.totalorder %s79, %s80
      %p89 = scmp.eq.s32.totalorder %s32, 0
      %p90 = por %p88, %p89
      %p91 = scmp.ne.s32.totalorder %s79, %s80
      %p92 = scmp.eq.s32.totalorder %s33, 1
      %p93 = por %p91, %p92
      %p95 = scmp.ne.s32.totalorder %s80, %s94
      %p96 = scmp.eq.s32.totalorder %s33, 0
      %p97 = por %p95, %p96
      %s98 = ssub.s32 %s27, %s34
      %p99 = scmp.eq.s32.totalorder %s98, 0
      %s101 = sadd.s32 %s100, 1
      %s102 = scalar_select %p99, %s100, %s101
      %p105 = pneg %p99
      %p106 = scmp.eq.s32.totalorder %s27, 1
      %p107 = por %p105, %p106
      %p108 = scmp.ne.s32.totalorder %s100, %s103
      %p109 = scmp.eq.s32.totalorder %s27, 0
      %p110 = por %p108, %p109
      %p111 = scmp.ne.s32.totalorder %s100, %s103
      %p112 = scmp.eq.s32.totalorder %s32, 1
      %p113 = por %p111, %p112
      %p114 = scmp.ne.s32.totalorder %s103, %s104
      %p115 = scmp.eq.s32.totalorder %s32, 0
      %p116 = por %p114, %p115
      %p117 = scmp.ne.s32.totalorder %s103, %s104
      %p118 = scmp.eq.s32.totalorder %s33, 1
      %p119 = por %p117, %p118
      %p121 = scmp.ne.s32.totalorder %s104, %s120
      %p122 = scmp.eq.s32.totalorder %s33, 0
      %p123 = por %p121, %p122
      %s124 = ssub.s32 %s27, %s34
      %p125 = scmp.eq.s32.totalorder %s124, 0
      %s127 = sadd.s32 %s126, 1
      %s128 = scalar_select %p125, %s126, %s127
      %p131 = pneg %p125
      %p132 = scmp.eq.s32.totalorder %s27, 1
      %p133 = por %p131, %p132
      %p134 = scmp.ne.s32.totalorder %s126, %s129
      %p135 = scmp.eq.s32.totalorder %s27, 0
      %p136 = por %p134, %p135
      %p137 = scmp.ne.s32.totalorder %s126, %s129
      %p138 = scmp.eq.s32.totalorder %s32, 1
      %p139 = por %p137, %p138
      %p140 = scmp.ne.s32.totalorder %s129, %s130
      %p141 = scmp.eq.s32.totalorder %s32, 0
      %p142 = por %p140, %p141
      %p143 = scmp.ne.s32.totalorder %s129, %s130
      %p144 = scmp.eq.s32.totalorder %s33, 1
      %p145 = por %p143, %p144
      %p147 = scmp.ne.s32.totalorder %s130, %s146
      %p148 = scmp.eq.s32.totalorder %s33, 0
      %p149 = por %p147, %p148
      %s150 = ssub.s32 %s27, %s34
      %p151 = scmp.eq.s32.totalorder %s150, 0
      %s153 = sadd.s32 %s152, 1
      %s154 = scalar_select %p151, %s152, %s153
      %p157 = pneg %p151
      %p158 = scmp.eq.s32.totalorder %s27, 1
      %p159 = por %p157, %p158
      %p160 = scmp.ne.s32.totalorder %s152, %s155
      %p161 = scmp.eq.s32.totalorder %s27, 0
      %p162 = por %p160, %p161
      %p163 = scmp.ne.s32.totalorder %s152, %s155
      %p164 = scmp.eq.s32.totalorder %s32, 1
      %p165 = por %p163, %p164
      %p166 = scmp.ne.s32.totalorder %s155, %s156
      %p167 = scmp.eq.s32.totalorder %s32, 0
      %p168 = por %p166, %p167
      %p169 = scmp.ne.s32.totalorder %s155, %s156
      %p170 = scmp.eq.s32.totalorder %s33, 1
      %p171 = por %p169, %p170
      %p173 = scmp.ne.s32.totalorder %s156, %s172
      %p174 = scmp.eq.s32.totalorder %s33, 0
      %p175 = por %p173, %p174
      %s176 = ssub.s32 %s27, %s34
      %p177 = scmp.eq.s32.totalorder %s176, 0
      %s179 = sadd.s32 %s178, 1
      %s180 = scalar_select %p177, %s178, %s179
      %p183 = pneg %p177
      %p184 = scmp.eq.s32.totalorder %s27, 1
      %p185 = por %p183, %p184
      %p186 = scmp.ne.s32.totalorder %s178, %s181
      %p187 = scmp.eq.s32.totalorder %s27, 0
      %p188 = por %p186, %p187
      %p189 = scmp.ne.s32.totalorder %s178, %s181
      %p190 = scmp.eq.s32.totalorder %s32, 1
      %p191 = por %p189, %p190
      %p192 = scmp.ne.s32.totalorder %s181, %s182
      %p193 = scmp.eq.s32.totalorder %s32, 0
      %p194 = por %p192, %p193
      %p195 = scmp.ne.s32.totalorder %s181, %s182
      %p196 = scmp.eq.s32.totalorder %s33, 1
      %p197 = por %p195, %p196
      %p199 = scmp.ne.s32.totalorder %s182, %s198
      %p200 = scmp.eq.s32.totalorder %s33, 0
      %p201 = por %p199, %p200
      %s202 = ssub.s32 %s27, %s34
      %p203 = scmp.eq.s32.totalorder %s202, 0
      %s205 = sadd.s32 %s204, 1
      %s206 = scalar_select %p203, %s204, %s205
      %p209 = pneg %p203
      %p210 = scmp.eq.s32.totalorder %s27, 1
      %p211 = por %p209, %p210
      %p212 = scmp.ne.s32.totalorder %s204, %s207
      %p213 = scmp.eq.s32.totalorder %s27, 0
      %p214 = por %p212, %p213
      %p215 = scmp.ne.s32.totalorder %s204, %s207
      %p216 = scmp.eq.s32.totalorder %s32, 1
      %p217 = por %p215, %p216
      %p218 = scmp.ne.s32.totalorder %s207, %s208
      %p219 = scmp.eq.s32.totalorder %s32, 0
      %p220 = por %p218, %p219
      %p221 = scmp.ne.s32.totalorder %s207, %s208
      %p222 = scmp.eq.s32.totalorder %s33, 1
      %p223 = por %p221, %p222
      %p225 = scmp.ne.s32.totalorder %s208, %s224
      %p226 = scmp.eq.s32.totalorder %s33, 0
      %p227 = por %p225, %p226
      %s228 = ssub.s32 %s27, %s34
      %p229 = scmp.eq.s32.totalorder %s228, 0
      %s231 = sadd.s32 %s230, 1
      %s232 = scalar_select %p229, %s230, %s231
      %p235 = pneg %p229
      %p236 = scmp.eq.s32.totalorder %s27, 1
      %p237 = por %p235, %p236
      %p238 = scmp.ne.s32.totalorder %s230, %s233
      %p239 = scmp.eq.s32.totalorder %s27, 0
      %p240 = por %p238, %p239
      %p241 = scmp.ne.s32.totalorder %s230, %s233
      %p242 = scmp.eq.s32.totalorder %s32, 1
      %p243 = por %p241, %p242
      %p244 = scmp.ne.s32.totalorder %s233, %s234
      %p245 = scmp.eq.s32.totalorder %s32, 0
      %p246 = por %p244, %p245
      %p247 = scmp.ne.s32.totalorder %s233, %s234
      %p248 = scmp.eq.s32.totalorder %s33, 1
      %p249 = por %p247, %p248
      %p251 = scmp.ne.s32.totalorder %s234, %s250
      %p252 = scmp.eq.s32.totalorder %s33, 0
      %p253 = por %p251, %p252
      %s254 = ssub.s32 %s27, %s34
      %p255 = scmp.eq.s32.totalorder %s254, 0
      %s257 = sadd.s32 %s256, 1
      %s258 = scalar_select %p255, %s256, %s257
      %p261 = pneg %p255
      %p262 = scmp.eq.s32.totalorder %s27, 1
      %p263 = por %p261, %p262
      %p264 = scmp.ne.s32.totalorder %s256, %s259
      %p265 = scmp.eq.s32.totalorder %s27, 0
      %p266 = por %p264, %p265
      %p267 = scmp.ne.s32.totalorder %s256, %s259
      %p268 = scmp.eq.s32.totalorder %s32, 1
      %p269 = por %p267, %p268
      %p270 = scmp.ne.s32.totalorder %s259, %s260
      %p271 = scmp.eq.s32.totalorder %s32, 0
      %p272 = por %p270, %p271
      %p273 = scmp.ne.s32.totalorder %s259, %s260
      %p274 = scmp.eq.s32.totalorder %s33, 1
      %p275 = por %p273, %p274
      %p277 = scmp.ne.s32.totalorder %s260, %s276
      %p278 = scmp.eq.s32.totalorder %s33, 0
      %p279 = por %p277, %p278
      %s280 = ssub.s32 %s27, %s34
      %p281 = scmp.eq.s32.totalorder %s280, 0
      %s283 = sadd.s32 %s282, 1
      %s284 = scalar_select %p281, %s282, %s283
      %p287 = pneg %p281
      %p288 = scmp.eq.s32.totalorder %s27, 1
      %p289 = por %p287, %p288
      %p290 = scmp.ne.s32.totalorder %s282, %s285
      %p291 = scmp.eq.s32.totalorder %s27, 0
      %p292 = por %p290, %p291
      %p293 = scmp.ne.s32.totalorder %s282, %s285
      %p294 = scmp.eq.s32.totalorder %s32, 1
      %p295 = por %p293, %p294
      %p296 = scmp.ne.s32.totalorder %s285, %s286
      %p297 = scmp.eq.s32.totalorder %s32, 0
      %p298 = por %p296, %p297
      %p299 = scmp.ne.s32.totalorder %s285, %s286
      %p300 = scmp.eq.s32.totalorder %s33, 1
      %p301 = por %p299, %p300
      %p303 = scmp.ne.s32.totalorder %s286, %s302
      %p304 = scmp.eq.s32.totalorder %s33, 0
      %p305 = por %p303, %p304
      %s306 = ssub.s32 %s27, %s34
      %p307 = scmp.eq.s32.totalorder %s306, 0
      %s309 = sadd.s32 %s308, 1
      %s310 = scalar_select %p307, %s308, %s309
      %p313 = pneg %p307
      %p314 = scmp.eq.s32.totalorder %s27, 1
      %p315 = por %p313, %p314
      %p316 = scmp.ne.s32.totalorder %s308, %s311
      %p317 = scmp.eq.s32.totalorder %s27, 0
      %p318 = por %p316, %p317
      %p319 = scmp.ne.s32.totalorder %s308, %s311
      %p320 = scmp.eq.s32.totalorder %s32, 1
      %p321 = por %p319, %p320
      %p322 = scmp.ne.s32.totalorder %s311, %s312
      %p323 = scmp.eq.s32.totalorder %s32, 0
      %p324 = por %p322, %p323
      %p325 = scmp.ne.s32.totalorder %s311, %s312
      %p326 = scmp.eq.s32.totalorder %s33, 1
      %p327 = por %p325, %p326
      %p329 = scmp.ne.s32.totalorder %s312, %s328
      %p330 = scmp.eq.s32.totalorder %s33, 0
      %p331 = por %p329, %p330
      %s332 = ssub.s32 %s27, %s34
      %p333 = scmp.eq.s32.totalorder %s332, 0
      %s335 = sadd.s32 %s334, 1
      %s336 = scalar_select %p333, %s334, %s335
      %p339 = pneg %p333
      %p340 = scmp.eq.s32.totalorder %s27, 1
      %p341 = por %p339, %p340
      %p342 = scmp.ne.s32.totalorder %s334, %s337
      %p343 = scmp.eq.s32.totalorder %s27, 0
      %p344 = por %p342, %p343
      %p345 = scmp.ne.s32.totalorder %s334, %s337
      %p346 = scmp.eq.s32.totalorder %s32, 1
      %p347 = por %p345, %p346
      %p348 = scmp.ne.s32.totalorder %s337, %s338
      %p349 = scmp.eq.s32.totalorder %s32, 0
      %p350 = por %p348, %p349
      %p351 = scmp.ne.s32.totalorder %s337, %s338
      %p352 = scmp.eq.s32.totalorder %s33, 1
      %p353 = por %p351, %p352
      %p355 = scmp.ne.s32.totalorder %s338, %s354
      %p356 = scmp.eq.s32.totalorder %s33, 0
      %p357 = por %p355, %p356
      %s358 = ssub.s32 %s27, %s34
      %p359 = scmp.eq.s32.totalorder %s358, 0
      %s361 = sadd.s32 %s360, 1
      %s362 = scalar_select %p359, %s360, %s361
      %p365 = pneg %p359
      %p366 = scmp.eq.s32.totalorder %s27, 1
      %p367 = por %p365, %p366
      %p368 = scmp.ne.s32.totalorder %s360, %s363
      %p369 = scmp.eq.s32.totalorder %s27, 0
      %p370 = por %p368, %p369
      %p371 = scmp.ne.s32.totalorder %s360, %s363
      %p372 = scmp.eq.s32.totalorder %s32, 1
      %p373 = por %p371, %p372
      %p374 = scmp.ne.s32.totalorder %s363, %s364
      %p375 = scmp.eq.s32.totalorder %s32, 0
      %p376 = por %p374, %p375
      %p377 = scmp.ne.s32.totalorder %s363, %s364
      %p378 = scmp.eq.s32.totalorder %s33, 1
      %p379 = por %p377, %p378
      %p381 = scmp.ne.s32.totalorder %s364, %s380
      %p382 = scmp.eq.s32.totalorder %s33, 0
      %p383 = por %p381, %p382
      %s384 = ssub.s32 %s27, %s34
      %p385 = scmp.eq.s32.totalorder %s384, 0
      %s387 = sadd.s32 %s386, 1
      %s388 = scalar_select %p385, %s386, %s387
      %p391 = pneg %p385
      %p392 = scmp.eq.s32.totalorder %s27, 1
      %p393 = por %p391, %p392
      %p394 = scmp.ne.s32.totalorder %s386, %s389
      %p395 = scmp.eq.s32.totalorder %s27, 0
      %p396 = por %p394, %p395
      %p397 = scmp.ne.s32.totalorder %s386, %s389
      %p398 = scmp.eq.s32.totalorder %s32, 1
      %p399 = por %p397, %p398
      %p400 = scmp.ne.s32.totalorder %s389, %s390
      %p401 = scmp.eq.s32.totalorder %s32, 0
      %p402 = por %p400, %p401
      %p403 = scmp.ne.s32.totalorder %s389, %s390
      %p404 = scmp.eq.s32.totalorder %s33, 1
      %p405 = por %p403, %p404
      %p407 = scmp.ne.s32.totalorder %s390, %s406
      %p408 = scmp.eq.s32.totalorder %s33, 0
      %p409 = por %p407, %p408
      %s411 = sadd.s32 %s410, 1
      %p414 = scmp.eq.s32.totalorder %s27, 1
      %p415 = scmp.ne.s32.totalorder %s410, %s412
      %p416 = scmp.eq.s32.totalorder %s27, 0
      %p417 = por %p415, %p416
      %p418 = scmp.ne.s32.totalorder %s410, %s412
      %p419 = scmp.eq.s32.totalorder %s32, 1
      %p420 = por %p418, %p419
      %p421 = scmp.ne.s32.totalorder %s412, %s413
      %p422 = scmp.eq.s32.totalorder %s32, 0
      %p423 = por %p421, %p422
      %p424 = scmp.ne.s32.totalorder %s412, %s413
      %p425 = scmp.eq.s32.totalorder %s33, 1
      %p426 = por %p424, %p425
      %p428 = scmp.ne.s32.totalorder %s413, %s427
      %p429 = scmp.eq.s32.totalorder %s33, 0
      %p430 = por %p428, %p429
      %s432 = sadd.s32 %s431, 1
      %p435 = scmp.eq.s32.totalorder %s27, 1
      %p436 = scmp.ne.s32.totalorder %s431, %s433
      %p437 = scmp.eq.s32.totalorder %s27, 0
      %p438 = por %p436, %p437
      %p439 = scmp.ne.s32.totalorder %s431, %s433
      %p440 = scmp.eq.s32.totalorder %s32, 1
      %p441 = por %p439, %p440
      %p442 = scmp.ne.s32.totalorder %s433, %s434
      %p443 = scmp.eq.s32.totalorder %s32, 0
      %p444 = por %p442, %p443
      %p445 = scmp.ne.s32.totalorder %s433, %s434
      %p446 = scmp.eq.s32.totalorder %s33, 1
      %p447 = por %p445, %p446
      %p449 = scmp.ne.s32.totalorder %s434, %s448
      %p450 = scmp.eq.s32.totalorder %s33, 0
      %p451 = por %p449, %p450
      %s453 = sadd.s32 %s452, 1
      %p456 = scmp.eq.s32.totalorder %s27, 1
      %p457 = scmp.ne.s32.totalorder %s452, %s454
      %p458 = scmp.eq.s32.totalorder %s27, 0
      %p459 = por %p457, %p458
      %p460 = scmp.ne.s32.totalorder %s452, %s454
      %p461 = scmp.eq.s32.totalorder %s32, 1
      %p462 = por %p460, %p461
      %p463 = scmp.ne.s32.totalorder %s454, %s455
      %p464 = scmp.eq.s32.totalorder %s32, 0
      %p465 = por %p463, %p464
      %p466 = scmp.ne.s32.totalorder %s454, %s455
      %p467 = scmp.eq.s32.totalorder %s33, 1
      %p468 = por %p466, %p467
      %p470 = scmp.ne.s32.totalorder %s455, %s469
      %p471 = scmp.eq.s32.totalorder %s33, 0
      %p472 = por %p470, %p471
      %s474 = sadd.s32 %s473, 1
      %p477 = scmp.eq.s32.totalorder %s27, 1
      %p478 = scmp.ne.s32.totalorder %s473, %s475
      %p479 = scmp.eq.s32.totalorder %s27, 0
      %p480 = por %p478, %p479
      %p481 = scmp.ne.s32.totalorder %s473, %s475
      %p482 = scmp.eq.s32.totalorder %s32, 1
      %p483 = por %p481, %p482
      %p484 = scmp.ne.s32.totalorder %s475, %s476
      %p485 = scmp.eq.s32.totalorder %s32, 0
      %p486 = por %p484, %p485
      %p487 = scmp.ne.s32.totalorder %s475, %s476
      %p488 = scmp.eq.s32.totalorder %s33, 1
      %p489 = por %p487, %p488
      %p491 = scmp.ne.s32.totalorder %s476, %s490
      %p492 = scmp.eq.s32.totalorder %s33, 0
      %p493 = por %p491, %p492
      %s495 = sadd.s32 %s494, 1
      %p498 = scmp.eq.s32.totalorder %s27, 1
      %p499 = scmp.ne.s32.totalorder %s494, %s496
      %p500 = scmp.eq.s32.totalorder %s27, 0
      %p501 = por %p499, %p500
      %p502 = scmp.ne.s32.totalorder %s494, %s496
      %p503 = scmp.eq.s32.totalorder %s32, 1
      %p504 = por %p502, %p503
      %p505 = scmp.ne.s32.totalorder %s496, %s497
      %p506 = scmp.eq.s32.totalorder %s32, 0
      %p507 = por %p505, %p506
      %p508 = scmp.ne.s32.totalorder %s496, %s497
      %p509 = scmp.eq.s32.totalorder %s33, 1
      %p510 = por %p508, %p509
      %p512 = scmp.ne.s32.totalorder %s497, %s511
      %p513 = scmp.eq.s32.totalorder %s33, 0
      %p514 = por %p512, %p513
      %s516 = sadd.s32 %s515, 1
      %p519 = scmp.eq.s32.totalorder %s27, 1
      %p520 = scmp.ne.s32.totalorder %s515, %s517
      %p521 = scmp.eq.s32.totalorder %s27, 0
      %p522 = por %p520, %p521
      %p523 = scmp.ne.s32.totalorder %s515, %s517
      %p524 = scmp.eq.s32.totalorder %s32, 1
      %p525 = por %p523, %p524
      %p526 = scmp.ne.s32.totalorder %s517, %s518
      %p527 = scmp.eq.s32.totalorder %s32, 0
      %p528 = por %p526, %p527
      %p529 = scmp.ne.s32.totalorder %s517, %s518
      %p530 = scmp.eq.s32.totalorder %s33, 1
      %p531 = por %p529, %p530
      %p533 = scmp.ne.s32.totalorder %s518, %s532
      %p534 = scmp.eq.s32.totalorder %s33, 0
      %p535 = por %p533, %p534
      %p536 = scmp.le.s32.totalorder 1, %s27
      %p537 = scmp.lt.s32.totalorder %s27, 3
      %p538 = pnand %p536, %p537
      %p539 = pneg %p538
      // Predicated region
      $region9: #{forward.1} parent=5 // pred_check
        _
      $region10: #{forward.1} parent=5 // pred_check_branch
        %541 = sbr.rel (%p538) target = $region12
      $region11: #{forward.1} parent=5 // pred_region
        %s542 = ssub.s32 %s27, 1
        // Predicated region
        $region13: #{forward.1} parent=11 // pred_check
          %p543 = pneg %p48
        $region14: #{forward.1} parent=11 // pred_check_branch
          %545 = sbr.rel (%p543) target = $region16
        $region15: #{forward.1} parent=11 // pred_region
          _
        $region16: #{forward.1} parent=11 // pred_fallthru
          _
        // Predicated region
        $region17: #{forward.1} parent=11 // pred_check
          %p546 = pneg %p69
        $region18: #{forward.1} parent=11 // pred_check_branch
          %548 = sbr.rel (%p546) target = $region20
        $region19: #{forward.1} parent=11 // pred_region
          _
        $region20: #{forward.1} parent=11 // pred_fallthru
          _
        // Predicated region
        $region21: #{forward.1} parent=11 // pred_check
          %p549 = pneg %p90
        $region22: #{forward.1} parent=11 // pred_check_branch
          %551 = sbr.rel (%p549) target = $region24
        $region23: #{forward.1} parent=11 // pred_region
          _
        $region24: #{forward.1} parent=11 // pred_fallthru
          _
        // Predicated region
        $region25: #{forward.1} parent=11 // pred_check
          %p552 = pneg %p423
        $region26: #{forward.1} parent=11 // pred_check_branch
          %554 = sbr.rel (%p552) target = $region28
        $region27: #{forward.1} parent=11 // pred_region
          _
        $region28: #{forward.1} parent=11 // pred_fallthru
          _
        // Predicated region
        $region29: #{forward.1} parent=11 // pred_check
          %p555 = pneg %p444
        $region30: #{forward.1} parent=11 // pred_check_branch
          %557 = sbr.rel (%p555) target = $region32
        $region31: #{forward.1} parent=11 // pred_region
          _
        $region32: #{forward.1} parent=11 // pred_fallthru
          _
        // Predicated region
        $region33: #{forward.1} parent=11 // pred_check
          %p558 = pneg %p465
        $region34: #{forward.1} parent=11 // pred_check_branch
          %560 = sbr.rel (%p558) target = $region36
        $region35: #{forward.1} parent=11 // pred_region
          _
        $region36: #{forward.1} parent=11 // pred_fallthru
          _
        // Predicated region
        $region37: #{forward.1} parent=11 // pred_check
          %p561 = pneg %p486
        $region38: #{forward.1} parent=11 // pred_check_branch
          %563 = sbr.rel (%p561) target = $region40
        $region39: #{forward.1} parent=11 // pred_region
          _
        $region40: #{forward.1} parent=11 // pred_fallthru
          _
        // Predicated region
        $region41: #{forward.1} parent=11 // pred_check
          %p564 = pneg %p507
        $region42: #{forward.1} parent=11 // pred_check_branch
          %566 = sbr.rel (%p564) target = $region44
        $region43: #{forward.1} parent=11 // pred_region
          _
        $region44: #{forward.1} parent=11 // pred_fallthru
          _
      $region12: #{forward.1} parent=5 // pred_fallthru
        _
      %p567 = scmp.lt.s32.totalorder %s27, 2
      // Predicated region
      $region45: #{forward.1} parent=5 // pred_check
        %p568 = pneg %p567
      $region46: #{forward.1} parent=5 // pred_check_branch
        %570 = sbr.rel (%p568) target = $region48
      $region47: #{forward.1} parent=5 // pred_region
        // Predicated region
        $region49: #{forward.1} parent=47 // pred_check
          %p571 = pneg %p110
        $region50: #{forward.1} parent=47 // pred_check_branch
          %573 = sbr.rel (%p571) target = $region52
        $region51: #{forward.1} parent=47 // pred_region
          %p574 = scmp.lt.s32.totalorder %s27, 1
          %s575 = scalar_select %p574, %s27, 1
          %s576 = smul.addr %s575, 48
          %s577 = smul.addr %s576, 4
          %s578 = scalar_lea.vmem %s3, %s577
        $region52: #{forward.1} parent=47 // pred_fallthru
          _
        // Predicated region
        $region53: #{forward.1} parent=47 // pred_check
          %p579 = pneg %p136
        $region54: #{forward.1} parent=47 // pred_check_branch
          %581 = sbr.rel (%p579) target = $region56
        $region55: #{forward.1} parent=47 // pred_region
          %p582 = scmp.lt.s32.totalorder %s27, 1
          %s583 = scalar_select %p582, %s27, 1
          %s584 = smul.addr %s583, 12
          %s585 = scalar_lea.vmem %s4, %s584
        $region56: #{forward.1} parent=47 // pred_fallthru
          _
        // Predicated region
        $region57: #{forward.1} parent=47 // pred_check
          %p586 = pneg %p162
        $region58: #{forward.1} parent=47 // pred_check_branch
          %588 = sbr.rel (%p586) target = $region60
        $region59: #{forward.1} parent=47 // pred_region
          %p589 = scmp.lt.s32.totalorder %s27, 1
          %s590 = scalar_select %p589, %s27, 1
          %s591 = smul.addr %s590, 4
          %s592 = smul.addr %s591, 4
          %s593 = scalar_lea.vmem %s5, %s592
        $region60: #{forward.1} parent=47 // pred_fallthru
          _
        // Predicated region
        $region61: #{forward.1} parent=47 // pred_check
          %p594 = pneg %p188
        $region62: #{forward.1} parent=47 // pred_check_branch
          %596 = sbr.rel (%p594) target = $region64
        $region63: #{forward.1} parent=47 // pred_region
          %p597 = scmp.lt.s32.totalorder %s27, 1
          %s598 = scalar_select %p597, %s27, 1
          %s599 = scalar_lea.vmem %s6, %s598
        $region64: #{forward.1} parent=47 // pred_fallthru
          _
        // Predicated region
        $region65: #{forward.1} parent=47 // pred_check
          %p600 = pneg %p214
        $region66: #{forward.1} parent=47 // pred_check_branch
          %602 = sbr.rel (%p600) target = $region68
        $region67: #{forward.1} parent=47 // pred_region
          %p603 = scmp.lt.s32.totalorder %s27, 1
          %s604 = scalar_select %p603, %s27, 1
          %s605 = scalar_lea.vmem %s7, %s604
        $region68: #{forward.1} parent=47 // pred_fallthru
          _
        // Predicated region
        $region69: #{forward.1} parent=47 // pred_check
          %p606 = pneg %p240
        $region70: #{forward.1} parent=47 // pred_check_branch
          %608 = sbr.rel (%p606) target = $region72
        $region71: #{forward.1} parent=47 // pred_region
          %p609 = scmp.lt.s32.totalorder %s27, 1
          %s610 = scalar_select %p609, %s27, 1
          %s611 = scalar_lea.vmem %s8, %s610
        $region72: #{forward.1} parent=47 // pred_fallthru
          _
        // Predicated region
        $region73: #{forward.1} parent=47 // pred_check
          %p612 = pneg %p266
        $region74: #{forward.1} parent=47 // pred_check_branch
          %614 = sbr.rel (%p612) target = $region76
        $region75: #{forward.1} parent=47 // pred_region
          %p615 = scmp.lt.s32.totalorder %s27, 1
          %s616 = scalar_select %p615, %s27, 1
          %s617 = smul.addr %s616, 4
          %s618 = smul.addr %s617, 4
          %s619 = scalar_lea.vmem %s9, %s618
        $region76: #{forward.1} parent=47 // pred_fallthru
          _
        // Predicated region
        $region77: #{forward.1} parent=47 // pred_check
          %p620 = pneg %p292
        $region78: #{forward.1} parent=47 // pred_check_branch
          %622 = sbr.rel (%p620) target = $region80
        $region79: #{forward.1} parent=47 // pred_region
          %p623 = scmp.lt.s32.totalorder %s27, 1
          %s624 = scalar_select %p623, %s27, 1
          %s625 = scalar_lea.vmem %s10, %s624
        $region80: #{forward.1} parent=47 // pred_fallthru
          _
        // Predicated region
        $region81: #{forward.1} parent=47 // pred_check
          %p626 = pneg %p318
        $region82: #{forward.1} parent=47 // pred_check_branch
          %628 = sbr.rel (%p626) target = $region84
        $region83: #{forward.1} parent=47 // pred_region
          %p629 = scmp.lt.s32.totalorder %s27, 1
          %s630 = scalar_select %p629, %s27, 1
          %s631 = smul.addr %s630, 4
          %s632 = smul.addr %s631, 4
          %s633 = scalar_lea.vmem %s11, %s632
        $region84: #{forward.1} parent=47 // pred_fallthru
          _
        // Predicated region
        $region85: #{forward.1} parent=47 // pred_check
          %p634 = pneg %p344
        $region86: #{forward.1} parent=47 // pred_check_branch
          %636 = sbr.rel (%p634) target = $region88
        $region87: #{forward.1} parent=47 // pred_region
          %p637 = scmp.lt.s32.totalorder %s27, 1
          %s638 = scalar_select %p637, %s27, 1
          %s639 = scalar_lea.vmem %s12, %s638
        $region88: #{forward.1} parent=47 // pred_fallthru
          _
        // Predicated region
        $region89: #{forward.1} parent=47 // pred_check
          %p640 = pneg %p370
        $region90: #{forward.1} parent=47 // pred_check_branch
          %642 = sbr.rel (%p640) target = $region92
        $region91: #{forward.1} parent=47 // pred_region
          %p643 = scmp.lt.s32.totalorder %s27, 1
          %s644 = scalar_select %p643, %s27, 1
          %s645 = scalar_lea.vmem %s13, %s644
        $region92: #{forward.1} parent=47 // pred_fallthru
          _
        // Predicated region
        $region93: #{forward.1} parent=47 // pred_check
          %p646 = pneg %p396
        $region94: #{forward.1} parent=47 // pred_check_branch
          %648 = sbr.rel (%p646) target = $region96
        $region95: #{forward.1} parent=47 // pred_region
          %p649 = scmp.lt.s32.totalorder %s27, 1
          %s650 = scalar_select %p649, %s27, 1
          %s651 = scalar_lea.vmem %s14, %s650
        $region96: #{forward.1} parent=47 // pred_fallthru
          _
      $region48: #{forward.1} parent=5 // pred_fallthru
        _
      %p652 = scmp.le.s32.totalorder 1, %s27
      %p653 = scmp.lt.s32.totalorder %s27, 3
      %p654 = pnand %p652, %p653
      %p655 = pneg %p654
      // Predicated region
      $region97: #{forward.1} parent=5 // pred_check
        _
      $region98: #{forward.1} parent=5 // pred_check_branch
        %657 = sbr.rel (%p654) target = $region100
      $region99: #{forward.1} parent=5 // pred_region
        %s658 = ssub.s32 %s27, 1
        %p659 = pneg %p48
        %p660 = pneg %p45
        %p661 = pneg %p69
        %p662 = pneg %p66
        %p663 = pneg %p90
        %p664 = pneg %p87
        %p665 = scmp.lt.s32.totalorder %s32, 1
        %s666 = scalar_select %p665, %s32, 1
        %s667 = smul.addr %s666, 48
        %s668 = smul.addr %s667, 4
        %s669 = scalar_lea.vmem %s3, %s668
        %p670 = pneg %p116
        %p671 = pneg %p113
        %p672 = scmp.lt.s32.totalorder %s32, 1
        %s673 = scalar_select %p672, %s32, 1
        %s674 = smul.addr %s673, 12
        %s675 = scalar_lea.vmem %s4, %s674
        %p676 = pneg %p142
        %p677 = pneg %p139
        %p678 = scmp.lt.s32.totalorder %s32, 1
        %s679 = scalar_select %p678, %s32, 1
        %s680 = smul.addr %s679, 4
        %s681 = smul.addr %s680, 4
        %s682 = scalar_lea.vmem %s5, %s681
        %p683 = pneg %p168
        %p684 = pneg %p165
        %p685 = scmp.lt.s32.totalorder %s32, 1
        %s686 = scalar_select %p685, %s32, 1
        %s687 = scalar_lea.vmem %s6, %s686
        %p688 = pneg %p194
        %p689 = pneg %p191
        %p690 = scmp.lt.s32.totalorder %s32, 1
        %s691 = scalar_select %p690, %s32, 1
        %s692 = scalar_lea.vmem %s7, %s691
        %p693 = pneg %p220
        %p694 = pneg %p217
        %p695 = scmp.lt.s32.totalorder %s32, 1
        %s696 = scalar_select %p695, %s32, 1
        %s697 = scalar_lea.vmem %s8, %s696
        %p698 = pneg %p246
        %p699 = pneg %p243
        %p700 = scmp.lt.s32.totalorder %s32, 1
        %s701 = scalar_select %p700, %s32, 1
        %s702 = smul.addr %s701, 4
        %s703 = smul.addr %s702, 4
        %s704 = scalar_lea.vmem %s9, %s703
        %p705 = pneg %p272
        %p706 = pneg %p269
        %p707 = scmp.lt.s32.totalorder %s32, 1
        %s708 = scalar_select %p707, %s32, 1
        %s709 = scalar_lea.vmem %s10, %s708
        %p710 = pneg %p298
        %p711 = pneg %p295
        %p712 = scmp.lt.s32.totalorder %s32, 1
        %s713 = scalar_select %p712, %s32, 1
        %s714 = smul.addr %s713, 4
        %s715 = smul.addr %s714, 4
        %s716 = scalar_lea.vmem %s11, %s715
        %p717 = pneg %p324
        %p718 = pneg %p321
        %p719 = scmp.lt.s32.totalorder %s32, 1
        %s720 = scalar_select %p719, %s32, 1
        %s721 = scalar_lea.vmem %s12, %s720
        %p722 = pneg %p350
        %p723 = pneg %p347
        %p724 = scmp.lt.s32.totalorder %s32, 1
        %s725 = scalar_select %p724, %s32, 1
        %s726 = scalar_lea.vmem %s13, %s725
        %p727 = pneg %p376
        %p728 = pneg %p373
        %p729 = scmp.lt.s32.totalorder %s32, 1
        %s730 = scalar_select %p729, %s32, 1
        %s731 = scalar_lea.vmem %s14, %s730
        %p732 = pneg %p402
        %p733 = pneg %p399
        %p734 = pneg %p423
        %p735 = pneg %p420
        %p736 = pneg %p444
        %p737 = pneg %p441
        %p738 = pneg %p465
        %p739 = pneg %p462
        %p740 = pneg %p486
        %p741 = pneg %p483
        %p742 = pneg %p507
        %p743 = pneg %p504
        %p744 = pneg %p528
        %p745 = pneg %p525
        %p746 = scmp.lt.s32.totalorder %s32, 1
        %s747 = scalar_select %p746, %s32, 1
        %s748 = smul.addr %s747, 48
        %s749 = smul.addr %s748, 4
        %s750 = scalar_lea.vmem %s3, %s749
        %p751 = scmp.lt.s32.totalorder %s32, 1
        %s752 = scalar_select %p751, %s32, 1
        %s753 = smul.addr %s752, 12
        %s754 = scalar_lea.vmem %s4, %s753
        %p755 = scmp.lt.s32.totalorder %s32, 1
        %s756 = scalar_select %p755, %s32, 1
        %s757 = smul.addr %s756, 4
        %s758 = smul.addr %s757, 4
        %s759 = scalar_lea.vmem %s5, %s758
        %p760 = scmp.lt.s32.totalorder %s32, 1
        %s761 = scalar_select %p760, %s32, 1
        %s762 = scalar_lea.vmem %s6, %s761
        %p763 = scmp.lt.s32.totalorder %s32, 1
        %s764 = scalar_select %p763, %s32, 1
        %s765 = scalar_lea.vmem %s7, %s764
        %p766 = scmp.lt.s32.totalorder %s32, 1
        %s767 = scalar_select %p766, %s32, 1
        %s768 = scalar_lea.vmem %s8, %s767
        %p769 = scmp.lt.s32.totalorder %s32, 1
        %s770 = scalar_select %p769, %s32, 1
        %s771 = smul.addr %s770, 4
        %s772 = smul.addr %s771, 4
        %s773 = scalar_lea.vmem %s9, %s772
        %p774 = scmp.lt.s32.totalorder %s32, 1
        %s775 = scalar_select %p774, %s32, 1
        %s776 = scalar_lea.vmem %s10, %s775
        %p777 = scmp.lt.s32.totalorder %s32, 1
        %s778 = scalar_select %p777, %s32, 1
        %s779 = smul.addr %s778, 4
        %s780 = smul.addr %s779, 4
        %s781 = scalar_lea.vmem %s11, %s780
        %p782 = scmp.lt.s32.totalorder %s32, 1
        %s783 = scalar_select %p782, %s32, 1
        %s784 = scalar_lea.vmem %s12, %s783
        %p785 = scmp.lt.s32.totalorder %s32, 1
        %s786 = scalar_select %p785, %s32, 1
        %s787 = scalar_lea.vmem %s13, %s786
        %p788 = scmp.lt.s32.totalorder %s32, 1
        %s789 = scalar_select %p788, %s32, 1
        %s790 = scalar_lea.vmem %s14, %s789
        %p792 = scmp.eq.s32.totalorder %s32, 0
        // Predicated region
        $region101: #{forward.1} parent=99 // pred_check
          %p793 = pneg %p792
        $region102: #{forward.1} parent=99 // pred_check_branch
          %795 = sbr.rel (%p793) target = $region104
        $region103: #{forward.1} parent=99 // pred_region
          %v796 = vld [vmem:[%s0] sm:$0xff]
          %v797 = vld [vmem:[%s0 + $0x8] sm:$0xff]
          %v798 = vld [vmem:[%s1] sm:$0x7]
          %800 = vset.pattern.permute.xlu0 0
          %801 = vperm.xlu0 %800, %v796
          %v802 = vpop.permute.xlu0 %801
          %805 = vset.pattern.permute.xlu0 0
          %806 = vperm.xlu0 %805, %v797
          %v807 = vpop.permute.xlu0 %806
          %v809 = vperm.slane %v798, 0
          %v810 = vmul.f32 %v802, %v809
          %v811 = vmul.f32 %v807, %v809
          %812 = vset.pattern.permute.xlu0 1
          %813 = vperm.xlu0 %812, %v796
          %v814 = vpop.permute.xlu0 %813
          %816 = vset.pattern.permute.xlu0 1
          %817 = vperm.xlu0 %816, %v797
          %v818 = vpop.permute.xlu0 %817
          %v820 = vperm.slane %v798, 1
          %v821 = vmul.f32 %v814, %v820
          %v822 = vmul.f32 %v818, %v820
          %v823 = vadd.f32 %v810, %v821
          %v824 = vadd.f32 %v811, %v822
          %825 = vset.pattern.permute.xlu0 2
          %826 = vperm.xlu0 %825, %v796
          %v827 = vpop.permute.xlu0 %826
          %829 = vset.pattern.permute.xlu0 2
          %830 = vperm.xlu0 %829, %v797
          %v831 = vpop.permute.xlu0 %830
          %v833 = vperm.slane %v798, 2
          %v834 = vmul.f32 %v827, %v833
          %v835 = vmul.f32 %v831, %v833
          %v836 = vadd.f32 %v823, %v834
          %v837 = vadd.f32 %v824, %v835
          %v838 = vld [vmem:[%s2] sm:$0x1]
          %v840 = vperm.slane %v838, 0
          %v842 = vadd.f32 %v836, %v840
          %v843 = vadd.f32 %v837, %v840
          %vm844 = vcmask 261120
          %845 = vst.msk [vmem:[#allocation2] sm:$0xff] %vm844, %v842
          %846 = vst.msk [vmem:[#allocation2 + $0x8] sm:$0xff] %vm844, %v843
        $region104: #{forward.1} parent=99 // pred_fallthru
          _
        %v847 = vld [vmem:[#allocation2] sm:$0xff]
        %v848 = vld [vmem:[#allocation2 + $0x8] sm:$0xff]
        %v849 = vpack.c.bf16 %v848, %v847
        %v850 = vld [vmem:[%s762] sm:$0x1]
        %v851 = vld [vmem:[%s750] sm:$0xf]
        %v852 = vld [vmem:[%s750 + $0x4] sm:$0xf]
        %v853 = vld [vmem:[%s750 + $0x8] sm:$0xf]
        %v854 = vld [vmem:[%s750 + $0xc] sm:$0xf]
        %v855 = vld [vmem:[%s754] sm:$0x1]
        %v857 = vperm.slane %v855, 0
        %v863 = vunpack.c.l.b16 %v851
        %v864 = vunpack.c.l.b16 %v852
        %v865 = vunpack.c.l.b16 %v853
        %v866 = vunpack.c.l.b16 %v854
        %v867 = vpack.c.b16 %v864, %v863
        %v868 = vpack.c.b16 %v866, %v865
        %vm871 = vcmask 261120
        %v873 = vsel %vm871, %v849, 0
        %875 = vmatpush.bf16.msra.mxu0 0
        %876 = vmatpush.bf16.msra.mxu0 0
        %877 = vmatpush.bf16.msra.mxu0 0
        %878 = vmatpush.bf16.msra.mxu0 0
        %879 = vmatpush.bf16.msra.mxu0 0
        %880 = vmatpush.bf16.msra.mxu0 0
        %881 = vmatpush.bf16.msra.mxu0 %v868
        %882 = vmatpush.bf16.msra.mxu0 %v867
        %883 = vmatmul.bf16.gmra.mxu0 %v873
        %v884 = vpop.f32.mrf.mxu0
        %v885 = vadd.f32 %v857, %v884
        %v886 = vpop.f32.mrf.mxu0
        %v887 = vadd.f32 %v857, %v886
        %888 = vdwg.mxu0
        %s889 = scalar_lea.vmem %s750, 64
        %v890 = vld [vmem:[%s889] sm:$0xf]
        %v891 = vld [vmem:[%s889 + $0x4] sm:$0xf]
        %v892 = vld [vmem:[%s889 + $0x8] sm:$0xf]
        %v893 = vld [vmem:[%s889 + $0xc] sm:$0xf]
        %s894 = scalar_lea.vmem %s754, 4
        %v895 = vld [vmem:[%s894] sm:$0x1]
        %v897 = vperm.slane %v895, 0
        %v903 = vunpack.c.l.b16 %v890
        %v904 = vunpack.c.l.b16 %v891
        %v905 = vunpack.c.l.b16 %v892
        %v906 = vunpack.c.l.b16 %v893
        %v907 = vpack.c.b16 %v904, %v903
        %v908 = vpack.c.b16 %v906, %v905
        %911 = vmatpush.bf16.msra.mxu0 0
        %912 = vmatpush.bf16.msra.mxu0 0
        %913 = vmatpush.bf16.msra.mxu0 0
        %914 = vmatpush.bf16.msra.mxu0 0
        %915 = vmatpush.bf16.msra.mxu0 0
        %916 = vmatpush.bf16.msra.mxu0 0
        %917 = vmatpush.bf16.msra.mxu0 %v908
        %918 = vmatpush.bf16.msra.mxu0 %v907
        %919 = vmatmul.bf16.gmra.mxu0 %v873
        %v920 = vpop.f32.mrf.mxu0
        %v921 = vadd.f32 %v897, %v920
        %v922 = vpop.f32.mrf.mxu0
        %v923 = vadd.f32 %v897, %v922
        %924 = vdwg.mxu0
        %s925 = scalar_lea.vmem %s750, 128
        %v926 = vld [vmem:[%s925] sm:$0xf]
        %v927 = vld [vmem:[%s925 + $0x4] sm:$0xf]
        %v928 = vld [vmem:[%s925 + $0x8] sm:$0xf]
        %v929 = vld [vmem:[%s925 + $0xc] sm:$0xf]
        %s930 = scalar_lea.vmem %s754, 8
        %v931 = vld [vmem:[%s930] sm:$0x1]
        %v933 = vperm.slane %v931, 0
        %v939 = vunpack.c.l.b16 %v926
        %v940 = vunpack.c.l.b16 %v927
        %v941 = vunpack.c.l.b16 %v928
        %v942 = vunpack.c.l.b16 %v929
        %v943 = vpack.c.b16 %v940, %v939
        %v944 = vpack.c.b16 %v942, %v941
        %947 = vmatpush.bf16.msra.mxu0 0
        %948 = vmatpush.bf16.msra.mxu0 0
        %949 = vmatpush.bf16.msra.mxu0 0
        %950 = vmatpush.bf16.msra.mxu0 0
        %951 = vmatpush.bf16.msra.mxu0 0
        %952 = vmatpush.bf16.msra.mxu0 0
        %953 = vmatpush.bf16.msra.mxu0 %v944
        %954 = vmatpush.bf16.msra.mxu0 %v943
        %955 = vmatmul.bf16.gmra.mxu0 %v873
        %v956 = vpop.f32.mrf.mxu0
        %v957 = vadd.f32 %v933, %v956
        %v958 = vpop.f32.mrf.mxu0
        %v959 = vadd.f32 %v933, %v958
        %960 = vdwg.mxu0
        %v961 = vpack.c.bf16 %v885, %v885
        %v962 = vpack.c.bf16 %v887, %v887
        %v963 = vpack.c.bf16 %v921, %v921
        %v964 = vpack.c.bf16 %v923, %v923
        %v965 = vpack.c.bf16 %v957, %v957
        %v966 = vpack.c.bf16 %v959, %v959
        %vm967 = vcmask 64512
        %v969 = vsel %vm967, %v961, 0
        %v972 = vsel %vm967, %v963, 0
        %974 = vmatpush.bf16.xpose.msra.mxu0 0
        %975 = vmatpush.bf16.xpose.msra.mxu0 0
        %976 = vmatpush.bf16.xpose.msra.mxu0 0
        %977 = vmatpush.bf16.xpose.msra.mxu0 0
        %978 = vmatpush.bf16.xpose.msra.mxu0 0
        %979 = vmatpush.bf16.xpose.msra.mxu0 0
        %980 = vmatpush.bf16.xpose.msra.mxu0 0
        %981 = vmatpush.bf16.xpose.msra.mxu0 %v972
        %982 = vmatmul.bf16.gmra.mxu0 %v969
        %v983 = vpop.f32.mrf.mxu0
        %v984 = vadd.f32 0.0, %v983
        %v985 = vpop.f32.mrf.mxu0
        %986 = vdwg.mxu0
        %v988 = vsel %vm967, %v962, 0
        %v991 = vsel %vm967, %v964, 0
        %993 = vmatpush.bf16.xpose.msra.mxu0 0
        %994 = vmatpush.bf16.xpose.msra.mxu0 0
        %995 = vmatpush.bf16.xpose.msra.mxu0 0
        %996 = vmatpush.bf16.xpose.msra.mxu0 0
        %997 = vmatpush.bf16.xpose.msra.mxu0 0
        %998 = vmatpush.bf16.xpose.msra.mxu0 0
        %999 = vmatpush.bf16.xpose.msra.mxu0 0
        %1000 = vmatpush.bf16.xpose.msra.mxu0 %v991
        %1001 = vmatmul.bf16.gmra.mxu0 %v988
        %v1002 = vpop.f32.mrf.mxu0
        %v1003 = vadd.f32 0.0, %v1002
        %v1004 = vpop.f32.mrf.mxu0
        %1005 = vdwg.mxu0
        %v1006 = vsel %vm967, %v984, -inf
        %1007 = vmax.xlane.f32.xlu0 %v1006
        %v1008 = vpop.xlane.xlu0 %1007
        %v1009 = vsel %vm967, %v1003, -inf
        %1010 = vmax.xlane.f32.xlu0 %v1009
        %v1011 = vpop.xlane.xlu0 %1010
        %v1012 = vsub.f32 %v984, %v1008
        %v1013 = vsub.f32 %v1003, %v1011
        %v1014 = vmul.f32 %v1012, 1.442695
        %v1015 = vpow.pop %v1014
        %v1016 = vmul.f32 %v1013, 1.442695
        %v1017 = vpow.pop %v1016
        %v1018 = vsel %vm967, %v1015, 0.0
        %1019 = vadd.xlane.f32.xlu0 %v1018
        %v1020 = vpop.xlane.xlu0 %1019
        %v1021 = vsel %vm967, %v1017, 0.0
        %1022 = vadd.xlane.f32.xlu0 %v1021
        %v1023 = vpop.xlane.xlu0 %1022
        %v1024 = vrcp.pop %v1020
        %v1025 = vrcp.pop %v1023
        %v1026 = vmul.f32 %v1015, %v1024
        %v1027 = vmul.f32 %v1017, %v1025
        %v1028 = vpack.c.bf16 %v1026, %v1026
        %v1029 = vpack.c.bf16 %v1027, %v1027
        %v1031 = vsel %vm967, %v1028, 0
        %vm1033 = vcmask 1043456
        %v1035 = vsel %vm1033, %v965, 0
        %1037 = vmatpush.bf16.msra.mxu0 0
        %1038 = vmatpush.bf16.msra.mxu0 0
        %1039 = vmatpush.bf16.msra.mxu0 0
        %1040 = vmatpush.bf16.msra.mxu0 0
        %1041 = vmatpush.bf16.msra.mxu0 0
        %1042 = vmatpush.bf16.msra.mxu0 0
        %1043 = vmatpush.bf16.msra.mxu0 0
        %1044 = vmatpush.bf16.msra.mxu0 %v1035
        %1045 = vmatmul.bf16.gmra.mxu0 %v1031
        %v1046 = vpop.f32.mrf.mxu0
        %v1047 = vadd.f32 0.0, %v1046
        %v1048 = vpop.f32.mrf.mxu0
        %1049 = vdwg.mxu0
        %v1051 = vsel %vm967, %v1029, 0
        %v1054 = vsel %vm1033, %v966, 0
        %1056 = vmatpush.bf16.msra.mxu0 0
        %1057 = vmatpush.bf16.msra.mxu0 0
        %1058 = vmatpush.bf16.msra.mxu0 0
        %1059 = vmatpush.bf16.msra.mxu0 0
        %1060 = vmatpush.bf16.msra.mxu0 0
        %1061 = vmatpush.bf16.msra.mxu0 0
        %1062 = vmatpush.bf16.msra.mxu0 0
        %1063 = vmatpush.bf16.msra.mxu0 %v1054
        %1064 = vmatmul.bf16.gmra.mxu0 %v1051
        %v1065 = vpop.f32.mrf.mxu0
        %v1066 = vadd.f32 0.0, %v1065
        %v1067 = vpop.f32.mrf.mxu0
        %1068 = vdwg.mxu0
        %v1069 = vpack.c.bf16 %v1066, %v1047
        %v1070 = vld [vmem:[%s759] sm:$0xf]
        %v1072 = vsel %vm967, %v1069, 0
        %v1075 = vsel %vm1033, %v1070, 0
        %1077 = vmatpush.bf16.msra.mxu0 0
        %1078 = vmatpush.bf16.msra.mxu0 0
        %1079 = vmatpush.bf16.msra.mxu0 0
        %1080 = vmatpush.bf16.msra.mxu0 0
        %1081 = vmatpush.bf16.msra.mxu0 0
        %1082 = vmatpush.bf16.msra.mxu0 0
        %1083 = vmatpush.bf16.msra.mxu0 0
        %1084 = vmatpush.bf16.msra.mxu0 %v1075
        %1085 = vmatmul.bf16.gmra.mxu0 %v1072
        %v1086 = vpop.f32.mrf.mxu0
        %v1087 = vadd.f32 0.0, %v1086
        %v1088 = vpop.f32.mrf.mxu0
        %v1089 = vadd.f32 0.0, %v1088
        %1090 = vdwg.mxu0
        %v1092 = vperm.slane %v850, 0
        %v1094 = vadd.f32 %v1092, %v1087
        %v1095 = vadd.f32 %v1092, %v1089
        %s1096 = scalar_lea.vmem %s750, 16
        %v1097 = vld [vmem:[%s1096] sm:$0xf]
        %v1098 = vld [vmem:[%s1096 + $0x4] sm:$0xf]
        %v1099 = vld [vmem:[%s1096 + $0x8] sm:$0xf]
        %v1100 = vld [vmem:[%s1096 + $0xc] sm:$0xf]
        %s1101 = scalar_lea.vmem %s754, 1
        %v1102 = vld [vmem:[%s1101] sm:$0x1]
        %v1104 = vperm.slane %v1102, 0
        %v1110 = vunpack.c.l.b16 %v1097
        %v1111 = vunpack.c.l.b16 %v1098
        %v1112 = vunpack.c.l.b16 %v1099
        %v1113 = vunpack.c.l.b16 %v1100
        %v1114 = vpack.c.b16 %v1111, %v1110
        %v1115 = vpack.c.b16 %v1113, %v1112
        %1118 = vmatpush.bf16.msra.mxu0 0
        %1119 = vmatpush.bf16.msra.mxu0 0
        %1120 = vmatpush.bf16.msra.mxu0 0
        %1121 = vmatpush.bf16.msra.mxu0 0
        %1122 = vmatpush.bf16.msra.mxu0 0
        %1123 = vmatpush.bf16.msra.mxu0 0
        %1124 = vmatpush.bf16.msra.mxu0 %v1115
        %1125 = vmatpush.bf16.msra.mxu0 %v1114
        %1126 = vmatmul.bf16.gmra.mxu0 %v873
        %v1127 = vpop.f32.mrf.mxu0
        %v1128 = vadd.f32 %v1104, %v1127
        %v1129 = vpop.f32.mrf.mxu0
        %v1130 = vadd.f32 %v1104, %v1129
        %1131 = vdwg.mxu0
        %s1132 = scalar_lea.vmem %s750, 80
        %v1133 = vld [vmem:[%s1132] sm:$0xf]
        %v1134 = vld [vmem:[%s1132 + $0x4] sm:$0xf]
        %v1135 = vld [vmem:[%s1132 + $0x8] sm:$0xf]
        %v1136 = vld [vmem:[%s1132 + $0xc] sm:$0xf]
        %s1137 = scalar_lea.vmem %s754, 5
        %v1138 = vld [vmem:[%s1137] sm:$0x1]
        %v1140 = vperm.slane %v1138, 0
        %v1146 = vunpack.c.l.b16 %v1133
        %v1147 = vunpack.c.l.b16 %v1134
        %v1148 = vunpack.c.l.b16 %v1135
        %v1149 = vunpack.c.l.b16 %v1136
        %v1150 = vpack.c.b16 %v1147, %v1146
        %v1151 = vpack.c.b16 %v1149, %v1148
        %1154 = vmatpush.bf16.msra.mxu0 0
        %1155 = vmatpush.bf16.msra.mxu0 0
        %1156 = vmatpush.bf16.msra.mxu0 0
        %1157 = vmatpush.bf16.msra.mxu0 0
        %1158 = vmatpush.bf16.msra.mxu0 0
        %1159 = vmatpush.bf16.msra.mxu0 0
        %1160 = vmatpush.bf16.msra.mxu0 %v1151
        %1161 = vmatpush.bf16.msra.mxu0 %v1150
        %1162 = vmatmul.bf16.gmra.mxu0 %v873
        %v1163 = vpop.f32.mrf.mxu0
        %v1164 = vadd.f32 %v1140, %v1163
        %v1165 = vpop.f32.mrf.mxu0
        %v1166 = vadd.f32 %v1140, %v1165
        %1167 = vdwg.mxu0
        %s1168 = scalar_lea.vmem %s750, 144
        %v1169 = vld [vmem:[%s1168] sm:$0xf]
        %v1170 = vld [vmem:[%s1168 + $0x4] sm:$0xf]
        %v1171 = vld [vmem:[%s1168 + $0x8] sm:$0xf]
        %v1172 = vld [vmem:[%s1168 + $0xc] sm:$0xf]
        %s1173 = scalar_lea.vmem %s754, 9
        %v1174 = vld [vmem:[%s1173] sm:$0x1]
        %v1176 = vperm.slane %v1174, 0
        %v1182 = vunpack.c.l.b16 %v1169
        %v1183 = vunpack.c.l.b16 %v1170
        %v1184 = vunpack.c.l.b16 %v1171
        %v1185 = vunpack.c.l.b16 %v1172
        %v1186 = vpack.c.b16 %v1183, %v1182
        %v1187 = vpack.c.b16 %v1185, %v1184
        %1190 = vmatpush.bf16.msra.mxu0 0
        %1191 = vmatpush.bf16.msra.mxu0 0
        %1192 = vmatpush.bf16.msra.mxu0 0
        %1193 = vmatpush.bf16.msra.mxu0 0
        %1194 = vmatpush.bf16.msra.mxu0 0
        %1195 = vmatpush.bf16.msra.mxu0 0
        %1196 = vmatpush.bf16.msra.mxu0 %v1187
        %1197 = vmatpush.bf16.msra.mxu0 %v1186
        %1198 = vmatmul.bf16.gmra.mxu0 %v873
        %v1199 = vpop.f32.mrf.mxu0
        %v1200 = vadd.f32 %v1176, %v1199
        %v1201 = vpop.f32.mrf.mxu0
        %v1202 = vadd.f32 %v1176, %v1201
        %1203 = vdwg.mxu0
        %v1204 = vpack.c.bf16 %v1128, %v1128
        %v1205 = vpack.c.bf16 %v1130, %v1130
        %v1206 = vpack.c.bf16 %v1164, %v1164
        %v1207 = vpack.c.bf16 %v1166, %v1166
        %v1208 = vpack.c.bf16 %v1200, %v1200
        %v1209 = vpack.c.bf16 %v1202, %v1202
        %v1211 = vsel %vm967, %v1204, 0
        %v1214 = vsel %vm967, %v1206, 0
        %1216 = vmatpush.bf16.xpose.msra.mxu0 0
        %1217 = vmatpush.bf16.xpose.msra.mxu0 0
        %1218 = vmatpush.bf16.xpose.msra.mxu0 0
        %1219 = vmatpush.bf16.xpose.msra.mxu0 0
        %1220 = vmatpush.bf16.xpose.msra.mxu0 0
        %1221 = vmatpush.bf16.xpose.msra.mxu0 0
        %1222 = vmatpush.bf16.xpose.msra.mxu0 0
        %1223 = vmatpush.bf16.xpose.msra.mxu0 %v1214
        %1224 = vmatmul.bf16.gmra.mxu0 %v1211
        %v1225 = vpop.f32.mrf.mxu0
        %v1226 = vadd.f32 0.0, %v1225
        %v1227 = vpop.f32.mrf.mxu0
        %1228 = vdwg.mxu0
        %v1230 = vsel %vm967, %v1205, 0
        %v1233 = vsel %vm967, %v1207, 0
        %1235 = vmatpush.bf16.xpose.msra.mxu0 0
        %1236 = vmatpush.bf16.xpose.msra.mxu0 0
        %1237 = vmatpush.bf16.xpose.msra.mxu0 0
        %1238 = vmatpush.bf16.xpose.msra.mxu0 0
        %1239 = vmatpush.bf16.xpose.msra.mxu0 0
        %1240 = vmatpush.bf16.xpose.msra.mxu0 0
        %1241 = vmatpush.bf16.xpose.msra.mxu0 0
        %1242 = vmatpush.bf16.xpose.msra.mxu0 %v1233
        %1243 = vmatmul.bf16.gmra.mxu0 %v1230
        %v1244 = vpop.f32.mrf.mxu0
        %v1245 = vadd.f32 0.0, %v1244
        %v1246 = vpop.f32.mrf.mxu0
        %1247 = vdwg.mxu0
        %v1248 = vsel %vm967, %v1226, -inf
        %1249 = vmax.xlane.f32.xlu0 %v1248
        %v1250 = vpop.xlane.xlu0 %1249
        %v1251 = vsel %vm967, %v1245, -inf
        %1252 = vmax.xlane.f32.xlu0 %v1251
        %v1253 = vpop.xlane.xlu0 %1252
        %v1254 = vsub.f32 %v1226, %v1250
        %v1255 = vsub.f32 %v1245, %v1253
        %v1256 = vmul.f32 %v1254, 1.442695
        %v1257 = vpow.pop %v1256
        %v1258 = vmul.f32 %v1255, 1.442695
        %v1259 = vpow.pop %v1258
        %v1260 = vsel %vm967, %v1257, 0.0
        %1261 = vadd.xlane.f32.xlu0 %v1260
        %v1262 = vpop.xlane.xlu0 %1261
        %v1263 = vsel %vm967, %v1259, 0.0
        %1264 = vadd.xlane.f32.xlu0 %v1263
        %v1265 = vpop.xlane.xlu0 %1264
        %v1266 = vrcp.pop %v1262
        %v1267 = vrcp.pop %v1265
        %v1268 = vmul.f32 %v1257, %v1266
        %v1269 = vmul.f32 %v1259, %v1267
        %v1270 = vpack.c.bf16 %v1268, %v1268
        %v1271 = vpack.c.bf16 %v1269, %v1269
        %v1273 = vsel %vm967, %v1270, 0
        %v1276 = vsel %vm1033, %v1208, 0
        %1278 = vmatpush.bf16.msra.mxu0 0
        %1279 = vmatpush.bf16.msra.mxu0 0
        %1280 = vmatpush.bf16.msra.mxu0 0
        %1281 = vmatpush.bf16.msra.mxu0 0
        %1282 = vmatpush.bf16.msra.mxu0 0
        %1283 = vmatpush.bf16.msra.mxu0 0
        %1284 = vmatpush.bf16.msra.mxu0 0
        %1285 = vmatpush.bf16.msra.mxu0 %v1276
        %1286 = vmatmul.bf16.gmra.mxu0 %v1273
        %v1287 = vpop.f32.mrf.mxu0
        %v1288 = vadd.f32 0.0, %v1287
        %v1289 = vpop.f32.mrf.mxu0
        %1290 = vdwg.mxu0
        %v1292 = vsel %vm967, %v1271, 0
        %v1295 = vsel %vm1033, %v1209, 0
        %1297 = vmatpush.bf16.msra.mxu0 0
        %1298 = vmatpush.bf16.msra.mxu0 0
        %1299 = vmatpush.bf16.msra.mxu0 0
        %1300 = vmatpush.bf16.msra.mxu0 0
        %1301 = vmatpush.bf16.msra.mxu0 0
        %1302 = vmatpush.bf16.msra.mxu0 0
        %1303 = vmatpush.bf16.msra.mxu0 0
        %1304 = vmatpush.bf16.msra.mxu0 %v1295
        %1305 = vmatmul.bf16.gmra.mxu0 %v1292
        %v1306 = vpop.f32.mrf.mxu0
        %v1307 = vadd.f32 0.0, %v1306
        %v1308 = vpop.f32.mrf.mxu0
        %1309 = vdwg.mxu0
        %v1310 = vpack.c.bf16 %v1307, %v1288
        %s1311 = scalar_lea.vmem %s759, 4
        %v1312 = vld [vmem:[%s1311] sm:$0xf]
        %v1314 = vsel %vm967, %v1310, 0
        %v1317 = vsel %vm1033, %v1312, 0
        %1319 = vmatpush.bf16.msra.mxu0 0
        %1320 = vmatpush.bf16.msra.mxu0 0
        %1321 = vmatpush.bf16.msra.mxu0 0
        %1322 = vmatpush.bf16.msra.mxu0 0
        %1323 = vmatpush.bf16.msra.mxu0 0
        %1324 = vmatpush.bf16.msra.mxu0 0
        %1325 = vmatpush.bf16.msra.mxu0 0
        %1326 = vmatpush.bf16.msra.mxu0 %v1317
        %1327 = vmatmul.bf16.gmra.mxu0 %v1314
        %v1328 = vpop.f32.mrf.mxu0
        %v1329 = vadd.f32 0.0, %v1328
        %v1330 = vpop.f32.mrf.mxu0
        %v1331 = vadd.f32 0.0, %v1330
        %1332 = vdwg.mxu0
        %v1333 = vadd.f32 %v1094, %v1329
        %v1334 = vadd.f32 %v1095, %v1331
        %s1335 = scalar_lea.vmem %s750, 32
        %v1336 = vld [vmem:[%s1335] sm:$0xf]
        %v1337 = vld [vmem:[%s1335 + $0x4] sm:$0xf]
        %v1338 = vld [vmem:[%s1335 + $0x8] sm:$0xf]
        %v1339 = vld [vmem:[%s1335 + $0xc] sm:$0xf]
        %s1340 = scalar_lea.vmem %s754, 2
        %v1341 = vld [vmem:[%s1340] sm:$0x1]
        %v1343 = vperm.slane %v1341, 0
        %v1349 = vunpack.c.l.b16 %v1336
        %v1350 = vunpack.c.l.b16 %v1337
        %v1351 = vunpack.c.l.b16 %v1338
        %v1352 = vunpack.c.l.b16 %v1339
        %v1353 = vpack.c.b16 %v1350, %v1349
        %v1354 = vpack.c.b16 %v1352, %v1351
        %1357 = vmatpush.bf16.msra.mxu0 0
        %1358 = vmatpush.bf16.msra.mxu0 0
        %1359 = vmatpush.bf16.msra.mxu0 0
        %1360 = vmatpush.bf16.msra.mxu0 0
        %1361 = vmatpush.bf16.msra.mxu0 0
        %1362 = vmatpush.bf16.msra.mxu0 0
        %1363 = vmatpush.bf16.msra.mxu0 %v1354
        %1364 = vmatpush.bf16.msra.mxu0 %v1353
        %1365 = vmatmul.bf16.gmra.mxu0 %v873
        %v1366 = vpop.f32.mrf.mxu0
        %v1367 = vadd.f32 %v1343, %v1366
        %v1368 = vpop.f32.mrf.mxu0
        %v1369 = vadd.f32 %v1343, %v1368
        %1370 = vdwg.mxu0
        %s1371 = scalar_lea.vmem %s750, 96
        %v1372 = vld [vmem:[%s1371] sm:$0xf]
        %v1373 = vld [vmem:[%s1371 + $0x4] sm:$0xf]
        %v1374 = vld [vmem:[%s1371 + $0x8] sm:$0xf]
        %v1375 = vld [vmem:[%s1371 + $0xc] sm:$0xf]
        %s1376 = scalar_lea.vmem %s754, 6
        %v1377 = vld [vmem:[%s1376] sm:$0x1]
        %v1379 = vperm.slane %v1377, 0
        %v1385 = vunpack.c.l.b16 %v1372
        %v1386 = vunpack.c.l.b16 %v1373
        %v1387 = vunpack.c.l.b16 %v1374
        %v1388 = vunpack.c.l.b16 %v1375
        %v1389 = vpack.c.b16 %v1386, %v1385
        %v1390 = vpack.c.b16 %v1388, %v1387
        %1393 = vmatpush.bf16.msra.mxu0 0
        %1394 = vmatpush.bf16.msra.mxu0 0
        %1395 = vmatpush.bf16.msra.mxu0 0
        %1396 = vmatpush.bf16.msra.mxu0 0
        %1397 = vmatpush.bf16.msra.mxu0 0
        %1398 = vmatpush.bf16.msra.mxu0 0
        %1399 = vmatpush.bf16.msra.mxu0 %v1390
        %1400 = vmatpush.bf16.msra.mxu0 %v1389
        %1401 = vmatmul.bf16.gmra.mxu0 %v873
        %v1402 = vpop.f32.mrf.mxu0
        %v1403 = vadd.f32 %v1379, %v1402
        %v1404 = vpop.f32.mrf.mxu0
        %v1405 = vadd.f32 %v1379, %v1404
        %1406 = vdwg.mxu0
        %s1407 = scalar_lea.vmem %s750, 160
        %v1408 = vld [vmem:[%s1407] sm:$0xf]
        %v1409 = vld [vmem:[%s1407 + $0x4] sm:$0xf]
        %v1410 = vld [vmem:[%s1407 + $0x8] sm:$0xf]
        %v1411 = vld [vmem:[%s1407 + $0xc] sm:$0xf]
        %s1412 = scalar_lea.vmem %s754, 10
        %v1413 = vld [vmem:[%s1412] sm:$0x1]
        %v1415 = vperm.slane %v1413, 0
        %v1421 = vunpack.c.l.b16 %v1408
        %v1422 = vunpack.c.l.b16 %v1409
        %v1423 = vunpack.c.l.b16 %v1410
        %v1424 = vunpack.c.l.b16 %v1411
        %v1425 = vpack.c.b16 %v1422, %v1421
        %v1426 = vpack.c.b16 %v1424, %v1423
        %1429 = vmatpush.bf16.msra.mxu0 0
        %1430 = vmatpush.bf16.msra.mxu0 0
        %1431 = vmatpush.bf16.msra.mxu0 0
        %1432 = vmatpush.bf16.msra.mxu0 0
        %1433 = vmatpush.bf16.msra.mxu0 0
        %1434 = vmatpush.bf16.msra.mxu0 0
        %1435 = vmatpush.bf16.msra.mxu0 %v1426
        %1436 = vmatpush.bf16.msra.mxu0 %v1425
        %1437 = vmatmul.bf16.gmra.mxu0 %v873
        %v1438 = vpop.f32.mrf.mxu0
        %v1439 = vadd.f32 %v1415, %v1438
        %v1440 = vpop.f32.mrf.mxu0
        %v1441 = vadd.f32 %v1415, %v1440
        %1442 = vdwg.mxu0
        %v1443 = vpack.c.bf16 %v1367, %v1367
        %v1444 = vpack.c.bf16 %v1369, %v1369
        %v1445 = vpack.c.bf16 %v1403, %v1403
        %v1446 = vpack.c.bf16 %v1405, %v1405
        %v1447 = vpack.c.bf16 %v1439, %v1439
        %v1448 = vpack.c.bf16 %v1441, %v1441
        %v1450 = vsel %vm967, %v1443, 0
        %v1453 = vsel %vm967, %v1445, 0
        %1455 = vmatpush.bf16.xpose.msra.mxu0 0
        %1456 = vmatpush.bf16.xpose.msra.mxu0 0
        %1457 = vmatpush.bf16.xpose.msra.mxu0 0
        %1458 = vmatpush.bf16.xpose.msra.mxu0 0
        %1459 = vmatpush.bf16.xpose.msra.mxu0 0
        %1460 = vmatpush.bf16.xpose.msra.mxu0 0
        %1461 = vmatpush.bf16.xpose.msra.mxu0 0
        %1462 = vmatpush.bf16.xpose.msra.mxu0 %v1453
        %1463 = vmatmul.bf16.gmra.mxu0 %v1450
        %v1464 = vpop.f32.mrf.mxu0
        %v1465 = vadd.f32 0.0, %v1464
        %v1466 = vpop.f32.mrf.mxu0
        %1467 = vdwg.mxu0
        %v1469 = vsel %vm967, %v1444, 0
        %v1472 = vsel %vm967, %v1446, 0
        %1474 = vmatpush.bf16.xpose.msra.mxu0 0
        %1475 = vmatpush.bf16.xpose.msra.mxu0 0
        %1476 = vmatpush.bf16.xpose.msra.mxu0 0
        %1477 = vmatpush.bf16.xpose.msra.mxu0 0
        %1478 = vmatpush.bf16.xpose.msra.mxu0 0
        %1479 = vmatpush.bf16.xpose.msra.mxu0 0
        %1480 = vmatpush.bf16.xpose.msra.mxu0 0
        %1481 = vmatpush.bf16.xpose.msra.mxu0 %v1472
        %1482 = vmatmul.bf16.gmra.mxu0 %v1469
        %v1483 = vpop.f32.mrf.mxu0
        %v1484 = vadd.f32 0.0, %v1483
        %v1485 = vpop.f32.mrf.mxu0
        %1486 = vdwg.mxu0
        %v1487 = vsel %vm967, %v1465, -inf
        %1488 = vmax.xlane.f32.xlu0 %v1487
        %v1489 = vpop.xlane.xlu0 %1488
        %v1490 = vsel %vm967, %v1484, -inf
        %1491 = vmax.xlane.f32.xlu0 %v1490
        %v1492 = vpop.xlane.xlu0 %1491
        %v1493 = vsub.f32 %v1465, %v1489
        %v1494 = vsub.f32 %v1484, %v1492
        %v1495 = vmul.f32 %v1493, 1.442695
        %v1496 = vpow.pop %v1495
        %v1497 = vmul.f32 %v1494, 1.442695
        %v1498 = vpow.pop %v1497
        %v1499 = vsel %vm967, %v1496, 0.0
        %1500 = vadd.xlane.f32.xlu0 %v1499
        %v1501 = vpop.xlane.xlu0 %1500
        %v1502 = vsel %vm967, %v1498, 0.0
        %1503 = vadd.xlane.f32.xlu0 %v1502
        %v1504 = vpop.xlane.xlu0 %1503
        %v1505 = vrcp.pop %v1501
        %v1506 = vrcp.pop %v1504
        %v1507 = vmul.f32 %v1496, %v1505
        %v1508 = vmul.f32 %v1498, %v1506
        %v1509 = vpack.c.bf16 %v1507, %v1507
        %v1510 = vpack.c.bf16 %v1508, %v1508
        %v1512 = vsel %vm967, %v1509, 0
        %v1515 = vsel %vm1033, %v1447, 0
        %1517 = vmatpush.bf16.msra.mxu0 0
        %1518 = vmatpush.bf16.msra.mxu0 0
        %1519 = vmatpush.bf16.msra.mxu0 0
        %1520 = vmatpush.bf16.msra.mxu0 0
        %1521 = vmatpush.bf16.msra.mxu0 0
        %1522 = vmatpush.bf16.msra.mxu0 0
        %1523 = vmatpush.bf16.msra.mxu0 0
        %1524 = vmatpush.bf16.msra.mxu0 %v1515
        %1525 = vmatmul.bf16.gmra.mxu0 %v1512
        %v1526 = vpop.f32.mrf.mxu0
        %v1527 = vadd.f32 0.0, %v1526
        %v1528 = vpop.f32.mrf.mxu0
        %1529 = vdwg.mxu0
        %v1531 = vsel %vm967, %v1510, 0
        %v1534 = vsel %vm1033, %v1448, 0
        %1536 = vmatpush.bf16.msra.mxu0 0
        %1537 = vmatpush.bf16.msra.mxu0 0
        %1538 = vmatpush.bf16.msra.mxu0 0
        %1539 = vmatpush.bf16.msra.mxu0 0
        %1540 = vmatpush.bf16.msra.mxu0 0
        %1541 = vmatpush.bf16.msra.mxu0 0
        %1542 = vmatpush.bf16.msra.mxu0 0
        %1543 = vmatpush.bf16.msra.mxu0 %v1534
        %1544 = vmatmul.bf16.gmra.mxu0 %v1531
        %v1545 = vpop.f32.mrf.mxu0
        %v1546 = vadd.f32 0.0, %v1545
        %v1547 = vpop.f32.mrf.mxu0
        %1548 = vdwg.mxu0
        %v1549 = vpack.c.bf16 %v1546, %v1527
        %s1550 = scalar_lea.vmem %s759, 8
        %v1551 = vld [vmem:[%s1550] sm:$0xf]
        %v1553 = vsel %vm967, %v1549, 0
        %v1556 = vsel %vm1033, %v1551, 0
        %1558 = vmatpush.bf16.msra.mxu0 0
        %1559 = vmatpush.bf16.msra.mxu0 0
        %1560 = vmatpush.bf16.msra.mxu0 0
        %1561 = vmatpush.bf16.msra.mxu0 0
        %1562 = vmatpush.bf16.msra.mxu0 0
        %1563 = vmatpush.bf16.msra.mxu0 0
        %1564 = vmatpush.bf16.msra.mxu0 0
        %1565 = vmatpush.bf16.msra.mxu0 %v1556
        %1566 = vmatmul.bf16.gmra.mxu0 %v1553
        %v1567 = vpop.f32.mrf.mxu0
        %v1568 = vadd.f32 0.0, %v1567
        %v1569 = vpop.f32.mrf.mxu0
        %v1570 = vadd.f32 0.0, %v1569
        %1571 = vdwg.mxu0
        %v1572 = vadd.f32 %v1333, %v1568
        %v1573 = vadd.f32 %v1334, %v1570
        %s1574 = scalar_lea.vmem %s750, 48
        %v1575 = vld [vmem:[%s1574] sm:$0xf]
        %v1576 = vld [vmem:[%s1574 + $0x4] sm:$0xf]
        %v1577 = vld [vmem:[%s1574 + $0x8] sm:$0xf]
        %v1578 = vld [vmem:[%s1574 + $0xc] sm:$0xf]
        %s1579 = scalar_lea.vmem %s754, 3
        %v1580 = vld [vmem:[%s1579] sm:$0x1]
        %v1582 = vperm.slane %v1580, 0
        %v1588 = vunpack.c.l.b16 %v1575
        %v1589 = vunpack.c.l.b16 %v1576
        %v1590 = vunpack.c.l.b16 %v1577
        %v1591 = vunpack.c.l.b16 %v1578
        %v1592 = vpack.c.b16 %v1589, %v1588
        %v1593 = vpack.c.b16 %v1591, %v1590
        %1596 = vmatpush.bf16.msra.mxu0 0
        %1597 = vmatpush.bf16.msra.mxu0 0
        %1598 = vmatpush.bf16.msra.mxu0 0
        %1599 = vmatpush.bf16.msra.mxu0 0
        %1600 = vmatpush.bf16.msra.mxu0 0
        %1601 = vmatpush.bf16.msra.mxu0 0
        %1602 = vmatpush.bf16.msra.mxu0 %v1593
        %1603 = vmatpush.bf16.msra.mxu0 %v1592
        %1604 = vmatmul.bf16.gmra.mxu0 %v873
        %v1605 = vpop.f32.mrf.mxu0
        %v1606 = vadd.f32 %v1582, %v1605
        %v1607 = vpop.f32.mrf.mxu0
        %v1608 = vadd.f32 %v1582, %v1607
        %1609 = vdwg.mxu0
        %s1610 = scalar_lea.vmem %s750, 112
        %v1611 = vld [vmem:[%s1610] sm:$0xf]
        %v1612 = vld [vmem:[%s1610 + $0x4] sm:$0xf]
        %v1613 = vld [vmem:[%s1610 + $0x8] sm:$0xf]
        %v1614 = vld [vmem:[%s1610 + $0xc] sm:$0xf]
        %s1615 = scalar_lea.vmem %s754, 7
        %v1616 = vld [vmem:[%s1615] sm:$0x1]
        %v1618 = vperm.slane %v1616, 0
        %v1624 = vunpack.c.l.b16 %v1611
        %v1625 = vunpack.c.l.b16 %v1612
        %v1626 = vunpack.c.l.b16 %v1613
        %v1627 = vunpack.c.l.b16 %v1614
        %v1628 = vpack.c.b16 %v1625, %v1624
        %v1629 = vpack.c.b16 %v1627, %v1626
        %1632 = vmatpush.bf16.msra.mxu0 0
        %1633 = vmatpush.bf16.msra.mxu0 0
        %1634 = vmatpush.bf16.msra.mxu0 0
        %1635 = vmatpush.bf16.msra.mxu0 0
        %1636 = vmatpush.bf16.msra.mxu0 0
        %1637 = vmatpush.bf16.msra.mxu0 0
        %1638 = vmatpush.bf16.msra.mxu0 %v1629
        %1639 = vmatpush.bf16.msra.mxu0 %v1628
        %1640 = vmatmul.bf16.gmra.mxu0 %v873
        %v1641 = vpop.f32.mrf.mxu0
        %v1642 = vadd.f32 %v1618, %v1641
        %v1643 = vpop.f32.mrf.mxu0
        %v1644 = vadd.f32 %v1618, %v1643
        %1645 = vdwg.mxu0
        %s1646 = scalar_lea.vmem %s750, 176
        %v1647 = vld [vmem:[%s1646] sm:$0xf]
        %v1648 = vld [vmem:[%s1646 + $0x4] sm:$0xf]
        %v1649 = vld [vmem:[%s1646 + $0x8] sm:$0xf]
        %v1650 = vld [vmem:[%s1646 + $0xc] sm:$0xf]
        %s1651 = scalar_lea.vmem %s754, 11
        %v1652 = vld [vmem:[%s1651] sm:$0x1]
        %v1654 = vperm.slane %v1652, 0
        %v1660 = vunpack.c.l.b16 %v1647
        %v1661 = vunpack.c.l.b16 %v1648
        %v1662 = vunpack.c.l.b16 %v1649
        %v1663 = vunpack.c.l.b16 %v1650
        %v1664 = vpack.c.b16 %v1661, %v1660
        %v1665 = vpack.c.b16 %v1663, %v1662
        %1668 = vmatpush.bf16.msra.mxu0 0
        %1669 = vmatpush.bf16.msra.mxu0 0
        %1670 = vmatpush.bf16.msra.mxu0 0
        %1671 = vmatpush.bf16.msra.mxu0 0
        %1672 = vmatpush.bf16.msra.mxu0 0
        %1673 = vmatpush.bf16.msra.mxu0 0
        %1674 = vmatpush.bf16.msra.mxu0 %v1665
        %1675 = vmatpush.bf16.msra.mxu0 %v1664
        %1676 = vmatmul.bf16.gmra.mxu0 %v873
        %v1677 = vpop.f32.mrf.mxu0
        %v1678 = vadd.f32 %v1654, %v1677
        %v1679 = vpop.f32.mrf.mxu0
        %v1680 = vadd.f32 %v1654, %v1679
        %1681 = vdwg.mxu0
        %v1682 = vpack.c.bf16 %v1606, %v1606
        %v1683 = vpack.c.bf16 %v1608, %v1608
        %v1684 = vpack.c.bf16 %v1642, %v1642
        %v1685 = vpack.c.bf16 %v1644, %v1644
        %v1686 = vpack.c.bf16 %v1678, %v1678
        %v1687 = vpack.c.bf16 %v1680, %v1680
        %v1689 = vsel %vm967, %v1682, 0
        %v1692 = vsel %vm967, %v1684, 0
        %1694 = vmatpush.bf16.xpose.msra.mxu0 0
        %1695 = vmatpush.bf16.xpose.msra.mxu0 0
        %1696 = vmatpush.bf16.xpose.msra.mxu0 0
        %1697 = vmatpush.bf16.xpose.msra.mxu0 0
        %1698 = vmatpush.bf16.xpose.msra.mxu0 0
        %1699 = vmatpush.bf16.xpose.msra.mxu0 0
        %1700 = vmatpush.bf16.xpose.msra.mxu0 0
        %1701 = vmatpush.bf16.xpose.msra.mxu0 %v1692
        %1702 = vmatmul.bf16.gmra.mxu0 %v1689
        %v1703 = vpop.f32.mrf.mxu0
        %v1704 = vadd.f32 0.0, %v1703
        %v1705 = vpop.f32.mrf.mxu0
        %1706 = vdwg.mxu0
        %v1708 = vsel %vm967, %v1683, 0
        %v1711 = vsel %vm967, %v1685, 0
        %1713 = vmatpush.bf16.xpose.msra.mxu0 0
        %1714 = vmatpush.bf16.xpose.msra.mxu0 0
        %1715 = vmatpush.bf16.xpose.msra.mxu0 0
        %1716 = vmatpush.bf16.xpose.msra.mxu0 0
        %1717 = vmatpush.bf16.xpose.msra.mxu0 0
        %1718 = vmatpush.bf16.xpose.msra.mxu0 0
        %1719 = vmatpush.bf16.xpose.msra.mxu0 0
        %1720 = vmatpush.bf16.xpose.msra.mxu0 %v1711
        %1721 = vmatmul.bf16.gmra.mxu0 %v1708
        %v1722 = vpop.f32.mrf.mxu0
        %v1723 = vadd.f32 0.0, %v1722
        %v1724 = vpop.f32.mrf.mxu0
        %1725 = vdwg.mxu0
        %v1726 = vsel %vm967, %v1704, -inf
        %1727 = vmax.xlane.f32.xlu0 %v1726
        %v1728 = vpop.xlane.xlu0 %1727
        %v1729 = vsel %vm967, %v1723, -inf
        %1730 = vmax.xlane.f32.xlu0 %v1729
        %v1731 = vpop.xlane.xlu0 %1730
        %v1732 = vsub.f32 %v1704, %v1728
        %v1733 = vsub.f32 %v1723, %v1731
        %v1734 = vmul.f32 %v1732, 1.442695
        %v1735 = vpow.pop %v1734
        %v1736 = vmul.f32 %v1733, 1.442695
        %v1737 = vpow.pop %v1736
        %v1738 = vsel %vm967, %v1735, 0.0
        %1739 = vadd.xlane.f32.xlu0 %v1738
        %v1740 = vpop.xlane.xlu0 %1739
        %v1741 = vsel %vm967, %v1737, 0.0
        %1742 = vadd.xlane.f32.xlu0 %v1741
        %v1743 = vpop.xlane.xlu0 %1742
        %v1744 = vrcp.pop %v1740
        %v1745 = vrcp.pop %v1743
        %v1746 = vmul.f32 %v1735, %v1744
        %v1747 = vmul.f32 %v1737, %v1745
        %v1748 = vpack.c.bf16 %v1746, %v1746
        %v1749 = vpack.c.bf16 %v1747, %v1747
        %v1751 = vsel %vm967, %v1748, 0
        %v1754 = vsel %vm1033, %v1686, 0
        %1756 = vmatpush.bf16.msra.mxu0 0
        %1757 = vmatpush.bf16.msra.mxu0 0
        %1758 = vmatpush.bf16.msra.mxu0 0
        %1759 = vmatpush.bf16.msra.mxu0 0
        %1760 = vmatpush.bf16.msra.mxu0 0
        %1761 = vmatpush.bf16.msra.mxu0 0
        %1762 = vmatpush.bf16.msra.mxu0 0
        %1763 = vmatpush.bf16.msra.mxu0 %v1754
        %1764 = vmatmul.bf16.gmra.mxu0 %v1751
        %v1765 = vpop.f32.mrf.mxu0
        %v1766 = vadd.f32 0.0, %v1765
        %v1767 = vpop.f32.mrf.mxu0
        %1768 = vdwg.mxu0
        %v1770 = vsel %vm967, %v1749, 0
        %v1773 = vsel %vm1033, %v1687, 0
        %1775 = vmatpush.bf16.msra.mxu0 0
        %1776 = vmatpush.bf16.msra.mxu0 0
        %1777 = vmatpush.bf16.msra.mxu0 0
        %1778 = vmatpush.bf16.msra.mxu0 0
        %1779 = vmatpush.bf16.msra.mxu0 0
        %1780 = vmatpush.bf16.msra.mxu0 0
        %1781 = vmatpush.bf16.msra.mxu0 0
        %1782 = vmatpush.bf16.msra.mxu0 %v1773
        %1783 = vmatmul.bf16.gmra.mxu0 %v1770
        %v1784 = vpop.f32.mrf.mxu0
        %v1785 = vadd.f32 0.0, %v1784
        %v1786 = vpop.f32.mrf.mxu0
        %1787 = vdwg.mxu0
        %v1788 = vpack.c.bf16 %v1785, %v1766
        %s1789 = scalar_lea.vmem %s759, 12
        %v1790 = vld [vmem:[%s1789] sm:$0xf]
        %v1792 = vsel %vm967, %v1788, 0
        %v1795 = vsel %vm1033, %v1790, 0
        %1797 = vmatpush.bf16.msra.mxu0 0
        %1798 = vmatpush.bf16.msra.mxu0 0
        %1799 = vmatpush.bf16.msra.mxu0 0
        %1800 = vmatpush.bf16.msra.mxu0 0
        %1801 = vmatpush.bf16.msra.mxu0 0
        %1802 = vmatpush.bf16.msra.mxu0 0
        %1803 = vmatpush.bf16.msra.mxu0 0
        %1804 = vmatpush.bf16.msra.mxu0 %v1795
        %1805 = vmatmul.bf16.gmra.mxu0 %v1792
        %v1806 = vpop.f32.mrf.mxu0
        %v1807 = vadd.f32 0.0, %v1806
        %v1808 = vpop.f32.mrf.mxu0
        %v1809 = vadd.f32 0.0, %v1808
        %1810 = vdwg.mxu0
        %v1811 = vadd.f32 %v1572, %v1807
        %v1812 = vadd.f32 %v1573, %v1809
        %v1813 = vadd.f32 %v1811, %v847
        %v1814 = vadd.f32 %v1812, %v848
        %v1815 = vld [vmem:[%s765] sm:$0x1]
        %v1816 = vld [vmem:[%s768] sm:$0x1]
        %v1817 = vsel %vm871, %v1813, 0.0
        %1818 = vadd.xlane.f32.xlu0 %v1817
        %v1819 = vpop.xlane.xlu0 %1818
        %v1820 = vsel %vm871, %v1814, 0.0
        %1821 = vadd.xlane.f32.xlu0 %v1820
        %v1822 = vpop.xlane.xlu0 %1821
        %v1823 = vrcp.pop 32.0
        %v1824 = vmul.f32 32.0, %v1823
        %v1825 = vsub.f32 1.0, %v1824
        %v1826 = vmul.f32 %v1823, %v1825
        %v1827 = vadd.f32 %v1823, %v1826
        %vm1828 = vweird.f32 %v1823
        %v1829 = vsel %vm1828, %v1823, %v1827
        %v1830 = vmul.f32 %v1819, %v1829
        %v1831 = vmul.f32 %v1822, %v1829
        %v1832 = vsub.f32 %v1813, %v1830
        %v1833 = vsub.f32 %v1814, %v1831
        %v1834 = vmul.f32 %v1832, %v1832
        %v1835 = vmul.f32 %v1833, %v1833
        %v1836 = vsel %vm871, %v1834, 0.0
        %1837 = vadd.xlane.f32.xlu0 %v1836
        %v1838 = vpop.xlane.xlu0 %1837
        %v1839 = vsel %vm871, %v1835, 0.0
        %1840 = vadd.xlane.f32.xlu0 %v1839
        %v1841 = vpop.xlane.xlu0 %1840
        %v1842 = vmul.f32 %v1838, %v1829
        %v1843 = vmul.f32 %v1841, %v1829
        %v1844 = vadd.f32 %v1842, 1e-05
        %v1845 = vadd.f32 %v1843, 1e-05
        %v1846 = vrsqrt.pop %v1844
        %v1847 = vmul.f32 %v1846, %v1844
        %v1848 = vmul.f32 %v1847, %v1846
        %v1849 = vmul.f32 0.5, %v1848
        %v1850 = vsub.f32 1.5, %v1849
        %v1851 = vmul.f32 %v1846, %v1850
        %vm1852 = vweird.f32 %v1844
        %vm1853 = vweird.f32 %v1846
        %vm1854 = vmor %vm1852, %vm1853
        %v1855 = vsel %vm1854, %v1846, %v1851
        %v1856 = vrsqrt.pop %v1845
        %v1857 = vmul.f32 %v1856, %v1845
        %v1858 = vmul.f32 %v1857, %v1856
        %v1859 = vmul.f32 0.5, %v1858
        %v1860 = vsub.f32 1.5, %v1859
        %v1861 = vmul.f32 %v1856, %v1860
        %vm1862 = vweird.f32 %v1845
        %vm1863 = vweird.f32 %v1856
        %vm1864 = vmor %vm1862, %vm1863
        %v1865 = vsel %vm1864, %v1856, %v1861
        %v1866 = vmul.f32 %v1832, %v1855
        %v1867 = vmul.f32 %v1833, %v1865
        %v1869 = vperm.slane %v1815, 0
        %v1871 = vmul.f32 %v1866, %v1869
        %v1872 = vmul.f32 %v1867, %v1869
        %v1874 = vperm.slane %v1816, 0
        %v1876 = vadd.f32 %v1871, %v1874
        %v1877 = vadd.f32 %v1872, %v1874
        %v1878 = vpack.c.bf16 %v1877, %v1876
        %v1879 = vld [vmem:[%s773] sm:$0xf]
        %v1880 = vld [vmem:[%s773 + $0x4] sm:$0xf]
        %v1881 = vld [vmem:[%s773 + $0x8] sm:$0xf]
        %v1882 = vld [vmem:[%s773 + $0xc] sm:$0xf]
        %v1883 = vld [vmem:[%s776] sm:$0x1]
        %v1885 = vperm.slane %v1883, 0
        %v1891 = vunpack.c.l.b16 %v1879
        %v1892 = vunpack.c.l.b16 %v1880
        %v1893 = vunpack.c.l.b16 %v1881
        %v1894 = vunpack.c.l.b16 %v1882
        %v1895 = vpack.c.b16 %v1892, %v1891
        %v1896 = vpack.c.b16 %v1894, %v1893
        %v1900 = vsel %vm871, %v1878, 0
        %1902 = vmatpush.bf16.msra.mxu0 0
        %1903 = vmatpush.bf16.msra.mxu0 0
        %1904 = vmatpush.bf16.msra.mxu0 0
        %1905 = vmatpush.bf16.msra.mxu0 0
        %1906 = vmatpush.bf16.msra.mxu0 0
        %1907 = vmatpush.bf16.msra.mxu0 0
        %1908 = vmatpush.bf16.msra.mxu0 %v1896
        %1909 = vmatpush.bf16.msra.mxu0 %v1895
        %1910 = vmatmul.bf16.gmra.mxu0 %v1900
        %v1911 = vpop.f32.mrf.mxu0
        %v1912 = vadd.f32 %v1885, %v1911
        %v1913 = vpop.f32.mrf.mxu0
        %v1914 = vadd.f32 %v1885, %v1913
        %1915 = vdwg.mxu0
        %v1916 = vmax.f32 %v1912, 0.0
        %v1917 = vmax.f32 %v1914, 0.0
        %v1918 = vpack.c.bf16 %v1917, %v1916
        %v1919 = vld [vmem:[%s781] sm:$0xf]
        %v1920 = vld [vmem:[%s781 + $0x4] sm:$0xf]
        %v1921 = vld [vmem:[%s781 + $0x8] sm:$0xf]
        %v1922 = vld [vmem:[%s781 + $0xc] sm:$0xf]
        %v1923 = vld [vmem:[%s784] sm:$0x1]
        %v1925 = vperm.slane %v1923, 0
        %v1931 = vunpack.c.l.b16 %v1919
        %v1932 = vunpack.c.l.b16 %v1920
        %v1933 = vunpack.c.l.b16 %v1921
        %v1934 = vunpack.c.l.b16 %v1922
        %v1935 = vpack.c.b16 %v1932, %v1931
        %v1936 = vpack.c.b16 %v1934, %v1933
        %v1940 = vsel %vm871, %v1918, 0
        %1942 = vmatpush.bf16.msra.mxu0 0
        %1943 = vmatpush.bf16.msra.mxu0 0
        %1944 = vmatpush.bf16.msra.mxu0 0
        %1945 = vmatpush.bf16.msra.mxu0 0
        %1946 = vmatpush.bf16.msra.mxu0 0
        %1947 = vmatpush.bf16.msra.mxu0 0
        %1948 = vmatpush.bf16.msra.mxu0 %v1936
        %1949 = vmatpush.bf16.msra.mxu0 %v1935
        %1950 = vmatmul.bf16.gmra.mxu0 %v1940
        %v1951 = vpop.f32.mrf.mxu0
        %v1952 = vadd.f32 %v1925, %v1951
        %v1953 = vpop.f32.mrf.mxu0
        %v1954 = vadd.f32 %v1925, %v1953
        %1955 = vdwg.mxu0
        %v1956 = vmax.f32 %v1952, 0.0
        %v1957 = vmax.f32 %v1954, 0.0
        %v1958 = vadd.f32 %v1876, %v1956
        %v1959 = vadd.f32 %v1877, %v1957
        %v1960 = vld [vmem:[%s787] sm:$0x1]
        %v1961 = vld [vmem:[%s790] sm:$0x1]
        %v1962 = vsel %vm871, %v1958, 0.0
        %1963 = vadd.xlane.f32.xlu0 %v1962
        %v1964 = vpop.xlane.xlu0 %1963
        %v1965 = vsel %vm871, %v1959, 0.0
        %1966 = vadd.xlane.f32.xlu0 %v1965
        %v1967 = vpop.xlane.xlu0 %1966
        %v1968 = vmul.f32 %v1964, %v1829
        %v1969 = vmul.f32 %v1967, %v1829
        %v1970 = vsub.f32 %v1958, %v1968
        %v1971 = vsub.f32 %v1959, %v1969
        %v1972 = vmul.f32 %v1970, %v1970
        %v1973 = vmul.f32 %v1971, %v1971
        %v1974 = vsel %vm871, %v1972, 0.0
        %1975 = vadd.xlane.f32.xlu0 %v1974
        %v1976 = vpop.xlane.xlu0 %1975
        %v1977 = vsel %vm871, %v1973, 0.0
        %1978 = vadd.xlane.f32.xlu0 %v1977
        %v1979 = vpop.xlane.xlu0 %1978
        %v1980 = vmul.f32 %v1976, %v1829
        %v1981 = vmul.f32 %v1979, %v1829
        %v1982 = vadd.f32 %v1980, 1e-05
        %v1983 = vadd.f32 %v1981, 1e-05
        %v1984 = vrsqrt.pop %v1982
        %v1985 = vmul.f32 %v1984, %v1982
        %v1986 = vmul.f32 %v1985, %v1984
        %v1987 = vmul.f32 0.5, %v1986
        %v1988 = vsub.f32 1.5, %v1987
        %v1989 = vmul.f32 %v1984, %v1988
        %vm1990 = vweird.f32 %v1982
        %vm1991 = vweird.f32 %v1984
        %vm1992 = vmor %vm1990, %vm1991
        %v1993 = vsel %vm1992, %v1984, %v1989
        %v1994 = vrsqrt.pop %v1983
        %v1995 = vmul.f32 %v1994, %v1983
        %v1996 = vmul.f32 %v1995, %v1994
        %v1997 = vmul.f32 0.5, %v1996
        %v1998 = vsub.f32 1.5, %v1997
        %v1999 = vmul.f32 %v1994, %v1998
        %vm2000 = vweird.f32 %v1983
        %vm2001 = vweird.f32 %v1994
        %vm2002 = vmor %vm2000, %vm2001
        %v2003 = vsel %vm2002, %v1994, %v1999
        %v2004 = vmul.f32 %v1970, %v1993
        %v2005 = vmul.f32 %v1971, %v2003
        %v2007 = vperm.slane %v1960, 0
        %v2009 = vmul.f32 %v2004, %v2007
        %v2010 = vmul.f32 %v2005, %v2007
        %v2012 = vperm.slane %v1961, 0
        %v2014 = vadd.f32 %v2009, %v2012
        %v2015 = vadd.f32 %v2010, %v2012
        %2016 = vst.msk [vmem:[#allocation2] sm:$0xff] %vm871, %v2014
        %2017 = vst.msk [vmem:[#allocation2 + $0x8] sm:$0xff] %vm871, %v2015
        %p2018 = scmp.eq.s32.totalorder %s32, 1
        // Predicated region
        $region105: #{forward.1} parent=99 // pred_check
          %p2019 = pneg %p2018
        $region106: #{forward.1} parent=99 // pred_check_branch
          %2021 = sbr.rel (%p2019) target = $region108
        $region107: #{forward.1} parent=99 // pred_region
          %v2022 = vpack.c.bf16 %v2015, %v2014
          %v2023 = vld [vmem:[%s15] sm:$0xf]
          %v2024 = vld [vmem:[%s15 + $0x4] sm:$0xf]
          %v2025 = vld [vmem:[%s15 + $0x8] sm:$0xf]
          %v2026 = vld [vmem:[%s15 + $0xc] sm:$0xf]
          %v2027 = vld [vmem:[%s16] sm:$0x1]
          %v2029 = vperm.slane %v2027, 0
          %v2035 = vunpack.c.l.b16 %v2023
          %v2036 = vunpack.c.l.b16 %v2024
          %v2037 = vunpack.c.l.b16 %v2025
          %v2038 = vunpack.c.l.b16 %v2026
          %v2039 = vpack.c.b16 %v2036, %v2035
          %v2040 = vpack.c.b16 %v2038, %v2037
          %v2044 = vsel %vm871, %v2022, 0
          %2046 = vmatpush.bf16.msra.mxu0 0
          %2047 = vmatpush.bf16.msra.mxu0 0
          %2048 = vmatpush.bf16.msra.mxu0 0
          %2049 = vmatpush.bf16.msra.mxu0 0
          %2050 = vmatpush.bf16.msra.mxu0 0
          %2051 = vmatpush.bf16.msra.mxu0 0
          %2052 = vmatpush.bf16.msra.mxu0 %v2040
          %2053 = vmatpush.bf16.msra.mxu0 %v2039
          %2054 = vmatmul.bf16.gmra.mxu0 %v2044
          %v2055 = vpop.f32.mrf.mxu0
          %v2056 = vadd.f32 %v2029, %v2055
          %v2057 = vpop.f32.mrf.mxu0
          %v2058 = vadd.f32 %v2029, %v2057
          %2059 = vdwg.mxu0
          %v2060 = vmul.f32 %v2056, 0.5
          %v2061 = vmul.f32 %v2058, 0.5
          %v2062 = vmul.f32 %v2056, 0.70710677
          %v2063 = vmul.f32 %v2058, 0.70710677
          %v2064 = vmul.f32 %v2062, %v2062
          %v2065 = vmin.f32 16.0, %v2064
          %v2066 = vmul.f32 %v2065, 2.1237322e-06
          %v2067 = vadd.f32 %v2066, 0.00028619796
          %v2068 = vmul.f32 %v2065, %v2067
          %v2069 = vadd.f32 %v2068, 0.0036580483
          %v2070 = vmul.f32 %v2065, %v2069
          %v2071 = vadd.f32 %v2070, 0.05243302
          %v2072 = vmul.f32 %v2065, %v2071
          %v2073 = vadd.f32 %v2072, 0.18741608
          %v2074 = vmul.f32 %v2065, %v2073
          %v2075 = vadd.f32 %v2074, 1.1283791
          %v2076 = vmul.f32 %v2062, %v2075
          %v2077 = vmul.f32 %v2065, 3.8918573e-05
          %v2078 = vadd.f32 %v2077, 0.001143296
          %v2079 = vmul.f32 %v2065, %v2078
          %v2080 = vadd.f32 %v2079, 0.014752088
          %v2081 = vmul.f32 %v2065, %v2080
          %v2082 = vadd.f32 %v2081, 0.112945676
          %v2083 = vmul.f32 %v2065, %v2082
          %v2084 = vadd.f32 %v2083, 0.4994258
          %v2085 = vmul.f32 %v2065, %v2084
          %v2086 = vadd.f32 %v2085, 1.0
          %v2087 = vrcp.pop %v2086
          %v2088 = vmul.f32 %v2086, %v2087
          %v2089 = vsub.f32 1.0, %v2088
          %v2090 = vmul.f32 %v2087, %v2089
          %v2091 = vadd.f32 %v2087, %v2090
          %vm2092 = vweird.f32 %v2086
          %vm2093 = vweird.f32 %v2087
          %vm2094 = vmor %vm2092, %vm2093
          %v2095 = vsel %vm2094, %v2087, %v2091
          %v2096 = vand.u32 2147483647, %v2086
          %vm2097 = vcmp.eq.f32.partialorder %v2096, 8.507059e+37
          %v2098 = vand.u32 %v2086, 2147483648
          %v2099 = vor.u32 1.1754944e-38, %v2098
          %v2100 = vsel %vm2097, %v2099, %v2095
          %v2101 = vmul.f32 %v2076, %v2100
          %v2102 = vmin.f32 %v2101, 1.0
          %v2103 = vmax.f32 %v2102, -1.0
          %v2104 = vmul.f32 %v2063, %v2063
          %v2105 = vmin.f32 16.0, %v2104
          %v2106 = vmul.f32 %v2105, 2.1237322e-06
          %v2107 = vadd.f32 %v2106, 0.00028619796
          %v2108 = vmul.f32 %v2105, %v2107
          %v2109 = vadd.f32 %v2108, 0.0036580483
          %v2110 = vmul.f32 %v2105, %v2109
          %v2111 = vadd.f32 %v2110, 0.05243302
          %v2112 = vmul.f32 %v2105, %v2111
          %v2113 = vadd.f32 %v2112, 0.18741608
          %v2114 = vmul.f32 %v2105, %v2113
          %v2115 = vadd.f32 %v2114, 1.1283791
          %v2116 = vmul.f32 %v2063, %v2115
          %v2117 = vmul.f32 %v2105, 3.8918573e-05
          %v2118 = vadd.f32 %v2117, 0.001143296
          %v2119 = vmul.f32 %v2105, %v2118
          %v2120 = vadd.f32 %v2119, 0.014752088
          %v2121 = vmul.f32 %v2105, %v2120
          %v2122 = vadd.f32 %v2121, 0.112945676
          %v2123 = vmul.f32 %v2105, %v2122
          %v2124 = vadd.f32 %v2123, 0.4994258
          %v2125 = vmul.f32 %v2105, %v2124
          %v2126 = vadd.f32 %v2125, 1.0
          %v2127 = vrcp.pop %v2126
          %v2128 = vmul.f32 %v2126, %v2127
          %v2129 = vsub.f32 1.0, %v2128
          %v2130 = vmul.f32 %v2127, %v2129
          %v2131 = vadd.f32 %v2127, %v2130
          %vm2132 = vweird.f32 %v2126
          %vm2133 = vweird.f32 %v2127
          %vm2134 = vmor %vm2132, %vm2133
          %v2135 = vsel %vm2134, %v2127, %v2131
          %v2136 = vand.u32 2147483647, %v2126
          %vm2137 = vcmp.eq.f32.partialorder %v2136, 8.507059e+37
          %v2138 = vand.u32 %v2126, 2147483648
          %v2139 = vor.u32 1.1754944e-38, %v2138
          %v2140 = vsel %vm2137, %v2139, %v2135
          %v2141 = vmul.f32 %v2116, %v2140
          %v2142 = vmin.f32 %v2141, 1.0
          %v2143 = vmax.f32 %v2142, -1.0
          %v2144 = vadd.f32 %v2103, 1.0
          %v2145 = vadd.f32 %v2143, 1.0
          %v2146 = vmul.f32 %v2060, %v2144
          %v2147 = vmul.f32 %v2061, %v2145
          %v2148 = vpack.c.bf16 %v2147, %v2146
          %v2149 = vld [vmem:[%s17] sm:$0xf]
          %v2150 = vld [vmem:[%s17 + $0x4] sm:$0xf]
          %v2151 = vld [vmem:[%s17 + $0x8] sm:$0xf]
          %v2152 = vld [vmem:[%s18] sm:$0x1]
          %v2154 = vperm.slane %v2152, 0
          %v2159 = vunpack.c.l.b16 %v2149
          %v2160 = vunpack.c.l.b16 %v2150
          %v2161 = vunpack.c.l.b16 %v2151
          %v2162 = vpack.c.b16 %v2160, %v2159
          %v2163 = vpack.c.b16 %v2161, %v2161
          %vm2165 = vcmask 195584
          %v2167 = vsel %vm2165, %v2148, 0
          %v2170 = vsel %vm1033, %v2163, 0
          %2172 = vmatpush.bf16.msra.mxu0 0
          %2173 = vmatpush.bf16.msra.mxu0 0
          %2174 = vmatpush.bf16.msra.mxu0 0
          %2175 = vmatpush.bf16.msra.mxu0 0
          %2176 = vmatpush.bf16.msra.mxu0 0
          %2177 = vmatpush.bf16.msra.mxu0 0
          %2178 = vmatpush.bf16.msra.mxu0 %v2170
          %2179 = vmatpush.bf16.msra.mxu0 %v2162
          %2180 = vmatmul.bf16.gmra.mxu0 %v2167
          %v2181 = vpop.f32.mrf.mxu0
          %v2182 = vadd.f32 %v2154, %v2181
          %v2183 = vpop.f32.mrf.mxu0
          %v2184 = vadd.f32 %v2154, %v2183
          %2185 = vdwg.mxu0
          %v2186 = vtanh.pop %v2182
          %v2187 = vtanh.pop %v2184
          %v2188 = vld [vmem:[%s19] sm:$0x1]
          %v2190 = vperm.slane %v2188, 0
          %v2192 = vmul.f32 %v2186, %v2190
          %v2193 = vmul.f32 %v2187, %v2190
          %vm2194 = vcmask 130048
          %v2195 = vsel %vm2194, %v2192, 0.0
          %2196 = vadd.xlane.f32.xlu0 %v2195
          %v2197 = vpop.xlane.xlu0 %2196
          %v2198 = vsel %vm2194, %v2193, 0.0
          %2199 = vadd.xlane.f32.xlu0 %v2198
          %v2200 = vpop.xlane.xlu0 %2199
          %v2201 = vrot.slane %v2197, 4
          %v2202 = vmax.f32 %v2197, %v2201
          %v2203 = vrot.slane %v2202, 2
          %v2204 = vmax.f32 %v2202, %v2203
          %v2205 = vrot.slane %v2204, 1
          %v2206 = vmax.f32 %v2204, %v2205
          %v2207 = vrot.slane %v2200, 4
          %v2208 = vmax.f32 %v2200, %v2207
          %v2209 = vrot.slane %v2208, 2
          %v2210 = vmax.f32 %v2208, %v2209
          %v2211 = vrot.slane %v2210, 1
          %v2212 = vmax.f32 %v2210, %v2211
          %v2213 = vsub.f32 %v2197, %v2206
          %v2214 = vsub.f32 %v2200, %v2212
          %v2215 = vmul.f32 %v2213, 1.442695
          %v2216 = vpow.pop %v2215
          %v2217 = vmul.f32 %v2214, 1.442695
          %v2218 = vpow.pop %v2217
          %v2219 = vrot.slane %v2216, 4
          %v2220 = vadd.f32 %v2216, %v2219
          %v2221 = vrot.slane %v2220, 2
          %v2222 = vadd.f32 %v2220, %v2221
          %v2223 = vrot.slane %v2222, 1
          %v2224 = vadd.f32 %v2222, %v2223
          %v2225 = vrot.slane %v2218, 4
          %v2226 = vadd.f32 %v2218, %v2225
          %v2227 = vrot.slane %v2226, 2
          %v2228 = vadd.f32 %v2226, %v2227
          %v2229 = vrot.slane %v2228, 1
          %v2230 = vadd.f32 %v2228, %v2229
          %v2231 = vrcp.pop %v2224
          %v2232 = vrcp.pop %v2230
          %v2233 = vmul.f32 %v2216, %v2231
          %v2234 = vmul.f32 %v2218, %v2232
          %v2235 = vmul.f32 %v2014, %v2233
          %v2236 = vmul.f32 %v2015, %v2234
          %v2237 = vsel %vm871, %v2235, 0.0
          %v2238 = vsel %vm871, %v2236, 0.0
          %v2239 = vadd.f32 %v2237, %v2238
          %2240 = vst.msk [vmem:[#allocation3] sm:$0xff] %vm871, %v2239
        $region108: #{forward.1} parent=99 // pred_fallthru
          _
        // Predicated region
        $region109: #{forward.1} parent=99 // pred_check
          %p2241 = pneg %p525
        $region110: #{forward.1} parent=99 // pred_check_branch
          %2243 = sbr.rel (%p2241) target = $region112
        $region111: #{forward.1} parent=99 // pred_region
          %2245 = vsyncadd [#allocation4], 0
          %s2247 = sshll.u32 [#allocation3], 4
          %s2248 = int_to_ptr.vmem [resolvable:$true] %s2247
          %s2249 = sshll.u32 %s20, 4
          %s2250 = int_to_ptr.hbm [resolvable:$true] %s2249
          %2252 = dma.vmem_to_hbm [thread:$0]  %s2248, 128, %s2250, [#allocation4]
        $region112: #{forward.1} parent=99 // pred_fallthru
          _
        // Predicated region
        $region113: #{forward.1} parent=99 // pred_check
          %p2253 = pneg %p525
        $region114: #{forward.1} parent=99 // pred_check_branch
          %2255 = sbr.rel (%p2253) target = $region116
        $region115: #{forward.1} parent=99 // pred_region
          %2257 = dma.done [#allocation4], 128
        $region116: #{forward.1} parent=99 // pred_fallthru
          _
      $region100: #{forward.1} parent=5 // pred_fallthru
        _
      %p2258 = scmp.le.s32.totalorder 2, %s27
      // Predicated region
      $region117: #{forward.1} parent=5 // pred_check
        %p2259 = pneg %p2258
      $region118: #{forward.1} parent=5 // pred_check_branch
        %2261 = sbr.rel (%p2259) target = $region120
      $region119: #{forward.1} parent=5 // pred_region
        %s2262 = ssub.s32 %s27, 2
      $region120: #{forward.1} parent=5 // pred_fallthru
        _
    $region6: #{forward.1} parent=1 // loop_footer
      %s31 = sadd.s32 1, %s27
    $region7: #{forward.1} parent=1 // loop_footer_branch
      %26 = sbr.rel target = $region3
    $region8: #{forward.1} parent=1 // loop_exit
      _
    %2263 = vsyncpa [#allocation4], 1
    %s2264 = scalar_lea.sflag [#allocation4], 1
    %2265 = vsyncpa %s2264, 1

</llo_original>
